<compile_context>
chip_gen: v7x
topology: tpu7x:2x2x1
jax: 0.10.0
libtpu: 0.0.40
codegen_flags: <defaults>
</compile_context>

<pallas_src>
import functools

import jax
import jax.numpy as jnp
from jax.experimental import pallas as pl
from jax.experimental.pallas import tpu as pltpu


_TARGET_BLOCK_BYTES = 2 * 1024 * 1024   # ~2 MiB X block (x2 pipeline buffers)
_SMALL_INPUT_BYTES = 64 * 1024          # below this, plain jnp is faster


def _round_up(x, m):
    return ((x + m - 1) // m) * m


# ----------------------------------------------------------------------------
# Pallas kernel: evaluate_true (sphere) + optional noise add + optional negate.
# Operates on a (TB, D) tile of X; emits a lane-dense (1, TB) tile of f.
# ----------------------------------------------------------------------------
def _problem_kernel(*refs, noise_std, negate, use_noise):
    if use_noise:
        x_ref, noise_ref, o_ref = refs
    else:
        x_ref, o_ref = refs

    x = x_ref[...].astype(jnp.float32)                    # [TB, D] (cast on VPU)
    xsq = x * x

    # Row sums laid out lane-major: res[i, t] = sum_d xsq[t, d].
    # Uses the otherwise-idle MXU and yields a lane-dense (1, TB) result,
    # avoiding a [TB, 1] masked-store output slab.
    ones = jnp.ones((8, x.shape[-1]), jnp.float32)
    res = jax.lax.dot_general(
        ones, xsq,
        dimension_numbers=(((1,), (1,)), ((), ())),
        preferred_element_type=jnp.float32,
        precision=jax.lax.Precision.HIGHEST,
    )                                                      # [8, TB] (rows identical)
    f = res[0:1, :]                                        # [1, TB]

    if use_noise:
        f = f + jnp.float32(noise_std) * noise_ref[...].astype(jnp.float32)
    if negate:
        f = -f
    o_ref[...] = f.astype(o_ref.dtype)


class BaseProblemPallas:
    """JAX/Pallas port of BaseProblem (with sphere evaluate_true)."""

    def __init__(self, dim, noise_std=None, negate=False):
        self.dim = dim
        self.noise_std = noise_std
        self.negate = negate
        # _bounds deterministic: (-5, 5) per dimension; buffer is transposed
        # to shape [2, dim] exactly like register_buffer(... .transpose(-1,-2)).
        self._bounds = [(-5.0, 5.0)] * dim
        self.bounds = jnp.asarray(self._bounds, dtype=jnp.float32).T   # [2, dim]

    def __call__(self, X, noise=True, *, key=None):
        X = jnp.asarray(X)
        batch = X.ndim > 1
        X2 = X if batch else X[None, :]                    # [B, D]
        B, D = X2.shape

        use_noise = bool(noise and self.noise_std is not None)
        out_dtype = X2.dtype if jnp.issubdtype(X2.dtype, jnp.floating) else jnp.float32

        if use_noise:
            if key is None:
                key = jax.random.PRNGKey(0)
            # torch.randn_like(f): standard-normal noise with f's shape [B].
            noise_flat = jax.random.normal(key, (B,), dtype=jnp.float32)

        # --- tiny-input fast path: pallas_call launch overhead dominates -----
        if B * D * X2.dtype.itemsize < _SMALL_INPUT_BYTES:
            f = jnp.sum(X2.astype(jnp.float32) ** 2, axis=-1)
            if use_noise:
                f = f + jnp.float32(self.noise_std) * noise_flat
            if self.negate:
                f = -f
            f = f.astype(out_dtype)
            return f if batch else f[0]

        # --- tile selection: ~2 MiB per X block, batch tile multiple of 128 --
        tb_target = max(128, ((_TARGET_BLOCK_BYTES // (D * 4)) // 128) * 128)
        TB = min(tb_target, _round_up(B, 128))
        B_pad = _round_up(B, TB)

        Xp = X2 if B_pad == B else jnp.pad(X2, ((0, B_pad - B), (0, 0)))

        inputs = [Xp]
        in_specs = [pl.BlockSpec((TB, D), lambda i: (i, 0))]
        if use_noise:
            npad = noise_flat if B_pad == B else jnp.pad(noise_flat, (0, B_pad - B))
            inputs.append(npad.reshape(1, B_pad))          # lane-dense noise
            in_specs.append(pl.BlockSpec((1, TB), lambda i: (0, i)))

        kernel = functools.partial(
            _problem_kernel,
            noise_std=self.noise_std,
            negate=self.negate,
            use_noise=use_noise,
        )

        f2d = pl.pallas_call(
            kernel,
            out_shape=jax.ShapeDtypeStruct((1, B_pad), out_dtype),
            grid_spec=pltpu.PrefetchScalarGridSpec(
                num_scalar_prefetch=0,
                grid=(B_pad // TB,),
                in_specs=in_specs,
                out_specs=pl.BlockSpec((1, TB), lambda i: (0, i)),
            ),
            compiler_params=pltpu.CompilerParams(
                dimension_semantics=("parallel",),
            ),
        )(*inputs)

        f = f2d[0, :B]                                     # [B]
        return f if batch else f[0]


# ----------------------------------------------------------------------------
# Pure-JAX reference for a sanity check.
# ----------------------------------------------------------------------------
def _ref_forward(problem, X, noise=True, key=None):
    X = jnp.asarray(X)
    batch = X.ndim > 1
    X2 = X if batch else X[None, :]
    f = jnp.sum(X2.astype(jnp.float32) ** 2, axis=-1)
    if noise and problem.noise_std is not None:
        if key is None:
            key = jax.random.PRNGKey(0)
        f = f + problem.noise_std * jax.random.normal(key, (X2.shape[0],),
                                                      dtype=jnp.float32)
    if problem.negate:
        f = -f
    return f if batch else f[0]


if __name__ == "__main__":
    B, D = 1000, 64           # big enough to take the Pallas path; exercises padding
    key = jax.random.PRNGKey(0)
    kx, knoise = jax.random.split(key)
    X = jax.random.normal(kx, (B, D), dtype=jnp.float32)

    problem = BaseProblemPallas(dim=D, noise_std=0.1, negate=True)

    # Batched call with observation noise (Pallas kernel, noise input variant).
    out = jax.block_until_ready(problem(X, noise=True, key=knoise))
    ref = _ref_forward(problem, X, noise=True, key=knoise)
    assert out.shape == (B,)
    assert jnp.allclose(out, ref, atol=1e-3, rtol=1e-3), (out[:4], ref[:4])

    # Batched call without noise (Pallas kernel, no noise input / DMA stream).
    out_nn = jax.block_until_ready(problem(X, noise=False))
    ref_nn = _ref_forward(problem, X, noise=False)
    assert jnp.allclose(out_nn, ref_nn, atol=1e-3, rtol=1e-3)

    # Un-batched (1-D X) path, no noise (tiny -> fused jnp fast path).
    out1 = jax.block_until_ready(problem(X[0], noise=False))
    ref1 = _ref_forward(problem, X[0], noise=False)
    assert out1.shape == ()
    assert jnp.allclose(out1, ref1, atol=1e-3, rtol=1e-3)

    print("KERNEL_OK")
</pallas_src>

<mosaic_0001>
module attributes {stable_mosaic.version = 11 : i64} {
  func.func @_problem_kernel(%arg0: i32, %arg1: memref<1024x64xf32, #tpu.memory_space<vmem>>, %arg2: memref<1x1024xf32, #tpu.memory_space<vmem>>, %arg3: memref<1x1024xf32, #tpu.memory_space<vmem>>) attributes {dimension_semantics = [#tpu.dimension_semantics<parallel>], iteration_bounds = array<i64: 1>, scalar_prefetch = 0 : i64, scratch_operands = 0 : i64, tpu.core_type = #tpu.core_type<tc>, window_params = [{transform_indices = @transform_0, window_bounds = array<i64: 1024, 64>}, {transform_indices = @transform_1, window_bounds = array<i64: 1, 1024>}, {transform_indices = @transform_2, window_bounds = array<i64: 1, 1024>}]} {
    %c0 = arith.constant 0 : index
    %c0_0 = arith.constant 0 : index
    %0 = vector.load %arg1[%c0, %c0_0] : memref<1024x64xf32, #tpu.memory_space<vmem>>, vector<1024x64xf32>
    %1 = arith.mulf %0, %0 : vector<1024x64xf32>
    %cst = arith.constant 1.000000e+00 : f32
    %2 = vector.broadcast %cst : f32 to vector<8x64xf32>
    %cst_1 = arith.constant dense<0.000000e+00> : vector<8x1024xf32>
    %3 = tpu.matmul %2, %1, %cst_1 {dimension_numbers = #tpu.dot_dimension_numbers<[1], [1], [0], [0], [0, 0, 1, 0], [], []>, precision = #tpu.contract_precision<fp32>} : vector<8x64xf32>, vector<1024x64xf32>, vector<8x1024xf32> -> vector<8x1024xf32>
    %4 = vector.extract_strided_slice %3 {offsets = [0, 0], sizes = [1, 1024], strides = [1, 1]} : vector<8x1024xf32> to vector<1x1024xf32>
    %c0_2 = arith.constant 0 : index
    %c0_3 = arith.constant 0 : index
    %5 = vector.load %arg2[%c0_2, %c0_3] : memref<1x1024xf32, #tpu.memory_space<vmem>>, vector<1x1024xf32>
    %cst_4 = arith.constant 1.000000e-01 : f32
    %6 = vector.broadcast %cst_4 : f32 to vector<1x1024xf32>
    %7 = arith.mulf %6, %5 : vector<1x1024xf32>
    %8 = arith.addf %4, %7 : vector<1x1024xf32>
    %cst_5 = arith.constant 0.000000e+00 : f32
    %9 = vector.broadcast %cst_5 : f32 to vector<1x1024xf32>
    %10 = arith.subf %9, %8 : vector<1x1024xf32>
    %c0_6 = arith.constant 0 : index
    %c0_7 = arith.constant 0 : index
    %11 = vector.load %arg3[%c0_6, %c0_7] : memref<1x1024xf32, #tpu.memory_space<vmem>>, vector<1x1024xf32>
    tpu.vector_store %arg3[%c0_6, %c0_7], %10 {strides = array<i32>} : memref<1x1024xf32, #tpu.memory_space<vmem>>, vector<1x1024xf32>,
    return
  }
  func.func @transform_0(%arg0: i32) -> (i32, i32) {
    %c0_i32 = arith.constant 0 : i32
    %c0_i32_0 = arith.constant 0 : i32
    return %arg0, %c0_i32 : i32, i32
  }
  func.func @transform_1(%arg0: i32) -> (i32, i32) {
    %c0_i32 = arith.constant 0 : i32
    %c0_i32_0 = arith.constant 0 : i32
    return %c0_i32, %arg0 : i32, i32
  }
  func.func @transform_2(%arg0: i32) -> (i32, i32) {
    %c0_i32 = arith.constant 0 : i32
    %c0_i32_0 = arith.constant 0 : i32
    return %c0_i32, %arg0 : i32, i32
  }
}

</mosaic_0001>

<llo_original>
// kernel: tpu_custom_call.1
$region0: #{tpu_custom_call.1}
  #allocation0 [shape = 'u32[]', space=smem, size = 0x4, offset = 0x4, fixed_abs, tag = 'smem constant byte address 0x4 - core index']
  #allocation1 [shape = 'u32[144,128]{1,0:T(1,128)}', space=vmem, size = 0x12000, scoped, tag = 'internal scratch']
  %s0 = inlined_call_operand.vmem [shape: f32[1024,64], index: 0, kind: input, shape index: {}]
  %s1 = inlined_call_operand.vmem [shape: f32[1,1024], index: 1, kind: input, shape index: {}]
  %s2 = inlined_call_operand.hbm [shape: f32[1,1024], index: 2, kind: output, shape index: {}]
  %s3 = sld [smem:[#allocation0]]
  $region18: #{tpu_custom_call.1} parent=0
    _
  %s5 = ssub.s32 1, %s3
  %s6 = scalar_select 0, %s5, %s3
  $region1: #{tpu_custom_call.1} parent=0
    #allocation2 [shape = 'u8[4096]{0}', space=vmem, size = 0x1000, scoped, tag = 'output window, operand 0, single buffered']
    #allocation3 [shape = 's32[1]{0}', space=sflag, size = 0x4, scoped, tag = 'scoped memory for tpu_custom_call.1']
    %7 = vsyncpa [#allocation3], 0
    // Predicated region
    $region2: #{tpu_custom_call.1} parent=1 // pred_check
      _
    $region3: #{tpu_custom_call.1} parent=1 // pred_check_branch
      %9 = sbr.rel (0) target = $region5
    $region4: #{tpu_custom_call.1} parent=1 // pred_region
      _
    $region5: #{tpu_custom_call.1} parent=1 // pred_fallthru
      _
    // Predicated region
    $region6: #{tpu_custom_call.1} parent=1 // pred_check
      _
    $region7: #{tpu_custom_call.1} parent=1 // pred_check_branch
      %11 = sbr.rel (0) target = $region9
    $region8: #{tpu_custom_call.1} parent=1 // pred_region
      _
    $region9: #{tpu_custom_call.1} parent=1 // pred_fallthru
      _
    %v12 = vld [vmem:[%s0] sm:$0xff]
    %v13 = vld [vmem:[%s0 + $0x8] sm:$0xff]
    %v14 = vld [vmem:[%s0 + $0x10] sm:$0xff]
    %v15 = vld [vmem:[%s0 + $0x18] sm:$0xff]
    %v16 = vld [vmem:[%s0 + $0x20] sm:$0xff]
    %v17 = vld [vmem:[%s0 + $0x28] sm:$0xff]
    %v18 = vld [vmem:[%s0 + $0x30] sm:$0xff]
    %v19 = vld [vmem:[%s0 + $0x38] sm:$0xff]
    %v20 = vld [vmem:[%s0 + $0x40] sm:$0xff]
    %v21 = vld [vmem:[%s0 + $0x48] sm:$0xff]
    %v22 = vld [vmem:[%s0 + $0x50] sm:$0xff]
    %v23 = vld [vmem:[%s0 + $0x58] sm:$0xff]
    %v24 = vld [vmem:[%s0 + $0x60] sm:$0xff]
    %v25 = vld [vmem:[%s0 + $0x68] sm:$0xff]
    %v26 = vld [vmem:[%s0 + $0x70] sm:$0xff]
    %v27 = vld [vmem:[%s0 + $0x78] sm:$0xff]
    %v28 = vld [vmem:[%s0 + $0x80] sm:$0xff]
    %v29 = vld [vmem:[%s0 + $0x88] sm:$0xff]
    %v30 = vld [vmem:[%s0 + $0x90] sm:$0xff]
    %v31 = vld [vmem:[%s0 + $0x98] sm:$0xff]
    %v32 = vld [vmem:[%s0 + $0xa0] sm:$0xff]
    %v33 = vld [vmem:[%s0 + $0xa8] sm:$0xff]
    %v34 = vld [vmem:[%s0 + $0xb0] sm:$0xff]
    %v35 = vld [vmem:[%s0 + $0xb8] sm:$0xff]
    %v36 = vld [vmem:[%s0 + $0xc0] sm:$0xff]
    %v37 = vld [vmem:[%s0 + $0xc8] sm:$0xff]
    %v38 = vld [vmem:[%s0 + $0xd0] sm:$0xff]
    %v39 = vld [vmem:[%s0 + $0xd8] sm:$0xff]
    %v40 = vld [vmem:[%s0 + $0xe0] sm:$0xff]
    %v41 = vld [vmem:[%s0 + $0xe8] sm:$0xff]
    %v42 = vld [vmem:[%s0 + $0xf0] sm:$0xff]
    %v43 = vld [vmem:[%s0 + $0xf8] sm:$0xff]
    %v44 = vld [vmem:[%s0 + $0x100] sm:$0xff]
    %v45 = vld [vmem:[%s0 + $0x108] sm:$0xff]
    %v46 = vld [vmem:[%s0 + $0x110] sm:$0xff]
    %v47 = vld [vmem:[%s0 + $0x118] sm:$0xff]
    %v48 = vld [vmem:[%s0 + $0x120] sm:$0xff]
    %v49 = vld [vmem:[%s0 + $0x128] sm:$0xff]
    %v50 = vld [vmem:[%s0 + $0x130] sm:$0xff]
    %v51 = vld [vmem:[%s0 + $0x138] sm:$0xff]
    %v52 = vld [vmem:[%s0 + $0x140] sm:$0xff]
    %v53 = vld [vmem:[%s0 + $0x148] sm:$0xff]
    %v54 = vld [vmem:[%s0 + $0x150] sm:$0xff]
    %v55 = vld [vmem:[%s0 + $0x158] sm:$0xff]
    %v56 = vld [vmem:[%s0 + $0x160] sm:$0xff]
    %v57 = vld [vmem:[%s0 + $0x168] sm:$0xff]
    %v58 = vld [vmem:[%s0 + $0x170] sm:$0xff]
    %v59 = vld [vmem:[%s0 + $0x178] sm:$0xff]
    %v60 = vld [vmem:[%s0 + $0x180] sm:$0xff]
    %v61 = vld [vmem:[%s0 + $0x188] sm:$0xff]
    %v62 = vld [vmem:[%s0 + $0x190] sm:$0xff]
    %v63 = vld [vmem:[%s0 + $0x198] sm:$0xff]
    %v64 = vld [vmem:[%s0 + $0x1a0] sm:$0xff]
    %v65 = vld [vmem:[%s0 + $0x1a8] sm:$0xff]
    %v66 = vld [vmem:[%s0 + $0x1b0] sm:$0xff]
    %v67 = vld [vmem:[%s0 + $0x1b8] sm:$0xff]
    %v68 = vld [vmem:[%s0 + $0x1c0] sm:$0xff]
    %v69 = vld [vmem:[%s0 + $0x1c8] sm:$0xff]
    %v70 = vld [vmem:[%s0 + $0x1d0] sm:$0xff]
    %v71 = vld [vmem:[%s0 + $0x1d8] sm:$0xff]
    %v72 = vld [vmem:[%s0 + $0x1e0] sm:$0xff]
    %v73 = vld [vmem:[%s0 + $0x1e8] sm:$0xff]
    %v74 = vld [vmem:[%s0 + $0x1f0] sm:$0xff]
    %v75 = vld [vmem:[%s0 + $0x1f8] sm:$0xff]
    %v76 = vld [vmem:[%s0 + $0x200] sm:$0xff]
    %v77 = vld [vmem:[%s0 + $0x208] sm:$0xff]
    %v78 = vld [vmem:[%s0 + $0x210] sm:$0xff]
    %v79 = vld [vmem:[%s0 + $0x218] sm:$0xff]
    %v80 = vld [vmem:[%s0 + $0x220] sm:$0xff]
    %v81 = vld [vmem:[%s0 + $0x228] sm:$0xff]
    %v82 = vld [vmem:[%s0 + $0x230] sm:$0xff]
    %v83 = vld [vmem:[%s0 + $0x238] sm:$0xff]
    %v84 = vld [vmem:[%s0 + $0x240] sm:$0xff]
    %v85 = vld [vmem:[%s0 + $0x248] sm:$0xff]
    %v86 = vld [vmem:[%s0 + $0x250] sm:$0xff]
    %v87 = vld [vmem:[%s0 + $0x258] sm:$0xff]
    %v88 = vld [vmem:[%s0 + $0x260] sm:$0xff]
    %v89 = vld [vmem:[%s0 + $0x268] sm:$0xff]
    %v90 = vld [vmem:[%s0 + $0x270] sm:$0xff]
    %v91 = vld [vmem:[%s0 + $0x278] sm:$0xff]
    %v92 = vld [vmem:[%s0 + $0x280] sm:$0xff]
    %v93 = vld [vmem:[%s0 + $0x288] sm:$0xff]
    %v94 = vld [vmem:[%s0 + $0x290] sm:$0xff]
    %v95 = vld [vmem:[%s0 + $0x298] sm:$0xff]
    %v96 = vld [vmem:[%s0 + $0x2a0] sm:$0xff]
    %v97 = vld [vmem:[%s0 + $0x2a8] sm:$0xff]
    %v98 = vld [vmem:[%s0 + $0x2b0] sm:$0xff]
    %v99 = vld [vmem:[%s0 + $0x2b8] sm:$0xff]
    %v100 = vld [vmem:[%s0 + $0x2c0] sm:$0xff]
    %v101 = vld [vmem:[%s0 + $0x2c8] sm:$0xff]
    %v102 = vld [vmem:[%s0 + $0x2d0] sm:$0xff]
    %v103 = vld [vmem:[%s0 + $0x2d8] sm:$0xff]
    %v104 = vld [vmem:[%s0 + $0x2e0] sm:$0xff]
    %v105 = vld [vmem:[%s0 + $0x2e8] sm:$0xff]
    %v106 = vld [vmem:[%s0 + $0x2f0] sm:$0xff]
    %v107 = vld [vmem:[%s0 + $0x2f8] sm:$0xff]
    %v108 = vld [vmem:[%s0 + $0x300] sm:$0xff]
    %v109 = vld [vmem:[%s0 + $0x308] sm:$0xff]
    %v110 = vld [vmem:[%s0 + $0x310] sm:$0xff]
    %v111 = vld [vmem:[%s0 + $0x318] sm:$0xff]
    %v112 = vld [vmem:[%s0 + $0x320] sm:$0xff]
    %v113 = vld [vmem:[%s0 + $0x328] sm:$0xff]
    %v114 = vld [vmem:[%s0 + $0x330] sm:$0xff]
    %v115 = vld [vmem:[%s0 + $0x338] sm:$0xff]
    %v116 = vld [vmem:[%s0 + $0x340] sm:$0xff]
    %v117 = vld [vmem:[%s0 + $0x348] sm:$0xff]
    %v118 = vld [vmem:[%s0 + $0x350] sm:$0xff]
    %v119 = vld [vmem:[%s0 + $0x358] sm:$0xff]
    %v120 = vld [vmem:[%s0 + $0x360] sm:$0xff]
    %v121 = vld [vmem:[%s0 + $0x368] sm:$0xff]
    %v122 = vld [vmem:[%s0 + $0x370] sm:$0xff]
    %v123 = vld [vmem:[%s0 + $0x378] sm:$0xff]
    %v124 = vld [vmem:[%s0 + $0x380] sm:$0xff]
    %v125 = vld [vmem:[%s0 + $0x388] sm:$0xff]
    %v126 = vld [vmem:[%s0 + $0x390] sm:$0xff]
    %v127 = vld [vmem:[%s0 + $0x398] sm:$0xff]
    %v128 = vld [vmem:[%s0 + $0x3a0] sm:$0xff]
    %v129 = vld [vmem:[%s0 + $0x3a8] sm:$0xff]
    %v130 = vld [vmem:[%s0 + $0x3b0] sm:$0xff]
    %v131 = vld [vmem:[%s0 + $0x3b8] sm:$0xff]
    %v132 = vld [vmem:[%s0 + $0x3c0] sm:$0xff]
    %v133 = vld [vmem:[%s0 + $0x3c8] sm:$0xff]
    %v134 = vld [vmem:[%s0 + $0x3d0] sm:$0xff]
    %v135 = vld [vmem:[%s0 + $0x3d8] sm:$0xff]
    %v136 = vld [vmem:[%s0 + $0x3e0] sm:$0xff]
    %v137 = vld [vmem:[%s0 + $0x3e8] sm:$0xff]
    %v138 = vld [vmem:[%s0 + $0x3f0] sm:$0xff]
    %v139 = vld [vmem:[%s0 + $0x3f8] sm:$0xff]
    %v140 = vmul.f32 %v12, %v12
    %v141 = vmul.f32 %v13, %v13
    %v142 = vmul.f32 %v14, %v14
    %v143 = vmul.f32 %v15, %v15
    %v144 = vmul.f32 %v16, %v16
    %v145 = vmul.f32 %v17, %v17
    %v146 = vmul.f32 %v18, %v18
    %v147 = vmul.f32 %v19, %v19
    %v148 = vmul.f32 %v20, %v20
    %v149 = vmul.f32 %v21, %v21
    %v150 = vmul.f32 %v22, %v22
    %v151 = vmul.f32 %v23, %v23
    %v152 = vmul.f32 %v24, %v24
    %v153 = vmul.f32 %v25, %v25
    %v154 = vmul.f32 %v26, %v26
    %v155 = vmul.f32 %v27, %v27
    %v156 = vmul.f32 %v28, %v28
    %v157 = vmul.f32 %v29, %v29
    %v158 = vmul.f32 %v30, %v30
    %v159 = vmul.f32 %v31, %v31
    %v160 = vmul.f32 %v32, %v32
    %v161 = vmul.f32 %v33, %v33
    %v162 = vmul.f32 %v34, %v34
    %v163 = vmul.f32 %v35, %v35
    %v164 = vmul.f32 %v36, %v36
    %v165 = vmul.f32 %v37, %v37
    %v166 = vmul.f32 %v38, %v38
    %v167 = vmul.f32 %v39, %v39
    %v168 = vmul.f32 %v40, %v40
    %v169 = vmul.f32 %v41, %v41
    %v170 = vmul.f32 %v42, %v42
    %v171 = vmul.f32 %v43, %v43
    %v172 = vmul.f32 %v44, %v44
    %v173 = vmul.f32 %v45, %v45
    %v174 = vmul.f32 %v46, %v46
    %v175 = vmul.f32 %v47, %v47
    %v176 = vmul.f32 %v48, %v48
    %v177 = vmul.f32 %v49, %v49
    %v178 = vmul.f32 %v50, %v50
    %v179 = vmul.f32 %v51, %v51
    %v180 = vmul.f32 %v52, %v52
    %v181 = vmul.f32 %v53, %v53
    %v182 = vmul.f32 %v54, %v54
    %v183 = vmul.f32 %v55, %v55
    %v184 = vmul.f32 %v56, %v56
    %v185 = vmul.f32 %v57, %v57
    %v186 = vmul.f32 %v58, %v58
    %v187 = vmul.f32 %v59, %v59
    %v188 = vmul.f32 %v60, %v60
    %v189 = vmul.f32 %v61, %v61
    %v190 = vmul.f32 %v62, %v62
    %v191 = vmul.f32 %v63, %v63
    %v192 = vmul.f32 %v64, %v64
    %v193 = vmul.f32 %v65, %v65
    %v194 = vmul.f32 %v66, %v66
    %v195 = vmul.f32 %v67, %v67
    %v196 = vmul.f32 %v68, %v68
    %v197 = vmul.f32 %v69, %v69
    %v198 = vmul.f32 %v70, %v70
    %v199 = vmul.f32 %v71, %v71
    %v200 = vmul.f32 %v72, %v72
    %v201 = vmul.f32 %v73, %v73
    %v202 = vmul.f32 %v74, %v74
    %v203 = vmul.f32 %v75, %v75
    %v204 = vmul.f32 %v76, %v76
    %v205 = vmul.f32 %v77, %v77
    %v206 = vmul.f32 %v78, %v78
    %v207 = vmul.f32 %v79, %v79
    %v208 = vmul.f32 %v80, %v80
    %v209 = vmul.f32 %v81, %v81
    %v210 = vmul.f32 %v82, %v82
    %v211 = vmul.f32 %v83, %v83
    %v212 = vmul.f32 %v84, %v84
    %v213 = vmul.f32 %v85, %v85
    %v214 = vmul.f32 %v86, %v86
    %v215 = vmul.f32 %v87, %v87
    %v216 = vmul.f32 %v88, %v88
    %v217 = vmul.f32 %v89, %v89
    %v218 = vmul.f32 %v90, %v90
    %v219 = vmul.f32 %v91, %v91
    %v220 = vmul.f32 %v92, %v92
    %v221 = vmul.f32 %v93, %v93
    %v222 = vmul.f32 %v94, %v94
    %v223 = vmul.f32 %v95, %v95
    %v224 = vmul.f32 %v96, %v96
    %v225 = vmul.f32 %v97, %v97
    %v226 = vmul.f32 %v98, %v98
    %v227 = vmul.f32 %v99, %v99
    %v228 = vmul.f32 %v100, %v100
    %v229 = vmul.f32 %v101, %v101
    %v230 = vmul.f32 %v102, %v102
    %v231 = vmul.f32 %v103, %v103
    %v232 = vmul.f32 %v104, %v104
    %v233 = vmul.f32 %v105, %v105
    %v234 = vmul.f32 %v106, %v106
    %v235 = vmul.f32 %v107, %v107
    %v236 = vmul.f32 %v108, %v108
    %v237 = vmul.f32 %v109, %v109
    %v238 = vmul.f32 %v110, %v110
    %v239 = vmul.f32 %v111, %v111
    %v240 = vmul.f32 %v112, %v112
    %v241 = vmul.f32 %v113, %v113
    %v242 = vmul.f32 %v114, %v114
    %v243 = vmul.f32 %v115, %v115
    %v244 = vmul.f32 %v116, %v116
    %v245 = vmul.f32 %v117, %v117
    %v246 = vmul.f32 %v118, %v118
    %v247 = vmul.f32 %v119, %v119
    %v248 = vmul.f32 %v120, %v120
    %v249 = vmul.f32 %v121, %v121
    %v250 = vmul.f32 %v122, %v122
    %v251 = vmul.f32 %v123, %v123
    %v252 = vmul.f32 %v124, %v124
    %v253 = vmul.f32 %v125, %v125
    %v254 = vmul.f32 %v126, %v126
    %v255 = vmul.f32 %v127, %v127
    %v256 = vmul.f32 %v128, %v128
    %v257 = vmul.f32 %v129, %v129
    %v258 = vmul.f32 %v130, %v130
    %v259 = vmul.f32 %v131, %v131
    %v260 = vmul.f32 %v132, %v132
    %v261 = vmul.f32 %v133, %v133
    %v262 = vmul.f32 %v134, %v134
    %v263 = vmul.f32 %v135, %v135
    %v264 = vmul.f32 %v136, %v136
    %v265 = vmul.f32 %v137, %v137
    %v266 = vmul.f32 %v138, %v138
    %v267 = vmul.f32 %v139, %v139
    %vm268 = vcmask 523264
    %v270 = vsel %vm268, 1.0, 0
    %v273 = vsel %vm268, %v140, 0
    %v276 = vsel %vm268, %v141, 0
    %v279 = vsel %vm268, %v142, 0
    %v282 = vsel %vm268, %v143, 0
    %v285 = vsel %vm268, %v144, 0
    %v288 = vsel %vm268, %v145, 0
    %v291 = vsel %vm268, %v146, 0
    %v294 = vsel %vm268, %v147, 0
    %v297 = vsel %vm268, %v148, 0
    %v300 = vsel %vm268, %v149, 0
    %v303 = vsel %vm268, %v150, 0
    %v306 = vsel %vm268, %v151, 0
    %v309 = vsel %vm268, %v152, 0
    %v312 = vsel %vm268, %v153, 0
    %v315 = vsel %vm268, %v154, 0
    %v318 = vsel %vm268, %v155, 0
    %v321 = vsel %vm268, %v156, 0
    %v324 = vsel %vm268, %v157, 0
    %v327 = vsel %vm268, %v158, 0
    %v330 = vsel %vm268, %v159, 0
    %v333 = vsel %vm268, %v160, 0
    %v336 = vsel %vm268, %v161, 0
    %v339 = vsel %vm268, %v162, 0
    %v342 = vsel %vm268, %v163, 0
    %v345 = vsel %vm268, %v164, 0
    %v348 = vsel %vm268, %v165, 0
    %v351 = vsel %vm268, %v166, 0
    %v354 = vsel %vm268, %v167, 0
    %v357 = vsel %vm268, %v168, 0
    %v360 = vsel %vm268, %v169, 0
    %v363 = vsel %vm268, %v170, 0
    %v366 = vsel %vm268, %v171, 0
    %v369 = vsel %vm268, %v172, 0
    %v372 = vsel %vm268, %v173, 0
    %v375 = vsel %vm268, %v174, 0
    %v378 = vsel %vm268, %v175, 0
    %v381 = vsel %vm268, %v176, 0
    %v384 = vsel %vm268, %v177, 0
    %v387 = vsel %vm268, %v178, 0
    %v390 = vsel %vm268, %v179, 0
    %v393 = vsel %vm268, %v180, 0
    %v396 = vsel %vm268, %v181, 0
    %v399 = vsel %vm268, %v182, 0
    %v402 = vsel %vm268, %v183, 0
    %v405 = vsel %vm268, %v184, 0
    %v408 = vsel %vm268, %v185, 0
    %v411 = vsel %vm268, %v186, 0
    %v414 = vsel %vm268, %v187, 0
    %v417 = vsel %vm268, %v188, 0
    %v420 = vsel %vm268, %v189, 0
    %v423 = vsel %vm268, %v190, 0
    %v426 = vsel %vm268, %v191, 0
    %v429 = vsel %vm268, %v192, 0
    %v432 = vsel %vm268, %v193, 0
    %v435 = vsel %vm268, %v194, 0
    %v438 = vsel %vm268, %v195, 0
    %v441 = vsel %vm268, %v196, 0
    %v444 = vsel %vm268, %v197, 0
    %v447 = vsel %vm268, %v198, 0
    %v450 = vsel %vm268, %v199, 0
    %v453 = vsel %vm268, %v200, 0
    %v456 = vsel %vm268, %v201, 0
    %v459 = vsel %vm268, %v202, 0
    %v462 = vsel %vm268, %v203, 0
    %v465 = vsel %vm268, %v204, 0
    %v468 = vsel %vm268, %v205, 0
    %v471 = vsel %vm268, %v206, 0
    %v474 = vsel %vm268, %v207, 0
    %v477 = vsel %vm268, %v208, 0
    %v480 = vsel %vm268, %v209, 0
    %v483 = vsel %vm268, %v210, 0
    %v486 = vsel %vm268, %v211, 0
    %v489 = vsel %vm268, %v212, 0
    %v492 = vsel %vm268, %v213, 0
    %v495 = vsel %vm268, %v214, 0
    %v498 = vsel %vm268, %v215, 0
    %v501 = vsel %vm268, %v216, 0
    %v504 = vsel %vm268, %v217, 0
    %v507 = vsel %vm268, %v218, 0
    %v510 = vsel %vm268, %v219, 0
    %v513 = vsel %vm268, %v220, 0
    %v516 = vsel %vm268, %v221, 0
    %v519 = vsel %vm268, %v222, 0
    %v522 = vsel %vm268, %v223, 0
    %v525 = vsel %vm268, %v224, 0
    %v528 = vsel %vm268, %v225, 0
    %v531 = vsel %vm268, %v226, 0
    %v534 = vsel %vm268, %v227, 0
    %v537 = vsel %vm268, %v228, 0
    %v540 = vsel %vm268, %v229, 0
    %v543 = vsel %vm268, %v230, 0
    %v546 = vsel %vm268, %v231, 0
    %v549 = vsel %vm268, %v232, 0
    %v552 = vsel %vm268, %v233, 0
    %v555 = vsel %vm268, %v234, 0
    %v558 = vsel %vm268, %v235, 0
    %v561 = vsel %vm268, %v236, 0
    %v564 = vsel %vm268, %v237, 0
    %v567 = vsel %vm268, %v238, 0
    %v570 = vsel %vm268, %v239, 0
    %v573 = vsel %vm268, %v240, 0
    %v576 = vsel %vm268, %v241, 0
    %v579 = vsel %vm268, %v242, 0
    %v582 = vsel %vm268, %v243, 0
    %v585 = vsel %vm268, %v244, 0
    %v588 = vsel %vm268, %v245, 0
    %v591 = vsel %vm268, %v246, 0
    %v594 = vsel %vm268, %v247, 0
    %v597 = vsel %vm268, %v248, 0
    %v600 = vsel %vm268, %v249, 0
    %v603 = vsel %vm268, %v250, 0
    %v606 = vsel %vm268, %v251, 0
    %v609 = vsel %vm268, %v252, 0
    %v612 = vsel %vm268, %v253, 0
    %v615 = vsel %vm268, %v254, 0
    %v618 = vsel %vm268, %v255, 0
    %v621 = vsel %vm268, %v256, 0
    %v624 = vsel %vm268, %v257, 0
    %v627 = vsel %vm268, %v258, 0
    %v630 = vsel %vm268, %v259, 0
    %v633 = vsel %vm268, %v260, 0
    %v636 = vsel %vm268, %v261, 0
    %v639 = vsel %vm268, %v262, 0
    %v642 = vsel %vm268, %v263, 0
    %v645 = vsel %vm268, %v264, 0
    %v648 = vsel %vm268, %v265, 0
    %v651 = vsel %vm268, %v266, 0
    %v654 = vsel %vm268, %v267, 0
    %656 = vmatprep.subr.mxu0 0.0
    %v657 = vand.u32 %v273, 4294901760
    %658 = vmatpush1.xpose.msra.mxu0 %v657
    %659 = vmatprep.subr.mxu0 0.0
    %v660 = vand.u32 %v276, 4294901760
    %661 = vmatpush1.xpose.msra.mxu0 %v660
    %662 = vmatprep.subr.mxu0 0.0
    %v663 = vand.u32 %v279, 4294901760
    %664 = vmatpush1.xpose.msra.mxu0 %v663
    %665 = vmatprep.subr.mxu0 0.0
    %v666 = vand.u32 %v282, 4294901760
    %667 = vmatpush1.xpose.msra.mxu0 %v666
    %668 = vmatprep.subr.mxu0 0.0
    %v669 = vand.u32 %v285, 4294901760
    %670 = vmatpush1.xpose.msra.mxu0 %v669
    %671 = vmatprep.subr.mxu0 0.0
    %v672 = vand.u32 %v288, 4294901760
    %673 = vmatpush1.xpose.msra.mxu0 %v672
    %674 = vmatprep.subr.mxu0 0.0
    %v675 = vand.u32 %v291, 4294901760
    %676 = vmatpush1.xpose.msra.mxu0 %v675
    %677 = vmatprep.subr.mxu0 0.0
    %v678 = vand.u32 %v294, 4294901760
    %679 = vmatpush1.xpose.msra.mxu0 %v678
    %680 = vmatprep.subr.mxu0 0.0
    %v681 = vand.u32 %v297, 4294901760
    %682 = vmatpush1.xpose.msra.mxu0 %v681
    %683 = vmatprep.subr.mxu0 0.0
    %v684 = vand.u32 %v300, 4294901760
    %685 = vmatpush1.xpose.msra.mxu0 %v684
    %686 = vmatprep.subr.mxu0 0.0
    %v687 = vand.u32 %v303, 4294901760
    %688 = vmatpush1.xpose.msra.mxu0 %v687
    %689 = vmatprep.subr.mxu0 0.0
    %v690 = vand.u32 %v306, 4294901760
    %691 = vmatpush1.xpose.msra.mxu0 %v690
    %692 = vmatprep.subr.mxu0 0.0
    %v693 = vand.u32 %v309, 4294901760
    %694 = vmatpush1.xpose.msra.mxu0 %v693
    %695 = vmatprep.subr.mxu0 0.0
    %v696 = vand.u32 %v312, 4294901760
    %697 = vmatpush1.xpose.msra.mxu0 %v696
    %698 = vmatprep.subr.mxu0 0.0
    %v699 = vand.u32 %v315, 4294901760
    %700 = vmatpush1.xpose.msra.mxu0 %v699
    %701 = vmatprep.subr.mxu0 0.0
    %v702 = vand.u32 %v318, 4294901760
    %703 = vmatpush1.xpose.msra.mxu0 %v702
    %704 = vmatprep.subr.mxu0 0.0
    %v705 = vand.u32 %v321, 4294901760
    %706 = vmatpush1.xpose.msra.mxu0 %v705
    %707 = vmatprep.subr.mxu0 0.0
    %v708 = vand.u32 %v324, 4294901760
    %709 = vmatpush1.xpose.msra.mxu0 %v708
    %710 = vmatprep.subr.mxu0 0.0
    %v711 = vand.u32 %v327, 4294901760
    %712 = vmatpush1.xpose.msra.mxu0 %v711
    %713 = vmatprep.subr.mxu0 0.0
    %v714 = vand.u32 %v330, 4294901760
    %715 = vmatpush1.xpose.msra.mxu0 %v714
    %716 = vmatprep.subr.mxu0 0.0
    %v717 = vand.u32 %v333, 4294901760
    %718 = vmatpush1.xpose.msra.mxu0 %v717
    %719 = vmatprep.subr.mxu0 0.0
    %v720 = vand.u32 %v336, 4294901760
    %721 = vmatpush1.xpose.msra.mxu0 %v720
    %722 = vmatprep.subr.mxu0 0.0
    %v723 = vand.u32 %v339, 4294901760
    %724 = vmatpush1.xpose.msra.mxu0 %v723
    %725 = vmatprep.subr.mxu0 0.0
    %v726 = vand.u32 %v342, 4294901760
    %727 = vmatpush1.xpose.msra.mxu0 %v726
    %728 = vmatprep.subr.mxu0 0.0
    %v729 = vand.u32 %v345, 4294901760
    %730 = vmatpush1.xpose.msra.mxu0 %v729
    %731 = vmatprep.subr.mxu0 0.0
    %v732 = vand.u32 %v348, 4294901760
    %733 = vmatpush1.xpose.msra.mxu0 %v732
    %734 = vmatprep.subr.mxu0 0.0
    %v735 = vand.u32 %v351, 4294901760
    %736 = vmatpush1.xpose.msra.mxu0 %v735
    %737 = vmatprep.subr.mxu0 0.0
    %v738 = vand.u32 %v354, 4294901760
    %739 = vmatpush1.xpose.msra.mxu0 %v738
    %740 = vmatprep.subr.mxu0 0.0
    %v741 = vand.u32 %v357, 4294901760
    %742 = vmatpush1.xpose.msra.mxu0 %v741
    %743 = vmatprep.subr.mxu0 0.0
    %v744 = vand.u32 %v360, 4294901760
    %745 = vmatpush1.xpose.msra.mxu0 %v744
    %746 = vmatprep.subr.mxu0 0.0
    %v747 = vand.u32 %v363, 4294901760
    %748 = vmatpush1.xpose.msra.mxu0 %v747
    %749 = vmatprep.subr.mxu0 0.0
    %v750 = vand.u32 %v366, 4294901760
    %751 = vmatpush1.xpose.msra.mxu0 %v750
    %752 = vmatprep.mubr.f32.mxu0 0.0
    %v753 = vand.u32 %v270, 4294901760
    %v754 = vsub.f32 %v270, %v753
    %v755 = vand.u32 %v754, 4294901760
    %v756 = vsub.f32 %v754, %v755
    %v757 = vand.u32 %v756, 4294901760
    %758 = vmatmul.mubr.f32.gmra.mrb[0].mxu0 %v757
    %v759 = vpop.f32.mrb[0].mxu0
    %v760 = vadd.f32 0.0, %v759
    %v761 = vpop.f32.mrb[0].mxu0
    %v762 = vadd.f32 0.0, %v761
    %763 = vdwg.mxu0
    %764 = vmatprep.subr.mxu0 0.0
    %v765 = vand.u32 %v273, 4294901760
    %v766 = vsub.f32 %v273, %v765
    %v767 = vand.u32 %v766, 4294901760
    %v768 = vsub.f32 %v766, %v767
    %v769 = vand.u32 %v768, 4294901760
    %770 = vmatpush1.xpose.msra.mxu0 %v769
    %771 = vmatprep.subr.mxu0 0.0
    %v772 = vand.u32 %v276, 4294901760
    %v773 = vsub.f32 %v276, %v772
    %v774 = vand.u32 %v773, 4294901760
    %v775 = vsub.f32 %v773, %v774
    %v776 = vand.u32 %v775, 4294901760
    %777 = vmatpush1.xpose.msra.mxu0 %v776
    %778 = vmatprep.subr.mxu0 0.0
    %v779 = vand.u32 %v279, 4294901760
    %v780 = vsub.f32 %v279, %v779
    %v781 = vand.u32 %v780, 4294901760
    %v782 = vsub.f32 %v780, %v781
    %v783 = vand.u32 %v782, 4294901760
    %784 = vmatpush1.xpose.msra.mxu0 %v783
    %785 = vmatprep.subr.mxu0 0.0
    %v786 = vand.u32 %v282, 4294901760
    %v787 = vsub.f32 %v282, %v786
    %v788 = vand.u32 %v787, 4294901760
    %v789 = vsub.f32 %v787, %v788
    %v790 = vand.u32 %v789, 4294901760
    %791 = vmatpush1.xpose.msra.mxu0 %v790
    %792 = vmatprep.subr.mxu0 0.0
    %v793 = vand.u32 %v285, 4294901760
    %v794 = vsub.f32 %v285, %v793
    %v795 = vand.u32 %v794, 4294901760
    %v796 = vsub.f32 %v794, %v795
    %v797 = vand.u32 %v796, 4294901760
    %798 = vmatpush1.xpose.msra.mxu0 %v797
    %799 = vmatprep.subr.mxu0 0.0
    %v800 = vand.u32 %v288, 4294901760
    %v801 = vsub.f32 %v288, %v800
    %v802 = vand.u32 %v801, 4294901760
    %v803 = vsub.f32 %v801, %v802
    %v804 = vand.u32 %v803, 4294901760
    %805 = vmatpush1.xpose.msra.mxu0 %v804
    %806 = vmatprep.subr.mxu0 0.0
    %v807 = vand.u32 %v291, 4294901760
    %v808 = vsub.f32 %v291, %v807
    %v809 = vand.u32 %v808, 4294901760
    %v810 = vsub.f32 %v808, %v809
    %v811 = vand.u32 %v810, 4294901760
    %812 = vmatpush1.xpose.msra.mxu0 %v811
    %813 = vmatprep.subr.mxu0 0.0
    %v814 = vand.u32 %v294, 4294901760
    %v815 = vsub.f32 %v294, %v814
    %v816 = vand.u32 %v815, 4294901760
    %v817 = vsub.f32 %v815, %v816
    %v818 = vand.u32 %v817, 4294901760
    %819 = vmatpush1.xpose.msra.mxu0 %v818
    %820 = vmatprep.subr.mxu0 0.0
    %v821 = vand.u32 %v297, 4294901760
    %v822 = vsub.f32 %v297, %v821
    %v823 = vand.u32 %v822, 4294901760
    %v824 = vsub.f32 %v822, %v823
    %v825 = vand.u32 %v824, 4294901760
    %826 = vmatpush1.xpose.msra.mxu0 %v825
    %827 = vmatprep.subr.mxu0 0.0
    %v828 = vand.u32 %v300, 4294901760
    %v829 = vsub.f32 %v300, %v828
    %v830 = vand.u32 %v829, 4294901760
    %v831 = vsub.f32 %v829, %v830
    %v832 = vand.u32 %v831, 4294901760
    %833 = vmatpush1.xpose.msra.mxu0 %v832
    %834 = vmatprep.subr.mxu0 0.0
    %v835 = vand.u32 %v303, 4294901760
    %v836 = vsub.f32 %v303, %v835
    %v837 = vand.u32 %v836, 4294901760
    %v838 = vsub.f32 %v836, %v837
    %v839 = vand.u32 %v838, 4294901760
    %840 = vmatpush1.xpose.msra.mxu0 %v839
    %841 = vmatprep.subr.mxu0 0.0
    %v842 = vand.u32 %v306, 4294901760
    %v843 = vsub.f32 %v306, %v842
    %v844 = vand.u32 %v843, 4294901760
    %v845 = vsub.f32 %v843, %v844
    %v846 = vand.u32 %v845, 4294901760
    %847 = vmatpush1.xpose.msra.mxu0 %v846
    %848 = vmatprep.subr.mxu0 0.0
    %v849 = vand.u32 %v309, 4294901760
    %v850 = vsub.f32 %v309, %v849
    %v851 = vand.u32 %v850, 4294901760
    %v852 = vsub.f32 %v850, %v851
    %v853 = vand.u32 %v852, 4294901760
    %854 = vmatpush1.xpose.msra.mxu0 %v853
    %855 = vmatprep.subr.mxu0 0.0
    %v856 = vand.u32 %v312, 4294901760
    %v857 = vsub.f32 %v312, %v856
    %v858 = vand.u32 %v857, 4294901760
    %v859 = vsub.f32 %v857, %v858
    %v860 = vand.u32 %v859, 4294901760
    %861 = vmatpush1.xpose.msra.mxu0 %v860
    %862 = vmatprep.subr.mxu0 0.0
    %v863 = vand.u32 %v315, 4294901760
    %v864 = vsub.f32 %v315, %v863
    %v865 = vand.u32 %v864, 4294901760
    %v866 = vsub.f32 %v864, %v865
    %v867 = vand.u32 %v866, 4294901760
    %868 = vmatpush1.xpose.msra.mxu0 %v867
    %869 = vmatprep.subr.mxu0 0.0
    %v870 = vand.u32 %v318, 4294901760
    %v871 = vsub.f32 %v318, %v870
    %v872 = vand.u32 %v871, 4294901760
    %v873 = vsub.f32 %v871, %v872
    %v874 = vand.u32 %v873, 4294901760
    %875 = vmatpush1.xpose.msra.mxu0 %v874
    %876 = vmatprep.subr.mxu0 0.0
    %v877 = vand.u32 %v321, 4294901760
    %v878 = vsub.f32 %v321, %v877
    %v879 = vand.u32 %v878, 4294901760
    %v880 = vsub.f32 %v878, %v879
    %v881 = vand.u32 %v880, 4294901760
    %882 = vmatpush1.xpose.msra.mxu0 %v881
    %883 = vmatprep.subr.mxu0 0.0
    %v884 = vand.u32 %v324, 4294901760
    %v885 = vsub.f32 %v324, %v884
    %v886 = vand.u32 %v885, 4294901760
    %v887 = vsub.f32 %v885, %v886
    %v888 = vand.u32 %v887, 4294901760
    %889 = vmatpush1.xpose.msra.mxu0 %v888
    %890 = vmatprep.subr.mxu0 0.0
    %v891 = vand.u32 %v327, 4294901760
    %v892 = vsub.f32 %v327, %v891
    %v893 = vand.u32 %v892, 4294901760
    %v894 = vsub.f32 %v892, %v893
    %v895 = vand.u32 %v894, 4294901760
    %896 = vmatpush1.xpose.msra.mxu0 %v895
    %897 = vmatprep.subr.mxu0 0.0
    %v898 = vand.u32 %v330, 4294901760
    %v899 = vsub.f32 %v330, %v898
    %v900 = vand.u32 %v899, 4294901760
    %v901 = vsub.f32 %v899, %v900
    %v902 = vand.u32 %v901, 4294901760
    %903 = vmatpush1.xpose.msra.mxu0 %v902
    %904 = vmatprep.subr.mxu0 0.0
    %v905 = vand.u32 %v333, 4294901760
    %v906 = vsub.f32 %v333, %v905
    %v907 = vand.u32 %v906, 4294901760
    %v908 = vsub.f32 %v906, %v907
    %v909 = vand.u32 %v908, 4294901760
    %910 = vmatpush1.xpose.msra.mxu0 %v909
    %911 = vmatprep.subr.mxu0 0.0
    %v912 = vand.u32 %v336, 4294901760
    %v913 = vsub.f32 %v336, %v912
    %v914 = vand.u32 %v913, 4294901760
    %v915 = vsub.f32 %v913, %v914
    %v916 = vand.u32 %v915, 4294901760
    %917 = vmatpush1.xpose.msra.mxu0 %v916
    %918 = vmatprep.subr.mxu0 0.0
    %v919 = vand.u32 %v339, 4294901760
    %v920 = vsub.f32 %v339, %v919
    %v921 = vand.u32 %v920, 4294901760
    %v922 = vsub.f32 %v920, %v921
    %v923 = vand.u32 %v922, 4294901760
    %924 = vmatpush1.xpose.msra.mxu0 %v923
    %925 = vmatprep.subr.mxu0 0.0
    %v926 = vand.u32 %v342, 4294901760
    %v927 = vsub.f32 %v342, %v926
    %v928 = vand.u32 %v927, 4294901760
    %v929 = vsub.f32 %v927, %v928
    %v930 = vand.u32 %v929, 4294901760
    %931 = vmatpush1.xpose.msra.mxu0 %v930
    %932 = vmatprep.subr.mxu0 0.0
    %v933 = vand.u32 %v345, 4294901760
    %v934 = vsub.f32 %v345, %v933
    %v935 = vand.u32 %v934, 4294901760
    %v936 = vsub.f32 %v934, %v935
    %v937 = vand.u32 %v936, 4294901760
    %938 = vmatpush1.xpose.msra.mxu0 %v937
    %939 = vmatprep.subr.mxu0 0.0
    %v940 = vand.u32 %v348, 4294901760
    %v941 = vsub.f32 %v348, %v940
    %v942 = vand.u32 %v941, 4294901760
    %v943 = vsub.f32 %v941, %v942
    %v944 = vand.u32 %v943, 4294901760
    %945 = vmatpush1.xpose.msra.mxu0 %v944
    %946 = vmatprep.subr.mxu0 0.0
    %v947 = vand.u32 %v351, 4294901760
    %v948 = vsub.f32 %v351, %v947
    %v949 = vand.u32 %v948, 4294901760
    %v950 = vsub.f32 %v948, %v949
    %v951 = vand.u32 %v950, 4294901760
    %952 = vmatpush1.xpose.msra.mxu0 %v951
    %953 = vmatprep.subr.mxu0 0.0
    %v954 = vand.u32 %v354, 4294901760
    %v955 = vsub.f32 %v354, %v954
    %v956 = vand.u32 %v955, 4294901760
    %v957 = vsub.f32 %v955, %v956
    %v958 = vand.u32 %v957, 4294901760
    %959 = vmatpush1.xpose.msra.mxu0 %v958
    %960 = vmatprep.subr.mxu0 0.0
    %v961 = vand.u32 %v357, 4294901760
    %v962 = vsub.f32 %v357, %v961
    %v963 = vand.u32 %v962, 4294901760
    %v964 = vsub.f32 %v962, %v963
    %v965 = vand.u32 %v964, 4294901760
    %966 = vmatpush1.xpose.msra.mxu0 %v965
    %967 = vmatprep.subr.mxu0 0.0
    %v968 = vand.u32 %v360, 4294901760
    %v969 = vsub.f32 %v360, %v968
    %v970 = vand.u32 %v969, 4294901760
    %v971 = vsub.f32 %v969, %v970
    %v972 = vand.u32 %v971, 4294901760
    %973 = vmatpush1.xpose.msra.mxu0 %v972
    %974 = vmatprep.subr.mxu0 0.0
    %v975 = vand.u32 %v363, 4294901760
    %v976 = vsub.f32 %v363, %v975
    %v977 = vand.u32 %v976, 4294901760
    %v978 = vsub.f32 %v976, %v977
    %v979 = vand.u32 %v978, 4294901760
    %980 = vmatpush1.xpose.msra.mxu0 %v979
    %981 = vmatprep.subr.mxu0 0.0
    %v982 = vand.u32 %v366, 4294901760
    %v983 = vsub.f32 %v366, %v982
    %v984 = vand.u32 %v983, 4294901760
    %v985 = vsub.f32 %v983, %v984
    %v986 = vand.u32 %v985, 4294901760
    %987 = vmatpush1.xpose.msra.mxu0 %v986
    %988 = vmatprep.mubr.f32.mxu0 0.0
    %v989 = vand.u32 %v270, 4294901760
    %990 = vmatmul.mubr.f32.gmra.mrb[0].mxu0 %v989
    %v991 = vpop.f32.mrb[0].mxu0
    %v992 = vadd.f32 %v760, %v991
    %v993 = vpop.f32.mrb[0].mxu0
    %v994 = vadd.f32 %v762, %v993
    %995 = vdwg.mxu0
    %996 = vmatprep.subr.mxu0 0.0
    %v997 = vand.u32 %v273, 4294901760
    %v998 = vsub.f32 %v273, %v997
    %999 = vmatpush1.xpose.msra.mxu0 %v998
    %1000 = vmatprep.subr.mxu0 0.0
    %v1001 = vand.u32 %v276, 4294901760
    %v1002 = vsub.f32 %v276, %v1001
    %1003 = vmatpush1.xpose.msra.mxu0 %v1002
    %1004 = vmatprep.subr.mxu0 0.0
    %v1005 = vand.u32 %v279, 4294901760
    %v1006 = vsub.f32 %v279, %v1005
    %1007 = vmatpush1.xpose.msra.mxu0 %v1006
    %1008 = vmatprep.subr.mxu0 0.0
    %v1009 = vand.u32 %v282, 4294901760
    %v1010 = vsub.f32 %v282, %v1009
    %1011 = vmatpush1.xpose.msra.mxu0 %v1010
    %1012 = vmatprep.subr.mxu0 0.0
    %v1013 = vand.u32 %v285, 4294901760
    %v1014 = vsub.f32 %v285, %v1013
    %1015 = vmatpush1.xpose.msra.mxu0 %v1014
    %1016 = vmatprep.subr.mxu0 0.0
    %v1017 = vand.u32 %v288, 4294901760
    %v1018 = vsub.f32 %v288, %v1017
    %1019 = vmatpush1.xpose.msra.mxu0 %v1018
    %1020 = vmatprep.subr.mxu0 0.0
    %v1021 = vand.u32 %v291, 4294901760
    %v1022 = vsub.f32 %v291, %v1021
    %1023 = vmatpush1.xpose.msra.mxu0 %v1022
    %1024 = vmatprep.subr.mxu0 0.0
    %v1025 = vand.u32 %v294, 4294901760
    %v1026 = vsub.f32 %v294, %v1025
    %1027 = vmatpush1.xpose.msra.mxu0 %v1026
    %1028 = vmatprep.subr.mxu0 0.0
    %v1029 = vand.u32 %v297, 4294901760
    %v1030 = vsub.f32 %v297, %v1029
    %1031 = vmatpush1.xpose.msra.mxu0 %v1030
    %1032 = vmatprep.subr.mxu0 0.0
    %v1033 = vand.u32 %v300, 4294901760
    %v1034 = vsub.f32 %v300, %v1033
    %1035 = vmatpush1.xpose.msra.mxu0 %v1034
    %1036 = vmatprep.subr.mxu0 0.0
    %v1037 = vand.u32 %v303, 4294901760
    %v1038 = vsub.f32 %v303, %v1037
    %1039 = vmatpush1.xpose.msra.mxu0 %v1038
    %1040 = vmatprep.subr.mxu0 0.0
    %v1041 = vand.u32 %v306, 4294901760
    %v1042 = vsub.f32 %v306, %v1041
    %1043 = vmatpush1.xpose.msra.mxu0 %v1042
    %1044 = vmatprep.subr.mxu0 0.0
    %v1045 = vand.u32 %v309, 4294901760
    %v1046 = vsub.f32 %v309, %v1045
    %1047 = vmatpush1.xpose.msra.mxu0 %v1046
    %1048 = vmatprep.subr.mxu0 0.0
    %v1049 = vand.u32 %v312, 4294901760
    %v1050 = vsub.f32 %v312, %v1049
    %1051 = vmatpush1.xpose.msra.mxu0 %v1050
    %1052 = vmatprep.subr.mxu0 0.0
    %v1053 = vand.u32 %v315, 4294901760
    %v1054 = vsub.f32 %v315, %v1053
    %1055 = vmatpush1.xpose.msra.mxu0 %v1054
    %1056 = vmatprep.subr.mxu0 0.0
    %v1057 = vand.u32 %v318, 4294901760
    %v1058 = vsub.f32 %v318, %v1057
    %1059 = vmatpush1.xpose.msra.mxu0 %v1058
    %1060 = vmatprep.subr.mxu0 0.0
    %v1061 = vand.u32 %v321, 4294901760
    %v1062 = vsub.f32 %v321, %v1061
    %1063 = vmatpush1.xpose.msra.mxu0 %v1062
    %1064 = vmatprep.subr.mxu0 0.0
    %v1065 = vand.u32 %v324, 4294901760
    %v1066 = vsub.f32 %v324, %v1065
    %1067 = vmatpush1.xpose.msra.mxu0 %v1066
    %1068 = vmatprep.subr.mxu0 0.0
    %v1069 = vand.u32 %v327, 4294901760
    %v1070 = vsub.f32 %v327, %v1069
    %1071 = vmatpush1.xpose.msra.mxu0 %v1070
    %1072 = vmatprep.subr.mxu0 0.0
    %v1073 = vand.u32 %v330, 4294901760
    %v1074 = vsub.f32 %v330, %v1073
    %1075 = vmatpush1.xpose.msra.mxu0 %v1074
    %1076 = vmatprep.subr.mxu0 0.0
    %v1077 = vand.u32 %v333, 4294901760
    %v1078 = vsub.f32 %v333, %v1077
    %1079 = vmatpush1.xpose.msra.mxu0 %v1078
    %1080 = vmatprep.subr.mxu0 0.0
    %v1081 = vand.u32 %v336, 4294901760
    %v1082 = vsub.f32 %v336, %v1081
    %1083 = vmatpush1.xpose.msra.mxu0 %v1082
    %1084 = vmatprep.subr.mxu0 0.0
    %v1085 = vand.u32 %v339, 4294901760
    %v1086 = vsub.f32 %v339, %v1085
    %1087 = vmatpush1.xpose.msra.mxu0 %v1086
    %1088 = vmatprep.subr.mxu0 0.0
    %v1089 = vand.u32 %v342, 4294901760
    %v1090 = vsub.f32 %v342, %v1089
    %1091 = vmatpush1.xpose.msra.mxu0 %v1090
    %1092 = vmatprep.subr.mxu0 0.0
    %v1093 = vand.u32 %v345, 4294901760
    %v1094 = vsub.f32 %v345, %v1093
    %1095 = vmatpush1.xpose.msra.mxu0 %v1094
    %1096 = vmatprep.subr.mxu0 0.0
    %v1097 = vand.u32 %v348, 4294901760
    %v1098 = vsub.f32 %v348, %v1097
    %1099 = vmatpush1.xpose.msra.mxu0 %v1098
    %1100 = vmatprep.subr.mxu0 0.0
    %v1101 = vand.u32 %v351, 4294901760
    %v1102 = vsub.f32 %v351, %v1101
    %1103 = vmatpush1.xpose.msra.mxu0 %v1102
    %1104 = vmatprep.subr.mxu0 0.0
    %v1105 = vand.u32 %v354, 4294901760
    %v1106 = vsub.f32 %v354, %v1105
    %1107 = vmatpush1.xpose.msra.mxu0 %v1106
    %1108 = vmatprep.subr.mxu0 0.0
    %v1109 = vand.u32 %v357, 4294901760
    %v1110 = vsub.f32 %v357, %v1109
    %1111 = vmatpush1.xpose.msra.mxu0 %v1110
    %1112 = vmatprep.subr.mxu0 0.0
    %v1113 = vand.u32 %v360, 4294901760
    %v1114 = vsub.f32 %v360, %v1113
    %1115 = vmatpush1.xpose.msra.mxu0 %v1114
    %1116 = vmatprep.subr.mxu0 0.0
    %v1117 = vand.u32 %v363, 4294901760
    %v1118 = vsub.f32 %v363, %v1117
    %1119 = vmatpush1.xpose.msra.mxu0 %v1118
    %1120 = vmatprep.subr.mxu0 0.0
    %v1121 = vand.u32 %v366, 4294901760
    %v1122 = vsub.f32 %v366, %v1121
    %1123 = vmatpush1.xpose.msra.mxu0 %v1122
    %1124 = vmatprep.mubr.f32.mxu0 0.0
    %v1125 = vand.u32 %v270, 4294901760
    %v1126 = vsub.f32 %v270, %v1125
    %1127 = vmatmul.mubr.f32.gmra.mrb[0].mxu0 %v1126
    %v1128 = vpop.f32.mrb[0].mxu0
    %v1129 = vadd.f32 %v992, %v1128
    %v1130 = vpop.f32.mrb[0].mxu0
    %v1131 = vadd.f32 %v994, %v1130
    %1132 = vdwg.mxu0
    %1133 = vmatprep.subr.mxu0 0.0
    %v1134 = vand.u32 %v273, 4294901760
    %1135 = vmatpush1.xpose.msra.mxu0 %v1134
    %1136 = vmatprep.subr.mxu0 0.0
    %v1137 = vand.u32 %v276, 4294901760
    %1138 = vmatpush1.xpose.msra.mxu0 %v1137
    %1139 = vmatprep.subr.mxu0 0.0
    %v1140 = vand.u32 %v279, 4294901760
    %1141 = vmatpush1.xpose.msra.mxu0 %v1140
    %1142 = vmatprep.subr.mxu0 0.0
    %v1143 = vand.u32 %v282, 4294901760
    %1144 = vmatpush1.xpose.msra.mxu0 %v1143
    %1145 = vmatprep.subr.mxu0 0.0
    %v1146 = vand.u32 %v285, 4294901760
    %1147 = vmatpush1.xpose.msra.mxu0 %v1146
    %1148 = vmatprep.subr.mxu0 0.0
    %v1149 = vand.u32 %v288, 4294901760
    %1150 = vmatpush1.xpose.msra.mxu0 %v1149
    %1151 = vmatprep.subr.mxu0 0.0
    %v1152 = vand.u32 %v291, 4294901760
    %1153 = vmatpush1.xpose.msra.mxu0 %v1152
    %1154 = vmatprep.subr.mxu0 0.0
    %v1155 = vand.u32 %v294, 4294901760
    %1156 = vmatpush1.xpose.msra.mxu0 %v1155
    %1157 = vmatprep.subr.mxu0 0.0
    %v1158 = vand.u32 %v297, 4294901760
    %1159 = vmatpush1.xpose.msra.mxu0 %v1158
    %1160 = vmatprep.subr.mxu0 0.0
    %v1161 = vand.u32 %v300, 4294901760
    %1162 = vmatpush1.xpose.msra.mxu0 %v1161
    %1163 = vmatprep.subr.mxu0 0.0
    %v1164 = vand.u32 %v303, 4294901760
    %1165 = vmatpush1.xpose.msra.mxu0 %v1164
    %1166 = vmatprep.subr.mxu0 0.0
    %v1167 = vand.u32 %v306, 4294901760
    %1168 = vmatpush1.xpose.msra.mxu0 %v1167
    %1169 = vmatprep.subr.mxu0 0.0
    %v1170 = vand.u32 %v309, 4294901760
    %1171 = vmatpush1.xpose.msra.mxu0 %v1170
    %1172 = vmatprep.subr.mxu0 0.0
    %v1173 = vand.u32 %v312, 4294901760
    %1174 = vmatpush1.xpose.msra.mxu0 %v1173
    %1175 = vmatprep.subr.mxu0 0.0
    %v1176 = vand.u32 %v315, 4294901760
    %1177 = vmatpush1.xpose.msra.mxu0 %v1176
    %1178 = vmatprep.subr.mxu0 0.0
    %v1179 = vand.u32 %v318, 4294901760
    %1180 = vmatpush1.xpose.msra.mxu0 %v1179
    %1181 = vmatprep.subr.mxu0 0.0
    %v1182 = vand.u32 %v321, 4294901760
    %1183 = vmatpush1.xpose.msra.mxu0 %v1182
    %1184 = vmatprep.subr.mxu0 0.0
    %v1185 = vand.u32 %v324, 4294901760
    %1186 = vmatpush1.xpose.msra.mxu0 %v1185
    %1187 = vmatprep.subr.mxu0 0.0
    %v1188 = vand.u32 %v327, 4294901760
    %1189 = vmatpush1.xpose.msra.mxu0 %v1188
    %1190 = vmatprep.subr.mxu0 0.0
    %v1191 = vand.u32 %v330, 4294901760
    %1192 = vmatpush1.xpose.msra.mxu0 %v1191
    %1193 = vmatprep.subr.mxu0 0.0
    %v1194 = vand.u32 %v333, 4294901760
    %1195 = vmatpush1.xpose.msra.mxu0 %v1194
    %1196 = vmatprep.subr.mxu0 0.0
    %v1197 = vand.u32 %v336, 4294901760
    %1198 = vmatpush1.xpose.msra.mxu0 %v1197
    %1199 = vmatprep.subr.mxu0 0.0
    %v1200 = vand.u32 %v339, 4294901760
    %1201 = vmatpush1.xpose.msra.mxu0 %v1200
    %1202 = vmatprep.subr.mxu0 0.0
    %v1203 = vand.u32 %v342, 4294901760
    %1204 = vmatpush1.xpose.msra.mxu0 %v1203
    %1205 = vmatprep.subr.mxu0 0.0
    %v1206 = vand.u32 %v345, 4294901760
    %1207 = vmatpush1.xpose.msra.mxu0 %v1206
    %1208 = vmatprep.subr.mxu0 0.0
    %v1209 = vand.u32 %v348, 4294901760
    %1210 = vmatpush1.xpose.msra.mxu0 %v1209
    %1211 = vmatprep.subr.mxu0 0.0
    %v1212 = vand.u32 %v351, 4294901760
    %1213 = vmatpush1.xpose.msra.mxu0 %v1212
    %1214 = vmatprep.subr.mxu0 0.0
    %v1215 = vand.u32 %v354, 4294901760
    %1216 = vmatpush1.xpose.msra.mxu0 %v1215
    %1217 = vmatprep.subr.mxu0 0.0
    %v1218 = vand.u32 %v357, 4294901760
    %1219 = vmatpush1.xpose.msra.mxu0 %v1218
    %1220 = vmatprep.subr.mxu0 0.0
    %v1221 = vand.u32 %v360, 4294901760
    %1222 = vmatpush1.xpose.msra.mxu0 %v1221
    %1223 = vmatprep.subr.mxu0 0.0
    %v1224 = vand.u32 %v363, 4294901760
    %1225 = vmatpush1.xpose.msra.mxu0 %v1224
    %1226 = vmatprep.subr.mxu0 0.0
    %v1227 = vand.u32 %v366, 4294901760
    %1228 = vmatpush1.xpose.msra.mxu0 %v1227
    %1229 = vmatprep.mubr.f32.mxu0 0.0
    %v1230 = vand.u32 %v270, 4294901760
    %v1231 = vsub.f32 %v270, %v1230
    %v1232 = vand.u32 %v1231, 4294901760
    %1233 = vmatmul.mubr.f32.gmra.mrb[0].mxu0 %v1232
    %v1234 = vpop.f32.mrb[0].mxu0
    %v1235 = vadd.f32 %v1129, %v1234
    %v1236 = vpop.f32.mrb[0].mxu0
    %v1237 = vadd.f32 %v1131, %v1236
    %1238 = vdwg.mxu0
    %1239 = vmatprep.subr.mxu0 0.0
    %v1240 = vand.u32 %v273, 4294901760
    %v1241 = vsub.f32 %v273, %v1240
    %v1242 = vand.u32 %v1241, 4294901760
    %1243 = vmatpush1.xpose.msra.mxu0 %v1242
    %1244 = vmatprep.subr.mxu0 0.0
    %v1245 = vand.u32 %v276, 4294901760
    %v1246 = vsub.f32 %v276, %v1245
    %v1247 = vand.u32 %v1246, 4294901760
    %1248 = vmatpush1.xpose.msra.mxu0 %v1247
    %1249 = vmatprep.subr.mxu0 0.0
    %v1250 = vand.u32 %v279, 4294901760
    %v1251 = vsub.f32 %v279, %v1250
    %v1252 = vand.u32 %v1251, 4294901760
    %1253 = vmatpush1.xpose.msra.mxu0 %v1252
    %1254 = vmatprep.subr.mxu0 0.0
    %v1255 = vand.u32 %v282, 4294901760
    %v1256 = vsub.f32 %v282, %v1255
    %v1257 = vand.u32 %v1256, 4294901760
    %1258 = vmatpush1.xpose.msra.mxu0 %v1257
    %1259 = vmatprep.subr.mxu0 0.0
    %v1260 = vand.u32 %v285, 4294901760
    %v1261 = vsub.f32 %v285, %v1260
    %v1262 = vand.u32 %v1261, 4294901760
    %1263 = vmatpush1.xpose.msra.mxu0 %v1262
    %1264 = vmatprep.subr.mxu0 0.0
    %v1265 = vand.u32 %v288, 4294901760
    %v1266 = vsub.f32 %v288, %v1265
    %v1267 = vand.u32 %v1266, 4294901760
    %1268 = vmatpush1.xpose.msra.mxu0 %v1267
    %1269 = vmatprep.subr.mxu0 0.0
    %v1270 = vand.u32 %v291, 4294901760
    %v1271 = vsub.f32 %v291, %v1270
    %v1272 = vand.u32 %v1271, 4294901760
    %1273 = vmatpush1.xpose.msra.mxu0 %v1272
    %1274 = vmatprep.subr.mxu0 0.0
    %v1275 = vand.u32 %v294, 4294901760
    %v1276 = vsub.f32 %v294, %v1275
    %v1277 = vand.u32 %v1276, 4294901760
    %1278 = vmatpush1.xpose.msra.mxu0 %v1277
    %1279 = vmatprep.subr.mxu0 0.0
    %v1280 = vand.u32 %v297, 4294901760
    %v1281 = vsub.f32 %v297, %v1280
    %v1282 = vand.u32 %v1281, 4294901760
    %1283 = vmatpush1.xpose.msra.mxu0 %v1282
    %1284 = vmatprep.subr.mxu0 0.0
    %v1285 = vand.u32 %v300, 4294901760
    %v1286 = vsub.f32 %v300, %v1285
    %v1287 = vand.u32 %v1286, 4294901760
    %1288 = vmatpush1.xpose.msra.mxu0 %v1287
    %1289 = vmatprep.subr.mxu0 0.0
    %v1290 = vand.u32 %v303, 4294901760
    %v1291 = vsub.f32 %v303, %v1290
    %v1292 = vand.u32 %v1291, 4294901760
    %1293 = vmatpush1.xpose.msra.mxu0 %v1292
    %1294 = vmatprep.subr.mxu0 0.0
    %v1295 = vand.u32 %v306, 4294901760
    %v1296 = vsub.f32 %v306, %v1295
    %v1297 = vand.u32 %v1296, 4294901760
    %1298 = vmatpush1.xpose.msra.mxu0 %v1297
    %1299 = vmatprep.subr.mxu0 0.0
    %v1300 = vand.u32 %v309, 4294901760
    %v1301 = vsub.f32 %v309, %v1300
    %v1302 = vand.u32 %v1301, 4294901760
    %1303 = vmatpush1.xpose.msra.mxu0 %v1302
    %1304 = vmatprep.subr.mxu0 0.0
    %v1305 = vand.u32 %v312, 4294901760
    %v1306 = vsub.f32 %v312, %v1305
    %v1307 = vand.u32 %v1306, 4294901760
    %1308 = vmatpush1.xpose.msra.mxu0 %v1307
    %1309 = vmatprep.subr.mxu0 0.0
    %v1310 = vand.u32 %v315, 4294901760
    %v1311 = vsub.f32 %v315, %v1310
    %v1312 = vand.u32 %v1311, 4294901760
    %1313 = vmatpush1.xpose.msra.mxu0 %v1312
    %1314 = vmatprep.subr.mxu0 0.0
    %v1315 = vand.u32 %v318, 4294901760
    %v1316 = vsub.f32 %v318, %v1315
    %v1317 = vand.u32 %v1316, 4294901760
    %1318 = vmatpush1.xpose.msra.mxu0 %v1317
    %1319 = vmatprep.subr.mxu0 0.0
    %v1320 = vand.u32 %v321, 4294901760
    %v1321 = vsub.f32 %v321, %v1320
    %v1322 = vand.u32 %v1321, 4294901760
    %1323 = vmatpush1.xpose.msra.mxu0 %v1322
    %1324 = vmatprep.subr.mxu0 0.0
    %v1325 = vand.u32 %v324, 4294901760
    %v1326 = vsub.f32 %v324, %v1325
    %v1327 = vand.u32 %v1326, 4294901760
    %1328 = vmatpush1.xpose.msra.mxu0 %v1327
    %1329 = vmatprep.subr.mxu0 0.0
    %v1330 = vand.u32 %v327, 4294901760
    %v1331 = vsub.f32 %v327, %v1330
    %v1332 = vand.u32 %v1331, 4294901760
    %1333 = vmatpush1.xpose.msra.mxu0 %v1332
    %1334 = vmatprep.subr.mxu0 0.0
    %v1335 = vand.u32 %v330, 4294901760
    %v1336 = vsub.f32 %v330, %v1335
    %v1337 = vand.u32 %v1336, 4294901760
    %1338 = vmatpush1.xpose.msra.mxu0 %v1337
    %1339 = vmatprep.subr.mxu0 0.0
    %v1340 = vand.u32 %v333, 4294901760
    %v1341 = vsub.f32 %v333, %v1340
    %v1342 = vand.u32 %v1341, 4294901760
    %1343 = vmatpush1.xpose.msra.mxu0 %v1342
    %1344 = vmatprep.subr.mxu0 0.0
    %v1345 = vand.u32 %v336, 4294901760
    %v1346 = vsub.f32 %v336, %v1345
    %v1347 = vand.u32 %v1346, 4294901760
    %1348 = vmatpush1.xpose.msra.mxu0 %v1347
    %1349 = vmatprep.subr.mxu0 0.0
    %v1350 = vand.u32 %v339, 4294901760
    %v1351 = vsub.f32 %v339, %v1350
    %v1352 = vand.u32 %v1351, 4294901760
    %1353 = vmatpush1.xpose.msra.mxu0 %v1352
    %1354 = vmatprep.subr.mxu0 0.0
    %v1355 = vand.u32 %v342, 4294901760
    %v1356 = vsub.f32 %v342, %v1355
    %v1357 = vand.u32 %v1356, 4294901760
    %1358 = vmatpush1.xpose.msra.mxu0 %v1357
    %1359 = vmatprep.subr.mxu0 0.0
    %v1360 = vand.u32 %v345, 4294901760
    %v1361 = vsub.f32 %v345, %v1360
    %v1362 = vand.u32 %v1361, 4294901760
    %1363 = vmatpush1.xpose.msra.mxu0 %v1362
    %1364 = vmatprep.subr.mxu0 0.0
    %v1365 = vand.u32 %v348, 4294901760
    %v1366 = vsub.f32 %v348, %v1365
    %v1367 = vand.u32 %v1366, 4294901760
    %1368 = vmatpush1.xpose.msra.mxu0 %v1367
    %1369 = vmatprep.subr.mxu0 0.0
    %v1370 = vand.u32 %v351, 4294901760
    %v1371 = vsub.f32 %v351, %v1370
    %v1372 = vand.u32 %v1371, 4294901760
    %1373 = vmatpush1.xpose.msra.mxu0 %v1372
    %1374 = vmatprep.subr.mxu0 0.0
    %v1375 = vand.u32 %v354, 4294901760
    %v1376 = vsub.f32 %v354, %v1375
    %v1377 = vand.u32 %v1376, 4294901760
    %1378 = vmatpush1.xpose.msra.mxu0 %v1377
    %1379 = vmatprep.subr.mxu0 0.0
    %v1380 = vand.u32 %v357, 4294901760
    %v1381 = vsub.f32 %v357, %v1380
    %v1382 = vand.u32 %v1381, 4294901760
    %1383 = vmatpush1.xpose.msra.mxu0 %v1382
    %1384 = vmatprep.subr.mxu0 0.0
    %v1385 = vand.u32 %v360, 4294901760
    %v1386 = vsub.f32 %v360, %v1385
    %v1387 = vand.u32 %v1386, 4294901760
    %1388 = vmatpush1.xpose.msra.mxu0 %v1387
    %1389 = vmatprep.subr.mxu0 0.0
    %v1390 = vand.u32 %v363, 4294901760
    %v1391 = vsub.f32 %v363, %v1390
    %v1392 = vand.u32 %v1391, 4294901760
    %1393 = vmatpush1.xpose.msra.mxu0 %v1392
    %1394 = vmatprep.subr.mxu0 0.0
    %v1395 = vand.u32 %v366, 4294901760
    %v1396 = vsub.f32 %v366, %v1395
    %v1397 = vand.u32 %v1396, 4294901760
    %1398 = vmatpush1.xpose.msra.mxu0 %v1397
    %1399 = vmatprep.mubr.f32.mxu0 0.0
    %v1400 = vand.u32 %v270, 4294901760
    %1401 = vmatmul.mubr.f32.gmra.mrb[0].mxu0 %v1400
    %v1402 = vpop.f32.mrb[0].mxu0
    %v1403 = vadd.f32 %v1235, %v1402
    %v1404 = vpop.f32.mrb[0].mxu0
    %v1405 = vadd.f32 %v1237, %v1404
    %1406 = vdwg.mxu0
    %1407 = vmatprep.subr.mxu0 0.0
    %v1408 = vand.u32 %v273, 4294901760
    %1409 = vmatpush1.xpose.msra.mxu0 %v1408
    %1410 = vmatprep.subr.mxu0 0.0
    %v1411 = vand.u32 %v276, 4294901760
    %1412 = vmatpush1.xpose.msra.mxu0 %v1411
    %1413 = vmatprep.subr.mxu0 0.0
    %v1414 = vand.u32 %v279, 4294901760
    %1415 = vmatpush1.xpose.msra.mxu0 %v1414
    %1416 = vmatprep.subr.mxu0 0.0
    %v1417 = vand.u32 %v282, 4294901760
    %1418 = vmatpush1.xpose.msra.mxu0 %v1417
    %1419 = vmatprep.subr.mxu0 0.0
    %v1420 = vand.u32 %v285, 4294901760
    %1421 = vmatpush1.xpose.msra.mxu0 %v1420
    %1422 = vmatprep.subr.mxu0 0.0
    %v1423 = vand.u32 %v288, 4294901760
    %1424 = vmatpush1.xpose.msra.mxu0 %v1423
    %1425 = vmatprep.subr.mxu0 0.0
    %v1426 = vand.u32 %v291, 4294901760
    %1427 = vmatpush1.xpose.msra.mxu0 %v1426
    %1428 = vmatprep.subr.mxu0 0.0
    %v1429 = vand.u32 %v294, 4294901760
    %1430 = vmatpush1.xpose.msra.mxu0 %v1429
    %1431 = vmatprep.subr.mxu0 0.0
    %v1432 = vand.u32 %v297, 4294901760
    %1433 = vmatpush1.xpose.msra.mxu0 %v1432
    %1434 = vmatprep.subr.mxu0 0.0
    %v1435 = vand.u32 %v300, 4294901760
    %1436 = vmatpush1.xpose.msra.mxu0 %v1435
    %1437 = vmatprep.subr.mxu0 0.0
    %v1438 = vand.u32 %v303, 4294901760
    %1439 = vmatpush1.xpose.msra.mxu0 %v1438
    %1440 = vmatprep.subr.mxu0 0.0
    %v1441 = vand.u32 %v306, 4294901760
    %1442 = vmatpush1.xpose.msra.mxu0 %v1441
    %1443 = vmatprep.subr.mxu0 0.0
    %v1444 = vand.u32 %v309, 4294901760
    %1445 = vmatpush1.xpose.msra.mxu0 %v1444
    %1446 = vmatprep.subr.mxu0 0.0
    %v1447 = vand.u32 %v312, 4294901760
    %1448 = vmatpush1.xpose.msra.mxu0 %v1447
    %1449 = vmatprep.subr.mxu0 0.0
    %v1450 = vand.u32 %v315, 4294901760
    %1451 = vmatpush1.xpose.msra.mxu0 %v1450
    %1452 = vmatprep.subr.mxu0 0.0
    %v1453 = vand.u32 %v318, 4294901760
    %1454 = vmatpush1.xpose.msra.mxu0 %v1453
    %1455 = vmatprep.subr.mxu0 0.0
    %v1456 = vand.u32 %v321, 4294901760
    %1457 = vmatpush1.xpose.msra.mxu0 %v1456
    %1458 = vmatprep.subr.mxu0 0.0
    %v1459 = vand.u32 %v324, 4294901760
    %1460 = vmatpush1.xpose.msra.mxu0 %v1459
    %1461 = vmatprep.subr.mxu0 0.0
    %v1462 = vand.u32 %v327, 4294901760
    %1463 = vmatpush1.xpose.msra.mxu0 %v1462
    %1464 = vmatprep.subr.mxu0 0.0
    %v1465 = vand.u32 %v330, 4294901760
    %1466 = vmatpush1.xpose.msra.mxu0 %v1465
    %1467 = vmatprep.subr.mxu0 0.0
    %v1468 = vand.u32 %v333, 4294901760
    %1469 = vmatpush1.xpose.msra.mxu0 %v1468
    %1470 = vmatprep.subr.mxu0 0.0
    %v1471 = vand.u32 %v336, 4294901760
    %1472 = vmatpush1.xpose.msra.mxu0 %v1471
    %1473 = vmatprep.subr.mxu0 0.0
    %v1474 = vand.u32 %v339, 4294901760
    %1475 = vmatpush1.xpose.msra.mxu0 %v1474
    %1476 = vmatprep.subr.mxu0 0.0
    %v1477 = vand.u32 %v342, 4294901760
    %1478 = vmatpush1.xpose.msra.mxu0 %v1477
    %1479 = vmatprep.subr.mxu0 0.0
    %v1480 = vand.u32 %v345, 4294901760
    %1481 = vmatpush1.xpose.msra.mxu0 %v1480
    %1482 = vmatprep.subr.mxu0 0.0
    %v1483 = vand.u32 %v348, 4294901760
    %1484 = vmatpush1.xpose.msra.mxu0 %v1483
    %1485 = vmatprep.subr.mxu0 0.0
    %v1486 = vand.u32 %v351, 4294901760
    %1487 = vmatpush1.xpose.msra.mxu0 %v1486
    %1488 = vmatprep.subr.mxu0 0.0
    %v1489 = vand.u32 %v354, 4294901760
    %1490 = vmatpush1.xpose.msra.mxu0 %v1489
    %1491 = vmatprep.subr.mxu0 0.0
    %v1492 = vand.u32 %v357, 4294901760
    %1493 = vmatpush1.xpose.msra.mxu0 %v1492
    %1494 = vmatprep.subr.mxu0 0.0
    %v1495 = vand.u32 %v360, 4294901760
    %1496 = vmatpush1.xpose.msra.mxu0 %v1495
    %1497 = vmatprep.subr.mxu0 0.0
    %v1498 = vand.u32 %v363, 4294901760
    %1499 = vmatpush1.xpose.msra.mxu0 %v1498
    %1500 = vmatprep.subr.mxu0 0.0
    %v1501 = vand.u32 %v366, 4294901760
    %1502 = vmatpush1.xpose.msra.mxu0 %v1501
    %1503 = vmatprep.mubr.f32.mxu0 0.0
    %v1504 = vand.u32 %v270, 4294901760
    %1505 = vmatmul.mubr.f32.gmra.mrb[0].mxu0 %v1504
    %v1506 = vpop.f32.mrb[0].mxu0
    %v1507 = vadd.f32 %v1403, %v1506
    %v1508 = vpop.f32.mrb[0].mxu0
    %v1509 = vadd.f32 %v1405, %v1508
    %1510 = vdwg.mxu0
    %1511 = vmatprep.subr.mxu0 0.0
    %v1512 = vand.u32 %v369, 4294901760
    %1513 = vmatpush1.xpose.msra.mxu0 %v1512
    %1514 = vmatprep.subr.mxu0 0.0
    %v1515 = vand.u32 %v372, 4294901760
    %1516 = vmatpush1.xpose.msra.mxu0 %v1515
    %1517 = vmatprep.subr.mxu0 0.0
    %v1518 = vand.u32 %v375, 4294901760
    %1519 = vmatpush1.xpose.msra.mxu0 %v1518
    %1520 = vmatprep.subr.mxu0 0.0
    %v1521 = vand.u32 %v378, 4294901760
    %1522 = vmatpush1.xpose.msra.mxu0 %v1521
    %1523 = vmatprep.subr.mxu0 0.0
    %v1524 = vand.u32 %v381, 4294901760
    %1525 = vmatpush1.xpose.msra.mxu0 %v1524
    %1526 = vmatprep.subr.mxu0 0.0
    %v1527 = vand.u32 %v384, 4294901760
    %1528 = vmatpush1.xpose.msra.mxu0 %v1527
    %1529 = vmatprep.subr.mxu0 0.0
    %v1530 = vand.u32 %v387, 4294901760
    %1531 = vmatpush1.xpose.msra.mxu0 %v1530
    %1532 = vmatprep.subr.mxu0 0.0
    %v1533 = vand.u32 %v390, 4294901760
    %1534 = vmatpush1.xpose.msra.mxu0 %v1533
    %1535 = vmatprep.subr.mxu0 0.0
    %v1536 = vand.u32 %v393, 4294901760
    %1537 = vmatpush1.xpose.msra.mxu0 %v1536
    %1538 = vmatprep.subr.mxu0 0.0
    %v1539 = vand.u32 %v396, 4294901760
    %1540 = vmatpush1.xpose.msra.mxu0 %v1539
    %1541 = vmatprep.subr.mxu0 0.0
    %v1542 = vand.u32 %v399, 4294901760
    %1543 = vmatpush1.xpose.msra.mxu0 %v1542
    %1544 = vmatprep.subr.mxu0 0.0
    %v1545 = vand.u32 %v402, 4294901760
    %1546 = vmatpush1.xpose.msra.mxu0 %v1545
    %1547 = vmatprep.subr.mxu0 0.0
    %v1548 = vand.u32 %v405, 4294901760
    %1549 = vmatpush1.xpose.msra.mxu0 %v1548
    %1550 = vmatprep.subr.mxu0 0.0
    %v1551 = vand.u32 %v408, 4294901760
    %1552 = vmatpush1.xpose.msra.mxu0 %v1551
    %1553 = vmatprep.subr.mxu0 0.0
    %v1554 = vand.u32 %v411, 4294901760
    %1555 = vmatpush1.xpose.msra.mxu0 %v1554
    %1556 = vmatprep.subr.mxu0 0.0
    %v1557 = vand.u32 %v414, 4294901760
    %1558 = vmatpush1.xpose.msra.mxu0 %v1557
    %1559 = vmatprep.subr.mxu0 0.0
    %v1560 = vand.u32 %v417, 4294901760
    %1561 = vmatpush1.xpose.msra.mxu0 %v1560
    %1562 = vmatprep.subr.mxu0 0.0
    %v1563 = vand.u32 %v420, 4294901760
    %1564 = vmatpush1.xpose.msra.mxu0 %v1563
    %1565 = vmatprep.subr.mxu0 0.0
    %v1566 = vand.u32 %v423, 4294901760
    %1567 = vmatpush1.xpose.msra.mxu0 %v1566
    %1568 = vmatprep.subr.mxu0 0.0
    %v1569 = vand.u32 %v426, 4294901760
    %1570 = vmatpush1.xpose.msra.mxu0 %v1569
    %1571 = vmatprep.subr.mxu0 0.0
    %v1572 = vand.u32 %v429, 4294901760
    %1573 = vmatpush1.xpose.msra.mxu0 %v1572
    %1574 = vmatprep.subr.mxu0 0.0
    %v1575 = vand.u32 %v432, 4294901760
    %1576 = vmatpush1.xpose.msra.mxu0 %v1575
    %1577 = vmatprep.subr.mxu0 0.0
    %v1578 = vand.u32 %v435, 4294901760
    %1579 = vmatpush1.xpose.msra.mxu0 %v1578
    %1580 = vmatprep.subr.mxu0 0.0
    %v1581 = vand.u32 %v438, 4294901760
    %1582 = vmatpush1.xpose.msra.mxu0 %v1581
    %1583 = vmatprep.subr.mxu0 0.0
    %v1584 = vand.u32 %v441, 4294901760
    %1585 = vmatpush1.xpose.msra.mxu0 %v1584
    %1586 = vmatprep.subr.mxu0 0.0
    %v1587 = vand.u32 %v444, 4294901760
    %1588 = vmatpush1.xpose.msra.mxu0 %v1587
    %1589 = vmatprep.subr.mxu0 0.0
    %v1590 = vand.u32 %v447, 4294901760
    %1591 = vmatpush1.xpose.msra.mxu0 %v1590
    %1592 = vmatprep.subr.mxu0 0.0
    %v1593 = vand.u32 %v450, 4294901760
    %1594 = vmatpush1.xpose.msra.mxu0 %v1593
    %1595 = vmatprep.subr.mxu0 0.0
    %v1596 = vand.u32 %v453, 4294901760
    %1597 = vmatpush1.xpose.msra.mxu0 %v1596
    %1598 = vmatprep.subr.mxu0 0.0
    %v1599 = vand.u32 %v456, 4294901760
    %1600 = vmatpush1.xpose.msra.mxu0 %v1599
    %1601 = vmatprep.subr.mxu0 0.0
    %v1602 = vand.u32 %v459, 4294901760
    %1603 = vmatpush1.xpose.msra.mxu0 %v1602
    %1604 = vmatprep.subr.mxu0 0.0
    %v1605 = vand.u32 %v462, 4294901760
    %1606 = vmatpush1.xpose.msra.mxu0 %v1605
    %1607 = vmatprep.mubr.f32.mxu0 0.0
    %v1608 = vand.u32 %v270, 4294901760
    %v1609 = vsub.f32 %v270, %v1608
    %v1610 = vand.u32 %v1609, 4294901760
    %v1611 = vsub.f32 %v1609, %v1610
    %v1612 = vand.u32 %v1611, 4294901760
    %1613 = vmatmul.mubr.f32.gmra.mrb[0].mxu0 %v1612
    %v1614 = vpop.f32.mrb[0].mxu0
    %v1615 = vadd.f32 0.0, %v1614
    %v1616 = vpop.f32.mrb[0].mxu0
    %v1617 = vadd.f32 0.0, %v1616
    %1618 = vdwg.mxu0
    %1619 = vmatprep.subr.mxu0 0.0
    %v1620 = vand.u32 %v369, 4294901760
    %v1621 = vsub.f32 %v369, %v1620
    %v1622 = vand.u32 %v1621, 4294901760
    %v1623 = vsub.f32 %v1621, %v1622
    %v1624 = vand.u32 %v1623, 4294901760
    %1625 = vmatpush1.xpose.msra.mxu0 %v1624
    %1626 = vmatprep.subr.mxu0 0.0
    %v1627 = vand.u32 %v372, 4294901760
    %v1628 = vsub.f32 %v372, %v1627
    %v1629 = vand.u32 %v1628, 4294901760
    %v1630 = vsub.f32 %v1628, %v1629
    %v1631 = vand.u32 %v1630, 4294901760
    %1632 = vmatpush1.xpose.msra.mxu0 %v1631
    %1633 = vmatprep.subr.mxu0 0.0
    %v1634 = vand.u32 %v375, 4294901760
    %v1635 = vsub.f32 %v375, %v1634
    %v1636 = vand.u32 %v1635, 4294901760
    %v1637 = vsub.f32 %v1635, %v1636
    %v1638 = vand.u32 %v1637, 4294901760
    %1639 = vmatpush1.xpose.msra.mxu0 %v1638
    %1640 = vmatprep.subr.mxu0 0.0
    %v1641 = vand.u32 %v378, 4294901760
    %v1642 = vsub.f32 %v378, %v1641
    %v1643 = vand.u32 %v1642, 4294901760
    %v1644 = vsub.f32 %v1642, %v1643
    %v1645 = vand.u32 %v1644, 4294901760
    %1646 = vmatpush1.xpose.msra.mxu0 %v1645
    %1647 = vmatprep.subr.mxu0 0.0
    %v1648 = vand.u32 %v381, 4294901760
    %v1649 = vsub.f32 %v381, %v1648
    %v1650 = vand.u32 %v1649, 4294901760
    %v1651 = vsub.f32 %v1649, %v1650
    %v1652 = vand.u32 %v1651, 4294901760
    %1653 = vmatpush1.xpose.msra.mxu0 %v1652
    %1654 = vmatprep.subr.mxu0 0.0
    %v1655 = vand.u32 %v384, 4294901760
    %v1656 = vsub.f32 %v384, %v1655
    %v1657 = vand.u32 %v1656, 4294901760
    %v1658 = vsub.f32 %v1656, %v1657
    %v1659 = vand.u32 %v1658, 4294901760
    %1660 = vmatpush1.xpose.msra.mxu0 %v1659
    %1661 = vmatprep.subr.mxu0 0.0
    %v1662 = vand.u32 %v387, 4294901760
    %v1663 = vsub.f32 %v387, %v1662
    %v1664 = vand.u32 %v1663, 4294901760
    %v1665 = vsub.f32 %v1663, %v1664
    %v1666 = vand.u32 %v1665, 4294901760
    %1667 = vmatpush1.xpose.msra.mxu0 %v1666
    %1668 = vmatprep.subr.mxu0 0.0
    %v1669 = vand.u32 %v390, 4294901760
    %v1670 = vsub.f32 %v390, %v1669
    %v1671 = vand.u32 %v1670, 4294901760
    %v1672 = vsub.f32 %v1670, %v1671
    %v1673 = vand.u32 %v1672, 4294901760
    %1674 = vmatpush1.xpose.msra.mxu0 %v1673
    %1675 = vmatprep.subr.mxu0 0.0
    %v1676 = vand.u32 %v393, 4294901760
    %v1677 = vsub.f32 %v393, %v1676
    %v1678 = vand.u32 %v1677, 4294901760
    %v1679 = vsub.f32 %v1677, %v1678
    %v1680 = vand.u32 %v1679, 4294901760
    %1681 = vmatpush1.xpose.msra.mxu0 %v1680
    %1682 = vmatprep.subr.mxu0 0.0
    %v1683 = vand.u32 %v396, 4294901760
    %v1684 = vsub.f32 %v396, %v1683
    %v1685 = vand.u32 %v1684, 4294901760
    %v1686 = vsub.f32 %v1684, %v1685
    %v1687 = vand.u32 %v1686, 4294901760
    %1688 = vmatpush1.xpose.msra.mxu0 %v1687
    %1689 = vmatprep.subr.mxu0 0.0
    %v1690 = vand.u32 %v399, 4294901760
    %v1691 = vsub.f32 %v399, %v1690
    %v1692 = vand.u32 %v1691, 4294901760
    %v1693 = vsub.f32 %v1691, %v1692
    %v1694 = vand.u32 %v1693, 4294901760
    %1695 = vmatpush1.xpose.msra.mxu0 %v1694
    %1696 = vmatprep.subr.mxu0 0.0
    %v1697 = vand.u32 %v402, 4294901760
    %v1698 = vsub.f32 %v402, %v1697
    %v1699 = vand.u32 %v1698, 4294901760
    %v1700 = vsub.f32 %v1698, %v1699
    %v1701 = vand.u32 %v1700, 4294901760
    %1702 = vmatpush1.xpose.msra.mxu0 %v1701
    %1703 = vmatprep.subr.mxu0 0.0
    %v1704 = vand.u32 %v405, 4294901760
    %v1705 = vsub.f32 %v405, %v1704
    %v1706 = vand.u32 %v1705, 4294901760
    %v1707 = vsub.f32 %v1705, %v1706
    %v1708 = vand.u32 %v1707, 4294901760
    %1709 = vmatpush1.xpose.msra.mxu0 %v1708
    %1710 = vmatprep.subr.mxu0 0.0
    %v1711 = vand.u32 %v408, 4294901760
    %v1712 = vsub.f32 %v408, %v1711
    %v1713 = vand.u32 %v1712, 4294901760
    %v1714 = vsub.f32 %v1712, %v1713
    %v1715 = vand.u32 %v1714, 4294901760
    %1716 = vmatpush1.xpose.msra.mxu0 %v1715
    %1717 = vmatprep.subr.mxu0 0.0
    %v1718 = vand.u32 %v411, 4294901760
    %v1719 = vsub.f32 %v411, %v1718
    %v1720 = vand.u32 %v1719, 4294901760
    %v1721 = vsub.f32 %v1719, %v1720
    %v1722 = vand.u32 %v1721, 4294901760
    %1723 = vmatpush1.xpose.msra.mxu0 %v1722
    %1724 = vmatprep.subr.mxu0 0.0
    %v1725 = vand.u32 %v414, 4294901760
    %v1726 = vsub.f32 %v414, %v1725
    %v1727 = vand.u32 %v1726, 4294901760
    %v1728 = vsub.f32 %v1726, %v1727
    %v1729 = vand.u32 %v1728, 4294901760
    %1730 = vmatpush1.xpose.msra.mxu0 %v1729
    %1731 = vmatprep.subr.mxu0 0.0
    %v1732 = vand.u32 %v417, 4294901760
    %v1733 = vsub.f32 %v417, %v1732
    %v1734 = vand.u32 %v1733, 4294901760
    %v1735 = vsub.f32 %v1733, %v1734
    %v1736 = vand.u32 %v1735, 4294901760
    %1737 = vmatpush1.xpose.msra.mxu0 %v1736
    %1738 = vmatprep.subr.mxu0 0.0
    %v1739 = vand.u32 %v420, 4294901760
    %v1740 = vsub.f32 %v420, %v1739
    %v1741 = vand.u32 %v1740, 4294901760
    %v1742 = vsub.f32 %v1740, %v1741
    %v1743 = vand.u32 %v1742, 4294901760
    %1744 = vmatpush1.xpose.msra.mxu0 %v1743
    %1745 = vmatprep.subr.mxu0 0.0
    %v1746 = vand.u32 %v423, 4294901760
    %v1747 = vsub.f32 %v423, %v1746
    %v1748 = vand.u32 %v1747, 4294901760
    %v1749 = vsub.f32 %v1747, %v1748
    %v1750 = vand.u32 %v1749, 4294901760
    %1751 = vmatpush1.xpose.msra.mxu0 %v1750
    %1752 = vmatprep.subr.mxu0 0.0
    %v1753 = vand.u32 %v426, 4294901760
    %v1754 = vsub.f32 %v426, %v1753
    %v1755 = vand.u32 %v1754, 4294901760
    %v1756 = vsub.f32 %v1754, %v1755
    %v1757 = vand.u32 %v1756, 4294901760
    %1758 = vmatpush1.xpose.msra.mxu0 %v1757
    %1759 = vmatprep.subr.mxu0 0.0
    %v1760 = vand.u32 %v429, 4294901760
    %v1761 = vsub.f32 %v429, %v1760
    %v1762 = vand.u32 %v1761, 4294901760
    %v1763 = vsub.f32 %v1761, %v1762
    %v1764 = vand.u32 %v1763, 4294901760
    %1765 = vmatpush1.xpose.msra.mxu0 %v1764
    %1766 = vmatprep.subr.mxu0 0.0
    %v1767 = vand.u32 %v432, 4294901760
    %v1768 = vsub.f32 %v432, %v1767
    %v1769 = vand.u32 %v1768, 4294901760
    %v1770 = vsub.f32 %v1768, %v1769
    %v1771 = vand.u32 %v1770, 4294901760
    %1772 = vmatpush1.xpose.msra.mxu0 %v1771
    %1773 = vmatprep.subr.mxu0 0.0
    %v1774 = vand.u32 %v435, 4294901760
    %v1775 = vsub.f32 %v435, %v1774
    %v1776 = vand.u32 %v1775, 4294901760
    %v1777 = vsub.f32 %v1775, %v1776
    %v1778 = vand.u32 %v1777, 4294901760
    %1779 = vmatpush1.xpose.msra.mxu0 %v1778
    %1780 = vmatprep.subr.mxu0 0.0
    %v1781 = vand.u32 %v438, 4294901760
    %v1782 = vsub.f32 %v438, %v1781
    %v1783 = vand.u32 %v1782, 4294901760
    %v1784 = vsub.f32 %v1782, %v1783
    %v1785 = vand.u32 %v1784, 4294901760
    %1786 = vmatpush1.xpose.msra.mxu0 %v1785
    %1787 = vmatprep.subr.mxu0 0.0
    %v1788 = vand.u32 %v441, 4294901760
    %v1789 = vsub.f32 %v441, %v1788
    %v1790 = vand.u32 %v1789, 4294901760
    %v1791 = vsub.f32 %v1789, %v1790
    %v1792 = vand.u32 %v1791, 4294901760
    %1793 = vmatpush1.xpose.msra.mxu0 %v1792
    %1794 = vmatprep.subr.mxu0 0.0
    %v1795 = vand.u32 %v444, 4294901760
    %v1796 = vsub.f32 %v444, %v1795
    %v1797 = vand.u32 %v1796, 4294901760
    %v1798 = vsub.f32 %v1796, %v1797
    %v1799 = vand.u32 %v1798, 4294901760
    %1800 = vmatpush1.xpose.msra.mxu0 %v1799
    %1801 = vmatprep.subr.mxu0 0.0
    %v1802 = vand.u32 %v447, 4294901760
    %v1803 = vsub.f32 %v447, %v1802
    %v1804 = vand.u32 %v1803, 4294901760
    %v1805 = vsub.f32 %v1803, %v1804
    %v1806 = vand.u32 %v1805, 4294901760
    %1807 = vmatpush1.xpose.msra.mxu0 %v1806
    %1808 = vmatprep.subr.mxu0 0.0
    %v1809 = vand.u32 %v450, 4294901760
    %v1810 = vsub.f32 %v450, %v1809
    %v1811 = vand.u32 %v1810, 4294901760
    %v1812 = vsub.f32 %v1810, %v1811
    %v1813 = vand.u32 %v1812, 4294901760
    %1814 = vmatpush1.xpose.msra.mxu0 %v1813
    %1815 = vmatprep.subr.mxu0 0.0
    %v1816 = vand.u32 %v453, 4294901760
    %v1817 = vsub.f32 %v453, %v1816
    %v1818 = vand.u32 %v1817, 4294901760
    %v1819 = vsub.f32 %v1817, %v1818
    %v1820 = vand.u32 %v1819, 4294901760
    %1821 = vmatpush1.xpose.msra.mxu0 %v1820
    %1822 = vmatprep.subr.mxu0 0.0
    %v1823 = vand.u32 %v456, 4294901760
    %v1824 = vsub.f32 %v456, %v1823
    %v1825 = vand.u32 %v1824, 4294901760
    %v1826 = vsub.f32 %v1824, %v1825
    %v1827 = vand.u32 %v1826, 4294901760
    %1828 = vmatpush1.xpose.msra.mxu0 %v1827
    %1829 = vmatprep.subr.mxu0 0.0
    %v1830 = vand.u32 %v459, 4294901760
    %v1831 = vsub.f32 %v459, %v1830
    %v1832 = vand.u32 %v1831, 4294901760
    %v1833 = vsub.f32 %v1831, %v1832
    %v1834 = vand.u32 %v1833, 4294901760
    %1835 = vmatpush1.xpose.msra.mxu0 %v1834
    %1836 = vmatprep.subr.mxu0 0.0
    %v1837 = vand.u32 %v462, 4294901760
    %v1838 = vsub.f32 %v462, %v1837
    %v1839 = vand.u32 %v1838, 4294901760
    %v1840 = vsub.f32 %v1838, %v1839
    %v1841 = vand.u32 %v1840, 4294901760
    %1842 = vmatpush1.xpose.msra.mxu0 %v1841
    %1843 = vmatprep.mubr.f32.mxu0 0.0
    %v1844 = vand.u32 %v270, 4294901760
    %1845 = vmatmul.mubr.f32.gmra.mrb[0].mxu0 %v1844
    %v1846 = vpop.f32.mrb[0].mxu0
    %v1847 = vadd.f32 %v1615, %v1846
    %v1848 = vpop.f32.mrb[0].mxu0
    %v1849 = vadd.f32 %v1617, %v1848
    %1850 = vdwg.mxu0
    %1851 = vmatprep.subr.mxu0 0.0
    %v1852 = vand.u32 %v369, 4294901760
    %v1853 = vsub.f32 %v369, %v1852
    %1854 = vmatpush1.xpose.msra.mxu0 %v1853
    %1855 = vmatprep.subr.mxu0 0.0
    %v1856 = vand.u32 %v372, 4294901760
    %v1857 = vsub.f32 %v372, %v1856
    %1858 = vmatpush1.xpose.msra.mxu0 %v1857
    %1859 = vmatprep.subr.mxu0 0.0
    %v1860 = vand.u32 %v375, 4294901760
    %v1861 = vsub.f32 %v375, %v1860
    %1862 = vmatpush1.xpose.msra.mxu0 %v1861
    %1863 = vmatprep.subr.mxu0 0.0
    %v1864 = vand.u32 %v378, 4294901760
    %v1865 = vsub.f32 %v378, %v1864
    %1866 = vmatpush1.xpose.msra.mxu0 %v1865
    %1867 = vmatprep.subr.mxu0 0.0
    %v1868 = vand.u32 %v381, 4294901760
    %v1869 = vsub.f32 %v381, %v1868
    %1870 = vmatpush1.xpose.msra.mxu0 %v1869
    %1871 = vmatprep.subr.mxu0 0.0
    %v1872 = vand.u32 %v384, 4294901760
    %v1873 = vsub.f32 %v384, %v1872
    %1874 = vmatpush1.xpose.msra.mxu0 %v1873
    %1875 = vmatprep.subr.mxu0 0.0
    %v1876 = vand.u32 %v387, 4294901760
    %v1877 = vsub.f32 %v387, %v1876
    %1878 = vmatpush1.xpose.msra.mxu0 %v1877
    %1879 = vmatprep.subr.mxu0 0.0
    %v1880 = vand.u32 %v390, 4294901760
    %v1881 = vsub.f32 %v390, %v1880
    %1882 = vmatpush1.xpose.msra.mxu0 %v1881
    %1883 = vmatprep.subr.mxu0 0.0
    %v1884 = vand.u32 %v393, 4294901760
    %v1885 = vsub.f32 %v393, %v1884
    %1886 = vmatpush1.xpose.msra.mxu0 %v1885
    %1887 = vmatprep.subr.mxu0 0.0
    %v1888 = vand.u32 %v396, 4294901760
    %v1889 = vsub.f32 %v396, %v1888
    %1890 = vmatpush1.xpose.msra.mxu0 %v1889
    %1891 = vmatprep.subr.mxu0 0.0
    %v1892 = vand.u32 %v399, 4294901760
    %v1893 = vsub.f32 %v399, %v1892
    %1894 = vmatpush1.xpose.msra.mxu0 %v1893
    %1895 = vmatprep.subr.mxu0 0.0
    %v1896 = vand.u32 %v402, 4294901760
    %v1897 = vsub.f32 %v402, %v1896
    %1898 = vmatpush1.xpose.msra.mxu0 %v1897
    %1899 = vmatprep.subr.mxu0 0.0
    %v1900 = vand.u32 %v405, 4294901760
    %v1901 = vsub.f32 %v405, %v1900
    %1902 = vmatpush1.xpose.msra.mxu0 %v1901
    %1903 = vmatprep.subr.mxu0 0.0
    %v1904 = vand.u32 %v408, 4294901760
    %v1905 = vsub.f32 %v408, %v1904
    %1906 = vmatpush1.xpose.msra.mxu0 %v1905
    %1907 = vmatprep.subr.mxu0 0.0
    %v1908 = vand.u32 %v411, 4294901760
    %v1909 = vsub.f32 %v411, %v1908
    %1910 = vmatpush1.xpose.msra.mxu0 %v1909
    %1911 = vmatprep.subr.mxu0 0.0
    %v1912 = vand.u32 %v414, 4294901760
    %v1913 = vsub.f32 %v414, %v1912
    %1914 = vmatpush1.xpose.msra.mxu0 %v1913
    %1915 = vmatprep.subr.mxu0 0.0
    %v1916 = vand.u32 %v417, 4294901760
    %v1917 = vsub.f32 %v417, %v1916
    %1918 = vmatpush1.xpose.msra.mxu0 %v1917
    %1919 = vmatprep.subr.mxu0 0.0
    %v1920 = vand.u32 %v420, 4294901760
    %v1921 = vsub.f32 %v420, %v1920
    %1922 = vmatpush1.xpose.msra.mxu0 %v1921
    %1923 = vmatprep.subr.mxu0 0.0
    %v1924 = vand.u32 %v423, 4294901760
    %v1925 = vsub.f32 %v423, %v1924
    %1926 = vmatpush1.xpose.msra.mxu0 %v1925
    %1927 = vmatprep.subr.mxu0 0.0
    %v1928 = vand.u32 %v426, 4294901760
    %v1929 = vsub.f32 %v426, %v1928
    %1930 = vmatpush1.xpose.msra.mxu0 %v1929
    %1931 = vmatprep.subr.mxu0 0.0
    %v1932 = vand.u32 %v429, 4294901760
    %v1933 = vsub.f32 %v429, %v1932
    %1934 = vmatpush1.xpose.msra.mxu0 %v1933
    %1935 = vmatprep.subr.mxu0 0.0
    %v1936 = vand.u32 %v432, 4294901760
    %v1937 = vsub.f32 %v432, %v1936
    %1938 = vmatpush1.xpose.msra.mxu0 %v1937
    %1939 = vmatprep.subr.mxu0 0.0
    %v1940 = vand.u32 %v435, 4294901760
    %v1941 = vsub.f32 %v435, %v1940
    %1942 = vmatpush1.xpose.msra.mxu0 %v1941
    %1943 = vmatprep.subr.mxu0 0.0
    %v1944 = vand.u32 %v438, 4294901760
    %v1945 = vsub.f32 %v438, %v1944
    %1946 = vmatpush1.xpose.msra.mxu0 %v1945
    %1947 = vmatprep.subr.mxu0 0.0
    %v1948 = vand.u32 %v441, 4294901760
    %v1949 = vsub.f32 %v441, %v1948
    %1950 = vmatpush1.xpose.msra.mxu0 %v1949
    %1951 = vmatprep.subr.mxu0 0.0
    %v1952 = vand.u32 %v444, 4294901760
    %v1953 = vsub.f32 %v444, %v1952
    %1954 = vmatpush1.xpose.msra.mxu0 %v1953
    %1955 = vmatprep.subr.mxu0 0.0
    %v1956 = vand.u32 %v447, 4294901760
    %v1957 = vsub.f32 %v447, %v1956
    %1958 = vmatpush1.xpose.msra.mxu0 %v1957
    %1959 = vmatprep.subr.mxu0 0.0
    %v1960 = vand.u32 %v450, 4294901760
    %v1961 = vsub.f32 %v450, %v1960
    %1962 = vmatpush1.xpose.msra.mxu0 %v1961
    %1963 = vmatprep.subr.mxu0 0.0
    %v1964 = vand.u32 %v453, 4294901760
    %v1965 = vsub.f32 %v453, %v1964
    %1966 = vmatpush1.xpose.msra.mxu0 %v1965
    %1967 = vmatprep.subr.mxu0 0.0
    %v1968 = vand.u32 %v456, 4294901760
    %v1969 = vsub.f32 %v456, %v1968
    %1970 = vmatpush1.xpose.msra.mxu0 %v1969
    %1971 = vmatprep.subr.mxu0 0.0
    %v1972 = vand.u32 %v459, 4294901760
    %v1973 = vsub.f32 %v459, %v1972
    %1974 = vmatpush1.xpose.msra.mxu0 %v1973
    %1975 = vmatprep.subr.mxu0 0.0
    %v1976 = vand.u32 %v462, 4294901760
    %v1977 = vsub.f32 %v462, %v1976
    %1978 = vmatpush1.xpose.msra.mxu0 %v1977
    %1979 = vmatprep.mubr.f32.mxu0 0.0
    %v1980 = vand.u32 %v270, 4294901760
    %v1981 = vsub.f32 %v270, %v1980
    %1982 = vmatmul.mubr.f32.gmra.mrb[0].mxu0 %v1981
    %v1983 = vpop.f32.mrb[0].mxu0
    %v1984 = vadd.f32 %v1847, %v1983
    %v1985 = vpop.f32.mrb[0].mxu0
    %v1986 = vadd.f32 %v1849, %v1985
    %1987 = vdwg.mxu0
    %1988 = vmatprep.subr.mxu0 0.0
    %v1989 = vand.u32 %v369, 4294901760
    %1990 = vmatpush1.xpose.msra.mxu0 %v1989
    %1991 = vmatprep.subr.mxu0 0.0
    %v1992 = vand.u32 %v372, 4294901760
    %1993 = vmatpush1.xpose.msra.mxu0 %v1992
    %1994 = vmatprep.subr.mxu0 0.0
    %v1995 = vand.u32 %v375, 4294901760
    %1996 = vmatpush1.xpose.msra.mxu0 %v1995
    %1997 = vmatprep.subr.mxu0 0.0
    %v1998 = vand.u32 %v378, 4294901760
    %1999 = vmatpush1.xpose.msra.mxu0 %v1998
    %2000 = vmatprep.subr.mxu0 0.0
    %v2001 = vand.u32 %v381, 4294901760
    %2002 = vmatpush1.xpose.msra.mxu0 %v2001
    %2003 = vmatprep.subr.mxu0 0.0
    %v2004 = vand.u32 %v384, 4294901760
    %2005 = vmatpush1.xpose.msra.mxu0 %v2004
    %2006 = vmatprep.subr.mxu0 0.0
    %v2007 = vand.u32 %v387, 4294901760
    %2008 = vmatpush1.xpose.msra.mxu0 %v2007
    %2009 = vmatprep.subr.mxu0 0.0
    %v2010 = vand.u32 %v390, 4294901760
    %2011 = vmatpush1.xpose.msra.mxu0 %v2010
    %2012 = vmatprep.subr.mxu0 0.0
    %v2013 = vand.u32 %v393, 4294901760
    %2014 = vmatpush1.xpose.msra.mxu0 %v2013
    %2015 = vmatprep.subr.mxu0 0.0
    %v2016 = vand.u32 %v396, 4294901760
    %2017 = vmatpush1.xpose.msra.mxu0 %v2016
    %2018 = vmatprep.subr.mxu0 0.0
    %v2019 = vand.u32 %v399, 4294901760
    %2020 = vmatpush1.xpose.msra.mxu0 %v2019
    %2021 = vmatprep.subr.mxu0 0.0
    %v2022 = vand.u32 %v402, 4294901760
    %2023 = vmatpush1.xpose.msra.mxu0 %v2022
    %2024 = vmatprep.subr.mxu0 0.0
    %v2025 = vand.u32 %v405, 4294901760
    %2026 = vmatpush1.xpose.msra.mxu0 %v2025
    %2027 = vmatprep.subr.mxu0 0.0
    %v2028 = vand.u32 %v408, 4294901760
    %2029 = vmatpush1.xpose.msra.mxu0 %v2028
    %2030 = vmatprep.subr.mxu0 0.0
    %v2031 = vand.u32 %v411, 4294901760
    %2032 = vmatpush1.xpose.msra.mxu0 %v2031
    %2033 = vmatprep.subr.mxu0 0.0
    %v2034 = vand.u32 %v414, 4294901760
    %2035 = vmatpush1.xpose.msra.mxu0 %v2034
    %2036 = vmatprep.subr.mxu0 0.0
    %v2037 = vand.u32 %v417, 4294901760
    %2038 = vmatpush1.xpose.msra.mxu0 %v2037
    %2039 = vmatprep.subr.mxu0 0.0
    %v2040 = vand.u32 %v420, 4294901760
    %2041 = vmatpush1.xpose.msra.mxu0 %v2040
    %2042 = vmatprep.subr.mxu0 0.0
    %v2043 = vand.u32 %v423, 4294901760
    %2044 = vmatpush1.xpose.msra.mxu0 %v2043
    %2045 = vmatprep.subr.mxu0 0.0
    %v2046 = vand.u32 %v426, 4294901760
    %2047 = vmatpush1.xpose.msra.mxu0 %v2046
    %2048 = vmatprep.subr.mxu0 0.0
    %v2049 = vand.u32 %v429, 4294901760
    %2050 = vmatpush1.xpose.msra.mxu0 %v2049
    %2051 = vmatprep.subr.mxu0 0.0
    %v2052 = vand.u32 %v432, 4294901760
    %2053 = vmatpush1.xpose.msra.mxu0 %v2052
    %2054 = vmatprep.subr.mxu0 0.0
    %v2055 = vand.u32 %v435, 4294901760
    %2056 = vmatpush1.xpose.msra.mxu0 %v2055
    %2057 = vmatprep.subr.mxu0 0.0
    %v2058 = vand.u32 %v438, 4294901760
    %2059 = vmatpush1.xpose.msra.mxu0 %v2058
    %2060 = vmatprep.subr.mxu0 0.0
    %v2061 = vand.u32 %v441, 4294901760
    %2062 = vmatpush1.xpose.msra.mxu0 %v2061
    %2063 = vmatprep.subr.mxu0 0.0
    %v2064 = vand.u32 %v444, 4294901760
    %2065 = vmatpush1.xpose.msra.mxu0 %v2064
    %2066 = vmatprep.subr.mxu0 0.0
    %v2067 = vand.u32 %v447, 4294901760
    %2068 = vmatpush1.xpose.msra.mxu0 %v2067
    %2069 = vmatprep.subr.mxu0 0.0
    %v2070 = vand.u32 %v450, 4294901760
    %2071 = vmatpush1.xpose.msra.mxu0 %v2070
    %2072 = vmatprep.subr.mxu0 0.0
    %v2073 = vand.u32 %v453, 4294901760
    %2074 = vmatpush1.xpose.msra.mxu0 %v2073
    %2075 = vmatprep.subr.mxu0 0.0
    %v2076 = vand.u32 %v456, 4294901760
    %2077 = vmatpush1.xpose.msra.mxu0 %v2076
    %2078 = vmatprep.subr.mxu0 0.0
    %v2079 = vand.u32 %v459, 4294901760
    %2080 = vmatpush1.xpose.msra.mxu0 %v2079
    %2081 = vmatprep.subr.mxu0 0.0
    %v2082 = vand.u32 %v462, 4294901760
    %2083 = vmatpush1.xpose.msra.mxu0 %v2082
    %2084 = vmatprep.mubr.f32.mxu0 0.0
    %v2085 = vand.u32 %v270, 4294901760
    %v2086 = vsub.f32 %v270, %v2085
    %v2087 = vand.u32 %v2086, 4294901760
    %2088 = vmatmul.mubr.f32.gmra.mrb[0].mxu0 %v2087
    %v2089 = vpop.f32.mrb[0].mxu0
    %v2090 = vadd.f32 %v1984, %v2089
    %v2091 = vpop.f32.mrb[0].mxu0
    %v2092 = vadd.f32 %v1986, %v2091
    %2093 = vdwg.mxu0
    %2094 = vmatprep.subr.mxu0 0.0
    %v2095 = vand.u32 %v369, 4294901760
    %v2096 = vsub.f32 %v369, %v2095
    %v2097 = vand.u32 %v2096, 4294901760
    %2098 = vmatpush1.xpose.msra.mxu0 %v2097
    %2099 = vmatprep.subr.mxu0 0.0
    %v2100 = vand.u32 %v372, 4294901760
    %v2101 = vsub.f32 %v372, %v2100
    %v2102 = vand.u32 %v2101, 4294901760
    %2103 = vmatpush1.xpose.msra.mxu0 %v2102
    %2104 = vmatprep.subr.mxu0 0.0
    %v2105 = vand.u32 %v375, 4294901760
    %v2106 = vsub.f32 %v375, %v2105
    %v2107 = vand.u32 %v2106, 4294901760
    %2108 = vmatpush1.xpose.msra.mxu0 %v2107
    %2109 = vmatprep.subr.mxu0 0.0
    %v2110 = vand.u32 %v378, 4294901760
    %v2111 = vsub.f32 %v378, %v2110
    %v2112 = vand.u32 %v2111, 4294901760
    %2113 = vmatpush1.xpose.msra.mxu0 %v2112
    %2114 = vmatprep.subr.mxu0 0.0
    %v2115 = vand.u32 %v381, 4294901760
    %v2116 = vsub.f32 %v381, %v2115
    %v2117 = vand.u32 %v2116, 4294901760
    %2118 = vmatpush1.xpose.msra.mxu0 %v2117
    %2119 = vmatprep.subr.mxu0 0.0
    %v2120 = vand.u32 %v384, 4294901760
    %v2121 = vsub.f32 %v384, %v2120
    %v2122 = vand.u32 %v2121, 4294901760
    %2123 = vmatpush1.xpose.msra.mxu0 %v2122
    %2124 = vmatprep.subr.mxu0 0.0
    %v2125 = vand.u32 %v387, 4294901760
    %v2126 = vsub.f32 %v387, %v2125
    %v2127 = vand.u32 %v2126, 4294901760
    %2128 = vmatpush1.xpose.msra.mxu0 %v2127
    %2129 = vmatprep.subr.mxu0 0.0
    %v2130 = vand.u32 %v390, 4294901760
    %v2131 = vsub.f32 %v390, %v2130
    %v2132 = vand.u32 %v2131, 4294901760
    %2133 = vmatpush1.xpose.msra.mxu0 %v2132
    %2134 = vmatprep.subr.mxu0 0.0
    %v2135 = vand.u32 %v393, 4294901760
    %v2136 = vsub.f32 %v393, %v2135
    %v2137 = vand.u32 %v2136, 4294901760
    %2138 = vmatpush1.xpose.msra.mxu0 %v2137
    %2139 = vmatprep.subr.mxu0 0.0
    %v2140 = vand.u32 %v396, 4294901760
    %v2141 = vsub.f32 %v396, %v2140
    %v2142 = vand.u32 %v2141, 4294901760
    %2143 = vmatpush1.xpose.msra.mxu0 %v2142
    %2144 = vmatprep.subr.mxu0 0.0
    %v2145 = vand.u32 %v399, 4294901760
    %v2146 = vsub.f32 %v399, %v2145
    %v2147 = vand.u32 %v2146, 4294901760
    %2148 = vmatpush1.xpose.msra.mxu0 %v2147
    %2149 = vmatprep.subr.mxu0 0.0
    %v2150 = vand.u32 %v402, 4294901760
    %v2151 = vsub.f32 %v402, %v2150
    %v2152 = vand.u32 %v2151, 4294901760
    %2153 = vmatpush1.xpose.msra.mxu0 %v2152
    %2154 = vmatprep.subr.mxu0 0.0
    %v2155 = vand.u32 %v405, 4294901760
    %v2156 = vsub.f32 %v405, %v2155
    %v2157 = vand.u32 %v2156, 4294901760
    %2158 = vmatpush1.xpose.msra.mxu0 %v2157
    %2159 = vmatprep.subr.mxu0 0.0
    %v2160 = vand.u32 %v408, 4294901760
    %v2161 = vsub.f32 %v408, %v2160
    %v2162 = vand.u32 %v2161, 4294901760
    %2163 = vmatpush1.xpose.msra.mxu0 %v2162
    %2164 = vmatprep.subr.mxu0 0.0
    %v2165 = vand.u32 %v411, 4294901760
    %v2166 = vsub.f32 %v411, %v2165
    %v2167 = vand.u32 %v2166, 4294901760
    %2168 = vmatpush1.xpose.msra.mxu0 %v2167
    %2169 = vmatprep.subr.mxu0 0.0
    %v2170 = vand.u32 %v414, 4294901760
    %v2171 = vsub.f32 %v414, %v2170
    %v2172 = vand.u32 %v2171, 4294901760
    %2173 = vmatpush1.xpose.msra.mxu0 %v2172
    %2174 = vmatprep.subr.mxu0 0.0
    %v2175 = vand.u32 %v417, 4294901760
    %v2176 = vsub.f32 %v417, %v2175
    %v2177 = vand.u32 %v2176, 4294901760
    %2178 = vmatpush1.xpose.msra.mxu0 %v2177
    %2179 = vmatprep.subr.mxu0 0.0
    %v2180 = vand.u32 %v420, 4294901760
    %v2181 = vsub.f32 %v420, %v2180
    %v2182 = vand.u32 %v2181, 4294901760
    %2183 = vmatpush1.xpose.msra.mxu0 %v2182
    %2184 = vmatprep.subr.mxu0 0.0
    %v2185 = vand.u32 %v423, 4294901760
    %v2186 = vsub.f32 %v423, %v2185
    %v2187 = vand.u32 %v2186, 4294901760
    %2188 = vmatpush1.xpose.msra.mxu0 %v2187
    %2189 = vmatprep.subr.mxu0 0.0
    %v2190 = vand.u32 %v426, 4294901760
    %v2191 = vsub.f32 %v426, %v2190
    %v2192 = vand.u32 %v2191, 4294901760
    %2193 = vmatpush1.xpose.msra.mxu0 %v2192
    %2194 = vmatprep.subr.mxu0 0.0
    %v2195 = vand.u32 %v429, 4294901760
    %v2196 = vsub.f32 %v429, %v2195
    %v2197 = vand.u32 %v2196, 4294901760
    %2198 = vmatpush1.xpose.msra.mxu0 %v2197
    %2199 = vmatprep.subr.mxu0 0.0
    %v2200 = vand.u32 %v432, 4294901760
    %v2201 = vsub.f32 %v432, %v2200
    %v2202 = vand.u32 %v2201, 4294901760
    %2203 = vmatpush1.xpose.msra.mxu0 %v2202
    %2204 = vmatprep.subr.mxu0 0.0
    %v2205 = vand.u32 %v435, 4294901760
    %v2206 = vsub.f32 %v435, %v2205
    %v2207 = vand.u32 %v2206, 4294901760
    %2208 = vmatpush1.xpose.msra.mxu0 %v2207
    %2209 = vmatprep.subr.mxu0 0.0
    %v2210 = vand.u32 %v438, 4294901760
    %v2211 = vsub.f32 %v438, %v2210
    %v2212 = vand.u32 %v2211, 4294901760
    %2213 = vmatpush1.xpose.msra.mxu0 %v2212
    %2214 = vmatprep.subr.mxu0 0.0
    %v2215 = vand.u32 %v441, 4294901760
    %v2216 = vsub.f32 %v441, %v2215
    %v2217 = vand.u32 %v2216, 4294901760
    %2218 = vmatpush1.xpose.msra.mxu0 %v2217
    %2219 = vmatprep.subr.mxu0 0.0
    %v2220 = vand.u32 %v444, 4294901760
    %v2221 = vsub.f32 %v444, %v2220
    %v2222 = vand.u32 %v2221, 4294901760
    %2223 = vmatpush1.xpose.msra.mxu0 %v2222
    %2224 = vmatprep.subr.mxu0 0.0
    %v2225 = vand.u32 %v447, 4294901760
    %v2226 = vsub.f32 %v447, %v2225
    %v2227 = vand.u32 %v2226, 4294901760
    %2228 = vmatpush1.xpose.msra.mxu0 %v2227
    %2229 = vmatprep.subr.mxu0 0.0
    %v2230 = vand.u32 %v450, 4294901760
    %v2231 = vsub.f32 %v450, %v2230
    %v2232 = vand.u32 %v2231, 4294901760
    %2233 = vmatpush1.xpose.msra.mxu0 %v2232
    %2234 = vmatprep.subr.mxu0 0.0
    %v2235 = vand.u32 %v453, 4294901760
    %v2236 = vsub.f32 %v453, %v2235
    %v2237 = vand.u32 %v2236, 4294901760
    %2238 = vmatpush1.xpose.msra.mxu0 %v2237
    %2239 = vmatprep.subr.mxu0 0.0
    %v2240 = vand.u32 %v456, 4294901760
    %v2241 = vsub.f32 %v456, %v2240
    %v2242 = vand.u32 %v2241, 4294901760
    %2243 = vmatpush1.xpose.msra.mxu0 %v2242
    %2244 = vmatprep.subr.mxu0 0.0
    %v2245 = vand.u32 %v459, 4294901760
    %v2246 = vsub.f32 %v459, %v2245
    %v2247 = vand.u32 %v2246, 4294901760
    %2248 = vmatpush1.xpose.msra.mxu0 %v2247
    %2249 = vmatprep.subr.mxu0 0.0
    %v2250 = vand.u32 %v462, 4294901760
    %v2251 = vsub.f32 %v462, %v2250
    %v2252 = vand.u32 %v2251, 4294901760
    %2253 = vmatpush1.xpose.msra.mxu0 %v2252
    %2254 = vmatprep.mubr.f32.mxu0 0.0
    %v2255 = vand.u32 %v270, 4294901760
    %2256 = vmatmul.mubr.f32.gmra.mrb[0].mxu0 %v2255
    %v2257 = vpop.f32.mrb[0].mxu0
    %v2258 = vadd.f32 %v2090, %v2257
    %v2259 = vpop.f32.mrb[0].mxu0
    %v2260 = vadd.f32 %v2092, %v2259
    %2261 = vdwg.mxu0
    %2262 = vmatprep.subr.mxu0 0.0
    %v2263 = vand.u32 %v369, 4294901760
    %2264 = vmatpush1.xpose.msra.mxu0 %v2263
    %2265 = vmatprep.subr.mxu0 0.0
    %v2266 = vand.u32 %v372, 4294901760
    %2267 = vmatpush1.xpose.msra.mxu0 %v2266
    %2268 = vmatprep.subr.mxu0 0.0
    %v2269 = vand.u32 %v375, 4294901760
    %2270 = vmatpush1.xpose.msra.mxu0 %v2269
    %2271 = vmatprep.subr.mxu0 0.0
    %v2272 = vand.u32 %v378, 4294901760
    %2273 = vmatpush1.xpose.msra.mxu0 %v2272
    %2274 = vmatprep.subr.mxu0 0.0
    %v2275 = vand.u32 %v381, 4294901760
    %2276 = vmatpush1.xpose.msra.mxu0 %v2275
    %2277 = vmatprep.subr.mxu0 0.0
    %v2278 = vand.u32 %v384, 4294901760
    %2279 = vmatpush1.xpose.msra.mxu0 %v2278
    %2280 = vmatprep.subr.mxu0 0.0
    %v2281 = vand.u32 %v387, 4294901760
    %2282 = vmatpush1.xpose.msra.mxu0 %v2281
    %2283 = vmatprep.subr.mxu0 0.0
    %v2284 = vand.u32 %v390, 4294901760
    %2285 = vmatpush1.xpose.msra.mxu0 %v2284
    %2286 = vmatprep.subr.mxu0 0.0
    %v2287 = vand.u32 %v393, 4294901760
    %2288 = vmatpush1.xpose.msra.mxu0 %v2287
    %2289 = vmatprep.subr.mxu0 0.0
    %v2290 = vand.u32 %v396, 4294901760
    %2291 = vmatpush1.xpose.msra.mxu0 %v2290
    %2292 = vmatprep.subr.mxu0 0.0
    %v2293 = vand.u32 %v399, 4294901760
    %2294 = vmatpush1.xpose.msra.mxu0 %v2293
    %2295 = vmatprep.subr.mxu0 0.0
    %v2296 = vand.u32 %v402, 4294901760
    %2297 = vmatpush1.xpose.msra.mxu0 %v2296
    %2298 = vmatprep.subr.mxu0 0.0
    %v2299 = vand.u32 %v405, 4294901760
    %2300 = vmatpush1.xpose.msra.mxu0 %v2299
    %2301 = vmatprep.subr.mxu0 0.0
    %v2302 = vand.u32 %v408, 4294901760
    %2303 = vmatpush1.xpose.msra.mxu0 %v2302
    %2304 = vmatprep.subr.mxu0 0.0
    %v2305 = vand.u32 %v411, 4294901760
    %2306 = vmatpush1.xpose.msra.mxu0 %v2305
    %2307 = vmatprep.subr.mxu0 0.0
    %v2308 = vand.u32 %v414, 4294901760
    %2309 = vmatpush1.xpose.msra.mxu0 %v2308
    %2310 = vmatprep.subr.mxu0 0.0
    %v2311 = vand.u32 %v417, 4294901760
    %2312 = vmatpush1.xpose.msra.mxu0 %v2311
    %2313 = vmatprep.subr.mxu0 0.0
    %v2314 = vand.u32 %v420, 4294901760
    %2315 = vmatpush1.xpose.msra.mxu0 %v2314
    %2316 = vmatprep.subr.mxu0 0.0
    %v2317 = vand.u32 %v423, 4294901760
    %2318 = vmatpush1.xpose.msra.mxu0 %v2317
    %2319 = vmatprep.subr.mxu0 0.0
    %v2320 = vand.u32 %v426, 4294901760
    %2321 = vmatpush1.xpose.msra.mxu0 %v2320
    %2322 = vmatprep.subr.mxu0 0.0
    %v2323 = vand.u32 %v429, 4294901760
    %2324 = vmatpush1.xpose.msra.mxu0 %v2323
    %2325 = vmatprep.subr.mxu0 0.0
    %v2326 = vand.u32 %v432, 4294901760
    %2327 = vmatpush1.xpose.msra.mxu0 %v2326
    %2328 = vmatprep.subr.mxu0 0.0
    %v2329 = vand.u32 %v435, 4294901760
    %2330 = vmatpush1.xpose.msra.mxu0 %v2329
    %2331 = vmatprep.subr.mxu0 0.0
    %v2332 = vand.u32 %v438, 4294901760
    %2333 = vmatpush1.xpose.msra.mxu0 %v2332
    %2334 = vmatprep.subr.mxu0 0.0
    %v2335 = vand.u32 %v441, 4294901760
    %2336 = vmatpush1.xpose.msra.mxu0 %v2335
    %2337 = vmatprep.subr.mxu0 0.0
    %v2338 = vand.u32 %v444, 4294901760
    %2339 = vmatpush1.xpose.msra.mxu0 %v2338
    %2340 = vmatprep.subr.mxu0 0.0
    %v2341 = vand.u32 %v447, 4294901760
    %2342 = vmatpush1.xpose.msra.mxu0 %v2341
    %2343 = vmatprep.subr.mxu0 0.0
    %v2344 = vand.u32 %v450, 4294901760
    %2345 = vmatpush1.xpose.msra.mxu0 %v2344
    %2346 = vmatprep.subr.mxu0 0.0
    %v2347 = vand.u32 %v453, 4294901760
    %2348 = vmatpush1.xpose.msra.mxu0 %v2347
    %2349 = vmatprep.subr.mxu0 0.0
    %v2350 = vand.u32 %v456, 4294901760
    %2351 = vmatpush1.xpose.msra.mxu0 %v2350
    %2352 = vmatprep.subr.mxu0 0.0
    %v2353 = vand.u32 %v459, 4294901760
    %2354 = vmatpush1.xpose.msra.mxu0 %v2353
    %2355 = vmatprep.subr.mxu0 0.0
    %v2356 = vand.u32 %v462, 4294901760
    %2357 = vmatpush1.xpose.msra.mxu0 %v2356
    %2358 = vmatprep.mubr.f32.mxu0 0.0
    %v2359 = vand.u32 %v270, 4294901760
    %2360 = vmatmul.mubr.f32.gmra.mrb[0].mxu0 %v2359
    %v2361 = vpop.f32.mrb[0].mxu0
    %v2362 = vadd.f32 %v2258, %v2361
    %v2363 = vpop.f32.mrb[0].mxu0
    %v2364 = vadd.f32 %v2260, %v2363
    %2365 = vdwg.mxu0
    %2366 = vmatprep.subr.mxu0 0.0
    %v2367 = vand.u32 %v465, 4294901760
    %2368 = vmatpush1.xpose.msra.mxu0 %v2367
    %2369 = vmatprep.subr.mxu0 0.0
    %v2370 = vand.u32 %v468, 4294901760
    %2371 = vmatpush1.xpose.msra.mxu0 %v2370
    %2372 = vmatprep.subr.mxu0 0.0
    %v2373 = vand.u32 %v471, 4294901760
    %2374 = vmatpush1.xpose.msra.mxu0 %v2373
    %2375 = vmatprep.subr.mxu0 0.0
    %v2376 = vand.u32 %v474, 4294901760
    %2377 = vmatpush1.xpose.msra.mxu0 %v2376
    %2378 = vmatprep.subr.mxu0 0.0
    %v2379 = vand.u32 %v477, 4294901760
    %2380 = vmatpush1.xpose.msra.mxu0 %v2379
    %2381 = vmatprep.subr.mxu0 0.0
    %v2382 = vand.u32 %v480, 4294901760
    %2383 = vmatpush1.xpose.msra.mxu0 %v2382
    %2384 = vmatprep.subr.mxu0 0.0
    %v2385 = vand.u32 %v483, 4294901760
    %2386 = vmatpush1.xpose.msra.mxu0 %v2385
    %2387 = vmatprep.subr.mxu0 0.0
    %v2388 = vand.u32 %v486, 4294901760
    %2389 = vmatpush1.xpose.msra.mxu0 %v2388
    %2390 = vmatprep.subr.mxu0 0.0
    %v2391 = vand.u32 %v489, 4294901760
    %2392 = vmatpush1.xpose.msra.mxu0 %v2391
    %2393 = vmatprep.subr.mxu0 0.0
    %v2394 = vand.u32 %v492, 4294901760
    %2395 = vmatpush1.xpose.msra.mxu0 %v2394
    %2396 = vmatprep.subr.mxu0 0.0
    %v2397 = vand.u32 %v495, 4294901760
    %2398 = vmatpush1.xpose.msra.mxu0 %v2397
    %2399 = vmatprep.subr.mxu0 0.0
    %v2400 = vand.u32 %v498, 4294901760
    %2401 = vmatpush1.xpose.msra.mxu0 %v2400
    %2402 = vmatprep.subr.mxu0 0.0
    %v2403 = vand.u32 %v501, 4294901760
    %2404 = vmatpush1.xpose.msra.mxu0 %v2403
    %2405 = vmatprep.subr.mxu0 0.0
    %v2406 = vand.u32 %v504, 4294901760
    %2407 = vmatpush1.xpose.msra.mxu0 %v2406
    %2408 = vmatprep.subr.mxu0 0.0
    %v2409 = vand.u32 %v507, 4294901760
    %2410 = vmatpush1.xpose.msra.mxu0 %v2409
    %2411 = vmatprep.subr.mxu0 0.0
    %v2412 = vand.u32 %v510, 4294901760
    %2413 = vmatpush1.xpose.msra.mxu0 %v2412
    %2414 = vmatprep.subr.mxu0 0.0
    %v2415 = vand.u32 %v513, 4294901760
    %2416 = vmatpush1.xpose.msra.mxu0 %v2415
    %2417 = vmatprep.subr.mxu0 0.0
    %v2418 = vand.u32 %v516, 4294901760
    %2419 = vmatpush1.xpose.msra.mxu0 %v2418
    %2420 = vmatprep.subr.mxu0 0.0
    %v2421 = vand.u32 %v519, 4294901760
    %2422 = vmatpush1.xpose.msra.mxu0 %v2421
    %2423 = vmatprep.subr.mxu0 0.0
    %v2424 = vand.u32 %v522, 4294901760
    %2425 = vmatpush1.xpose.msra.mxu0 %v2424
    %2426 = vmatprep.subr.mxu0 0.0
    %v2427 = vand.u32 %v525, 4294901760
    %2428 = vmatpush1.xpose.msra.mxu0 %v2427
    %2429 = vmatprep.subr.mxu0 0.0
    %v2430 = vand.u32 %v528, 4294901760
    %2431 = vmatpush1.xpose.msra.mxu0 %v2430
    %2432 = vmatprep.subr.mxu0 0.0
    %v2433 = vand.u32 %v531, 4294901760
    %2434 = vmatpush1.xpose.msra.mxu0 %v2433
    %2435 = vmatprep.subr.mxu0 0.0
    %v2436 = vand.u32 %v534, 4294901760
    %2437 = vmatpush1.xpose.msra.mxu0 %v2436
    %2438 = vmatprep.subr.mxu0 0.0
    %v2439 = vand.u32 %v537, 4294901760
    %2440 = vmatpush1.xpose.msra.mxu0 %v2439
    %2441 = vmatprep.subr.mxu0 0.0
    %v2442 = vand.u32 %v540, 4294901760
    %2443 = vmatpush1.xpose.msra.mxu0 %v2442
    %2444 = vmatprep.subr.mxu0 0.0
    %v2445 = vand.u32 %v543, 4294901760
    %2446 = vmatpush1.xpose.msra.mxu0 %v2445
    %2447 = vmatprep.subr.mxu0 0.0
    %v2448 = vand.u32 %v546, 4294901760
    %2449 = vmatpush1.xpose.msra.mxu0 %v2448
    %2450 = vmatprep.subr.mxu0 0.0
    %v2451 = vand.u32 %v549, 4294901760
    %2452 = vmatpush1.xpose.msra.mxu0 %v2451
    %2453 = vmatprep.subr.mxu0 0.0
    %v2454 = vand.u32 %v552, 4294901760
    %2455 = vmatpush1.xpose.msra.mxu0 %v2454
    %2456 = vmatprep.subr.mxu0 0.0
    %v2457 = vand.u32 %v555, 4294901760
    %2458 = vmatpush1.xpose.msra.mxu0 %v2457
    %2459 = vmatprep.subr.mxu0 0.0
    %v2460 = vand.u32 %v558, 4294901760
    %2461 = vmatpush1.xpose.msra.mxu0 %v2460
    %2462 = vmatprep.mubr.f32.mxu0 0.0
    %v2463 = vand.u32 %v270, 4294901760
    %v2464 = vsub.f32 %v270, %v2463
    %v2465 = vand.u32 %v2464, 4294901760
    %v2466 = vsub.f32 %v2464, %v2465
    %v2467 = vand.u32 %v2466, 4294901760
    %2468 = vmatmul.mubr.f32.gmra.mrb[0].mxu0 %v2467
    %v2469 = vpop.f32.mrb[0].mxu0
    %v2470 = vadd.f32 0.0, %v2469
    %v2471 = vpop.f32.mrb[0].mxu0
    %v2472 = vadd.f32 0.0, %v2471
    %2473 = vdwg.mxu0
    %2474 = vmatprep.subr.mxu0 0.0
    %v2475 = vand.u32 %v465, 4294901760
    %v2476 = vsub.f32 %v465, %v2475
    %v2477 = vand.u32 %v2476, 4294901760
    %v2478 = vsub.f32 %v2476, %v2477
    %v2479 = vand.u32 %v2478, 4294901760
    %2480 = vmatpush1.xpose.msra.mxu0 %v2479
    %2481 = vmatprep.subr.mxu0 0.0
    %v2482 = vand.u32 %v468, 4294901760
    %v2483 = vsub.f32 %v468, %v2482
    %v2484 = vand.u32 %v2483, 4294901760
    %v2485 = vsub.f32 %v2483, %v2484
    %v2486 = vand.u32 %v2485, 4294901760
    %2487 = vmatpush1.xpose.msra.mxu0 %v2486
    %2488 = vmatprep.subr.mxu0 0.0
    %v2489 = vand.u32 %v471, 4294901760
    %v2490 = vsub.f32 %v471, %v2489
    %v2491 = vand.u32 %v2490, 4294901760
    %v2492 = vsub.f32 %v2490, %v2491
    %v2493 = vand.u32 %v2492, 4294901760
    %2494 = vmatpush1.xpose.msra.mxu0 %v2493
    %2495 = vmatprep.subr.mxu0 0.0
    %v2496 = vand.u32 %v474, 4294901760
    %v2497 = vsub.f32 %v474, %v2496
    %v2498 = vand.u32 %v2497, 4294901760
    %v2499 = vsub.f32 %v2497, %v2498
    %v2500 = vand.u32 %v2499, 4294901760
    %2501 = vmatpush1.xpose.msra.mxu0 %v2500
    %2502 = vmatprep.subr.mxu0 0.0
    %v2503 = vand.u32 %v477, 4294901760
    %v2504 = vsub.f32 %v477, %v2503
    %v2505 = vand.u32 %v2504, 4294901760
    %v2506 = vsub.f32 %v2504, %v2505
    %v2507 = vand.u32 %v2506, 4294901760
    %2508 = vmatpush1.xpose.msra.mxu0 %v2507
    %2509 = vmatprep.subr.mxu0 0.0
    %v2510 = vand.u32 %v480, 4294901760
    %v2511 = vsub.f32 %v480, %v2510
    %v2512 = vand.u32 %v2511, 4294901760
    %v2513 = vsub.f32 %v2511, %v2512
    %v2514 = vand.u32 %v2513, 4294901760
    %2515 = vmatpush1.xpose.msra.mxu0 %v2514
    %2516 = vmatprep.subr.mxu0 0.0
    %v2517 = vand.u32 %v483, 4294901760
    %v2518 = vsub.f32 %v483, %v2517
    %v2519 = vand.u32 %v2518, 4294901760
    %v2520 = vsub.f32 %v2518, %v2519
    %v2521 = vand.u32 %v2520, 4294901760
    %2522 = vmatpush1.xpose.msra.mxu0 %v2521
    %2523 = vmatprep.subr.mxu0 0.0
    %v2524 = vand.u32 %v486, 4294901760
    %v2525 = vsub.f32 %v486, %v2524
    %v2526 = vand.u32 %v2525, 4294901760
    %v2527 = vsub.f32 %v2525, %v2526
    %v2528 = vand.u32 %v2527, 4294901760
    %2529 = vmatpush1.xpose.msra.mxu0 %v2528
    %2530 = vmatprep.subr.mxu0 0.0
    %v2531 = vand.u32 %v489, 4294901760
    %v2532 = vsub.f32 %v489, %v2531
    %v2533 = vand.u32 %v2532, 4294901760
    %v2534 = vsub.f32 %v2532, %v2533
    %v2535 = vand.u32 %v2534, 4294901760
    %2536 = vmatpush1.xpose.msra.mxu0 %v2535
    %2537 = vmatprep.subr.mxu0 0.0
    %v2538 = vand.u32 %v492, 4294901760
    %v2539 = vsub.f32 %v492, %v2538
    %v2540 = vand.u32 %v2539, 4294901760
    %v2541 = vsub.f32 %v2539, %v2540
    %v2542 = vand.u32 %v2541, 4294901760
    %2543 = vmatpush1.xpose.msra.mxu0 %v2542
    %2544 = vmatprep.subr.mxu0 0.0
    %v2545 = vand.u32 %v495, 4294901760
    %v2546 = vsub.f32 %v495, %v2545
    %v2547 = vand.u32 %v2546, 4294901760
    %v2548 = vsub.f32 %v2546, %v2547
    %v2549 = vand.u32 %v2548, 4294901760
    %2550 = vmatpush1.xpose.msra.mxu0 %v2549
    %2551 = vmatprep.subr.mxu0 0.0
    %v2552 = vand.u32 %v498, 4294901760
    %v2553 = vsub.f32 %v498, %v2552
    %v2554 = vand.u32 %v2553, 4294901760
    %v2555 = vsub.f32 %v2553, %v2554
    %v2556 = vand.u32 %v2555, 4294901760
    %2557 = vmatpush1.xpose.msra.mxu0 %v2556
    %2558 = vmatprep.subr.mxu0 0.0
    %v2559 = vand.u32 %v501, 4294901760
    %v2560 = vsub.f32 %v501, %v2559
    %v2561 = vand.u32 %v2560, 4294901760
    %v2562 = vsub.f32 %v2560, %v2561
    %v2563 = vand.u32 %v2562, 4294901760
    %2564 = vmatpush1.xpose.msra.mxu0 %v2563
    %2565 = vmatprep.subr.mxu0 0.0
    %v2566 = vand.u32 %v504, 4294901760
    %v2567 = vsub.f32 %v504, %v2566
    %v2568 = vand.u32 %v2567, 4294901760
    %v2569 = vsub.f32 %v2567, %v2568
    %v2570 = vand.u32 %v2569, 4294901760
    %2571 = vmatpush1.xpose.msra.mxu0 %v2570
    %2572 = vmatprep.subr.mxu0 0.0
    %v2573 = vand.u32 %v507, 4294901760
    %v2574 = vsub.f32 %v507, %v2573
    %v2575 = vand.u32 %v2574, 4294901760
    %v2576 = vsub.f32 %v2574, %v2575
    %v2577 = vand.u32 %v2576, 4294901760
    %2578 = vmatpush1.xpose.msra.mxu0 %v2577
    %2579 = vmatprep.subr.mxu0 0.0
    %v2580 = vand.u32 %v510, 4294901760
    %v2581 = vsub.f32 %v510, %v2580
    %v2582 = vand.u32 %v2581, 4294901760
    %v2583 = vsub.f32 %v2581, %v2582
    %v2584 = vand.u32 %v2583, 4294901760
    %2585 = vmatpush1.xpose.msra.mxu0 %v2584
    %2586 = vmatprep.subr.mxu0 0.0
    %v2587 = vand.u32 %v513, 4294901760
    %v2588 = vsub.f32 %v513, %v2587
    %v2589 = vand.u32 %v2588, 4294901760
    %v2590 = vsub.f32 %v2588, %v2589
    %v2591 = vand.u32 %v2590, 4294901760
    %2592 = vmatpush1.xpose.msra.mxu0 %v2591
    %2593 = vmatprep.subr.mxu0 0.0
    %v2594 = vand.u32 %v516, 4294901760
    %v2595 = vsub.f32 %v516, %v2594
    %v2596 = vand.u32 %v2595, 4294901760
    %v2597 = vsub.f32 %v2595, %v2596
    %v2598 = vand.u32 %v2597, 4294901760
    %2599 = vmatpush1.xpose.msra.mxu0 %v2598
    %2600 = vmatprep.subr.mxu0 0.0
    %v2601 = vand.u32 %v519, 4294901760
    %v2602 = vsub.f32 %v519, %v2601
    %v2603 = vand.u32 %v2602, 4294901760
    %v2604 = vsub.f32 %v2602, %v2603
    %v2605 = vand.u32 %v2604, 4294901760
    %2606 = vmatpush1.xpose.msra.mxu0 %v2605
    %2607 = vmatprep.subr.mxu0 0.0
    %v2608 = vand.u32 %v522, 4294901760
    %v2609 = vsub.f32 %v522, %v2608
    %v2610 = vand.u32 %v2609, 4294901760
    %v2611 = vsub.f32 %v2609, %v2610
    %v2612 = vand.u32 %v2611, 4294901760
    %2613 = vmatpush1.xpose.msra.mxu0 %v2612
    %2614 = vmatprep.subr.mxu0 0.0
    %v2615 = vand.u32 %v525, 4294901760
    %v2616 = vsub.f32 %v525, %v2615
    %v2617 = vand.u32 %v2616, 4294901760
    %v2618 = vsub.f32 %v2616, %v2617
    %v2619 = vand.u32 %v2618, 4294901760
    %2620 = vmatpush1.xpose.msra.mxu0 %v2619
    %2621 = vmatprep.subr.mxu0 0.0
    %v2622 = vand.u32 %v528, 4294901760
    %v2623 = vsub.f32 %v528, %v2622
    %v2624 = vand.u32 %v2623, 4294901760
    %v2625 = vsub.f32 %v2623, %v2624
    %v2626 = vand.u32 %v2625, 4294901760
    %2627 = vmatpush1.xpose.msra.mxu0 %v2626
    %2628 = vmatprep.subr.mxu0 0.0
    %v2629 = vand.u32 %v531, 4294901760
    %v2630 = vsub.f32 %v531, %v2629
    %v2631 = vand.u32 %v2630, 4294901760
    %v2632 = vsub.f32 %v2630, %v2631
    %v2633 = vand.u32 %v2632, 4294901760
    %2634 = vmatpush1.xpose.msra.mxu0 %v2633
    %2635 = vmatprep.subr.mxu0 0.0
    %v2636 = vand.u32 %v534, 4294901760
    %v2637 = vsub.f32 %v534, %v2636
    %v2638 = vand.u32 %v2637, 4294901760
    %v2639 = vsub.f32 %v2637, %v2638
    %v2640 = vand.u32 %v2639, 4294901760
    %2641 = vmatpush1.xpose.msra.mxu0 %v2640
    %2642 = vmatprep.subr.mxu0 0.0
    %v2643 = vand.u32 %v537, 4294901760
    %v2644 = vsub.f32 %v537, %v2643
    %v2645 = vand.u32 %v2644, 4294901760
    %v2646 = vsub.f32 %v2644, %v2645
    %v2647 = vand.u32 %v2646, 4294901760
    %2648 = vmatpush1.xpose.msra.mxu0 %v2647
    %2649 = vmatprep.subr.mxu0 0.0
    %v2650 = vand.u32 %v540, 4294901760
    %v2651 = vsub.f32 %v540, %v2650
    %v2652 = vand.u32 %v2651, 4294901760
    %v2653 = vsub.f32 %v2651, %v2652
    %v2654 = vand.u32 %v2653, 4294901760
    %2655 = vmatpush1.xpose.msra.mxu0 %v2654
    %2656 = vmatprep.subr.mxu0 0.0
    %v2657 = vand.u32 %v543, 4294901760
    %v2658 = vsub.f32 %v543, %v2657
    %v2659 = vand.u32 %v2658, 4294901760
    %v2660 = vsub.f32 %v2658, %v2659
    %v2661 = vand.u32 %v2660, 4294901760
    %2662 = vmatpush1.xpose.msra.mxu0 %v2661
    %2663 = vmatprep.subr.mxu0 0.0
    %v2664 = vand.u32 %v546, 4294901760
    %v2665 = vsub.f32 %v546, %v2664
    %v2666 = vand.u32 %v2665, 4294901760
    %v2667 = vsub.f32 %v2665, %v2666
    %v2668 = vand.u32 %v2667, 4294901760
    %2669 = vmatpush1.xpose.msra.mxu0 %v2668
    %2670 = vmatprep.subr.mxu0 0.0
    %v2671 = vand.u32 %v549, 4294901760
    %v2672 = vsub.f32 %v549, %v2671
    %v2673 = vand.u32 %v2672, 4294901760
    %v2674 = vsub.f32 %v2672, %v2673
    %v2675 = vand.u32 %v2674, 4294901760
    %2676 = vmatpush1.xpose.msra.mxu0 %v2675
    %2677 = vmatprep.subr.mxu0 0.0
    %v2678 = vand.u32 %v552, 4294901760
    %v2679 = vsub.f32 %v552, %v2678
    %v2680 = vand.u32 %v2679, 4294901760
    %v2681 = vsub.f32 %v2679, %v2680
    %v2682 = vand.u32 %v2681, 4294901760
    %2683 = vmatpush1.xpose.msra.mxu0 %v2682
    %2684 = vmatprep.subr.mxu0 0.0
    %v2685 = vand.u32 %v555, 4294901760
    %v2686 = vsub.f32 %v555, %v2685
    %v2687 = vand.u32 %v2686, 4294901760
    %v2688 = vsub.f32 %v2686, %v2687
    %v2689 = vand.u32 %v2688, 4294901760
    %2690 = vmatpush1.xpose.msra.mxu0 %v2689
    %2691 = vmatprep.subr.mxu0 0.0
    %v2692 = vand.u32 %v558, 4294901760
    %v2693 = vsub.f32 %v558, %v2692
    %v2694 = vand.u32 %v2693, 4294901760
    %v2695 = vsub.f32 %v2693, %v2694
    %v2696 = vand.u32 %v2695, 4294901760
    %2697 = vmatpush1.xpose.msra.mxu0 %v2696
    %2698 = vmatprep.mubr.f32.mxu0 0.0
    %v2699 = vand.u32 %v270, 4294901760
    %2700 = vmatmul.mubr.f32.gmra.mrb[0].mxu0 %v2699
    %v2701 = vpop.f32.mrb[0].mxu0
    %v2702 = vadd.f32 %v2470, %v2701
    %v2703 = vpop.f32.mrb[0].mxu0
    %v2704 = vadd.f32 %v2472, %v2703
    %2705 = vdwg.mxu0
    %2706 = vmatprep.subr.mxu0 0.0
    %v2707 = vand.u32 %v465, 4294901760
    %v2708 = vsub.f32 %v465, %v2707
    %2709 = vmatpush1.xpose.msra.mxu0 %v2708
    %2710 = vmatprep.subr.mxu0 0.0
    %v2711 = vand.u32 %v468, 4294901760
    %v2712 = vsub.f32 %v468, %v2711
    %2713 = vmatpush1.xpose.msra.mxu0 %v2712
    %2714 = vmatprep.subr.mxu0 0.0
    %v2715 = vand.u32 %v471, 4294901760
    %v2716 = vsub.f32 %v471, %v2715
    %2717 = vmatpush1.xpose.msra.mxu0 %v2716
    %2718 = vmatprep.subr.mxu0 0.0
    %v2719 = vand.u32 %v474, 4294901760
    %v2720 = vsub.f32 %v474, %v2719
    %2721 = vmatpush1.xpose.msra.mxu0 %v2720
    %2722 = vmatprep.subr.mxu0 0.0
    %v2723 = vand.u32 %v477, 4294901760
    %v2724 = vsub.f32 %v477, %v2723
    %2725 = vmatpush1.xpose.msra.mxu0 %v2724
    %2726 = vmatprep.subr.mxu0 0.0
    %v2727 = vand.u32 %v480, 4294901760
    %v2728 = vsub.f32 %v480, %v2727
    %2729 = vmatpush1.xpose.msra.mxu0 %v2728
    %2730 = vmatprep.subr.mxu0 0.0
    %v2731 = vand.u32 %v483, 4294901760
    %v2732 = vsub.f32 %v483, %v2731
    %2733 = vmatpush1.xpose.msra.mxu0 %v2732
    %2734 = vmatprep.subr.mxu0 0.0
    %v2735 = vand.u32 %v486, 4294901760
    %v2736 = vsub.f32 %v486, %v2735
    %2737 = vmatpush1.xpose.msra.mxu0 %v2736
    %2738 = vmatprep.subr.mxu0 0.0
    %v2739 = vand.u32 %v489, 4294901760
    %v2740 = vsub.f32 %v489, %v2739
    %2741 = vmatpush1.xpose.msra.mxu0 %v2740
    %2742 = vmatprep.subr.mxu0 0.0
    %v2743 = vand.u32 %v492, 4294901760
    %v2744 = vsub.f32 %v492, %v2743
    %2745 = vmatpush1.xpose.msra.mxu0 %v2744
    %2746 = vmatprep.subr.mxu0 0.0
    %v2747 = vand.u32 %v495, 4294901760
    %v2748 = vsub.f32 %v495, %v2747
    %2749 = vmatpush1.xpose.msra.mxu0 %v2748
    %2750 = vmatprep.subr.mxu0 0.0
    %v2751 = vand.u32 %v498, 4294901760
    %v2752 = vsub.f32 %v498, %v2751
    %2753 = vmatpush1.xpose.msra.mxu0 %v2752
    %2754 = vmatprep.subr.mxu0 0.0
    %v2755 = vand.u32 %v501, 4294901760
    %v2756 = vsub.f32 %v501, %v2755
    %2757 = vmatpush1.xpose.msra.mxu0 %v2756
    %2758 = vmatprep.subr.mxu0 0.0
    %v2759 = vand.u32 %v504, 4294901760
    %v2760 = vsub.f32 %v504, %v2759
    %2761 = vmatpush1.xpose.msra.mxu0 %v2760
    %2762 = vmatprep.subr.mxu0 0.0
    %v2763 = vand.u32 %v507, 4294901760
    %v2764 = vsub.f32 %v507, %v2763
    %2765 = vmatpush1.xpose.msra.mxu0 %v2764
    %2766 = vmatprep.subr.mxu0 0.0
    %v2767 = vand.u32 %v510, 4294901760
    %v2768 = vsub.f32 %v510, %v2767
    %2769 = vmatpush1.xpose.msra.mxu0 %v2768
    %2770 = vmatprep.subr.mxu0 0.0
    %v2771 = vand.u32 %v513, 4294901760
    %v2772 = vsub.f32 %v513, %v2771
    %2773 = vmatpush1.xpose.msra.mxu0 %v2772
    %2774 = vmatprep.subr.mxu0 0.0
    %v2775 = vand.u32 %v516, 4294901760
    %v2776 = vsub.f32 %v516, %v2775
    %2777 = vmatpush1.xpose.msra.mxu0 %v2776
    %2778 = vmatprep.subr.mxu0 0.0
    %v2779 = vand.u32 %v519, 4294901760
    %v2780 = vsub.f32 %v519, %v2779
    %2781 = vmatpush1.xpose.msra.mxu0 %v2780
    %2782 = vmatprep.subr.mxu0 0.0
    %v2783 = vand.u32 %v522, 4294901760
    %v2784 = vsub.f32 %v522, %v2783
    %2785 = vmatpush1.xpose.msra.mxu0 %v2784
    %2786 = vmatprep.subr.mxu0 0.0
    %v2787 = vand.u32 %v525, 4294901760
    %v2788 = vsub.f32 %v525, %v2787
    %2789 = vmatpush1.xpose.msra.mxu0 %v2788
    %2790 = vmatprep.subr.mxu0 0.0
    %v2791 = vand.u32 %v528, 4294901760
    %v2792 = vsub.f32 %v528, %v2791
    %2793 = vmatpush1.xpose.msra.mxu0 %v2792
    %2794 = vmatprep.subr.mxu0 0.0
    %v2795 = vand.u32 %v531, 4294901760
    %v2796 = vsub.f32 %v531, %v2795
    %2797 = vmatpush1.xpose.msra.mxu0 %v2796
    %2798 = vmatprep.subr.mxu0 0.0
    %v2799 = vand.u32 %v534, 4294901760
    %v2800 = vsub.f32 %v534, %v2799
    %2801 = vmatpush1.xpose.msra.mxu0 %v2800
    %2802 = vmatprep.subr.mxu0 0.0
    %v2803 = vand.u32 %v537, 4294901760
    %v2804 = vsub.f32 %v537, %v2803
    %2805 = vmatpush1.xpose.msra.mxu0 %v2804
    %2806 = vmatprep.subr.mxu0 0.0
    %v2807 = vand.u32 %v540, 4294901760
    %v2808 = vsub.f32 %v540, %v2807
    %2809 = vmatpush1.xpose.msra.mxu0 %v2808
    %2810 = vmatprep.subr.mxu0 0.0
    %v2811 = vand.u32 %v543, 4294901760
    %v2812 = vsub.f32 %v543, %v2811
    %2813 = vmatpush1.xpose.msra.mxu0 %v2812
    %2814 = vmatprep.subr.mxu0 0.0
    %v2815 = vand.u32 %v546, 4294901760
    %v2816 = vsub.f32 %v546, %v2815
    %2817 = vmatpush1.xpose.msra.mxu0 %v2816
    %2818 = vmatprep.subr.mxu0 0.0
    %v2819 = vand.u32 %v549, 4294901760
    %v2820 = vsub.f32 %v549, %v2819
    %2821 = vmatpush1.xpose.msra.mxu0 %v2820
    %2822 = vmatprep.subr.mxu0 0.0
    %v2823 = vand.u32 %v552, 4294901760
    %v2824 = vsub.f32 %v552, %v2823
    %2825 = vmatpush1.xpose.msra.mxu0 %v2824
    %2826 = vmatprep.subr.mxu0 0.0
    %v2827 = vand.u32 %v555, 4294901760
    %v2828 = vsub.f32 %v555, %v2827
    %2829 = vmatpush1.xpose.msra.mxu0 %v2828
    %2830 = vmatprep.subr.mxu0 0.0
    %v2831 = vand.u32 %v558, 4294901760
    %v2832 = vsub.f32 %v558, %v2831
    %2833 = vmatpush1.xpose.msra.mxu0 %v2832
    %2834 = vmatprep.mubr.f32.mxu0 0.0
    %v2835 = vand.u32 %v270, 4294901760
    %v2836 = vsub.f32 %v270, %v2835
    %2837 = vmatmul.mubr.f32.gmra.mrb[0].mxu0 %v2836
    %v2838 = vpop.f32.mrb[0].mxu0
    %v2839 = vadd.f32 %v2702, %v2838
    %v2840 = vpop.f32.mrb[0].mxu0
    %v2841 = vadd.f32 %v2704, %v2840
    %2842 = vdwg.mxu0
    %2843 = vmatprep.subr.mxu0 0.0
    %v2844 = vand.u32 %v465, 4294901760
    %2845 = vmatpush1.xpose.msra.mxu0 %v2844
    %2846 = vmatprep.subr.mxu0 0.0
    %v2847 = vand.u32 %v468, 4294901760
    %2848 = vmatpush1.xpose.msra.mxu0 %v2847
    %2849 = vmatprep.subr.mxu0 0.0
    %v2850 = vand.u32 %v471, 4294901760
    %2851 = vmatpush1.xpose.msra.mxu0 %v2850
    %2852 = vmatprep.subr.mxu0 0.0
    %v2853 = vand.u32 %v474, 4294901760
    %2854 = vmatpush1.xpose.msra.mxu0 %v2853
    %2855 = vmatprep.subr.mxu0 0.0
    %v2856 = vand.u32 %v477, 4294901760
    %2857 = vmatpush1.xpose.msra.mxu0 %v2856
    %2858 = vmatprep.subr.mxu0 0.0
    %v2859 = vand.u32 %v480, 4294901760
    %2860 = vmatpush1.xpose.msra.mxu0 %v2859
    %2861 = vmatprep.subr.mxu0 0.0
    %v2862 = vand.u32 %v483, 4294901760
    %2863 = vmatpush1.xpose.msra.mxu0 %v2862
    %2864 = vmatprep.subr.mxu0 0.0
    %v2865 = vand.u32 %v486, 4294901760
    %2866 = vmatpush1.xpose.msra.mxu0 %v2865
    %2867 = vmatprep.subr.mxu0 0.0
    %v2868 = vand.u32 %v489, 4294901760
    %2869 = vmatpush1.xpose.msra.mxu0 %v2868
    %2870 = vmatprep.subr.mxu0 0.0
    %v2871 = vand.u32 %v492, 4294901760
    %2872 = vmatpush1.xpose.msra.mxu0 %v2871
    %2873 = vmatprep.subr.mxu0 0.0
    %v2874 = vand.u32 %v495, 4294901760
    %2875 = vmatpush1.xpose.msra.mxu0 %v2874
    %2876 = vmatprep.subr.mxu0 0.0
    %v2877 = vand.u32 %v498, 4294901760
    %2878 = vmatpush1.xpose.msra.mxu0 %v2877
    %2879 = vmatprep.subr.mxu0 0.0
    %v2880 = vand.u32 %v501, 4294901760
    %2881 = vmatpush1.xpose.msra.mxu0 %v2880
    %2882 = vmatprep.subr.mxu0 0.0
    %v2883 = vand.u32 %v504, 4294901760
    %2884 = vmatpush1.xpose.msra.mxu0 %v2883
    %2885 = vmatprep.subr.mxu0 0.0
    %v2886 = vand.u32 %v507, 4294901760
    %2887 = vmatpush1.xpose.msra.mxu0 %v2886
    %2888 = vmatprep.subr.mxu0 0.0
    %v2889 = vand.u32 %v510, 4294901760
    %2890 = vmatpush1.xpose.msra.mxu0 %v2889
    %2891 = vmatprep.subr.mxu0 0.0
    %v2892 = vand.u32 %v513, 4294901760
    %2893 = vmatpush1.xpose.msra.mxu0 %v2892
    %2894 = vmatprep.subr.mxu0 0.0
    %v2895 = vand.u32 %v516, 4294901760
    %2896 = vmatpush1.xpose.msra.mxu0 %v2895
    %2897 = vmatprep.subr.mxu0 0.0
    %v2898 = vand.u32 %v519, 4294901760
    %2899 = vmatpush1.xpose.msra.mxu0 %v2898
    %2900 = vmatprep.subr.mxu0 0.0
    %v2901 = vand.u32 %v522, 4294901760
    %2902 = vmatpush1.xpose.msra.mxu0 %v2901
    %2903 = vmatprep.subr.mxu0 0.0
    %v2904 = vand.u32 %v525, 4294901760
    %2905 = vmatpush1.xpose.msra.mxu0 %v2904
    %2906 = vmatprep.subr.mxu0 0.0
    %v2907 = vand.u32 %v528, 4294901760
    %2908 = vmatpush1.xpose.msra.mxu0 %v2907
    %2909 = vmatprep.subr.mxu0 0.0
    %v2910 = vand.u32 %v531, 4294901760
    %2911 = vmatpush1.xpose.msra.mxu0 %v2910
    %2912 = vmatprep.subr.mxu0 0.0
    %v2913 = vand.u32 %v534, 4294901760
    %2914 = vmatpush1.xpose.msra.mxu0 %v2913
    %2915 = vmatprep.subr.mxu0 0.0
    %v2916 = vand.u32 %v537, 4294901760
    %2917 = vmatpush1.xpose.msra.mxu0 %v2916
    %2918 = vmatprep.subr.mxu0 0.0
    %v2919 = vand.u32 %v540, 4294901760
    %2920 = vmatpush1.xpose.msra.mxu0 %v2919
    %2921 = vmatprep.subr.mxu0 0.0
    %v2922 = vand.u32 %v543, 4294901760
    %2923 = vmatpush1.xpose.msra.mxu0 %v2922
    %2924 = vmatprep.subr.mxu0 0.0
    %v2925 = vand.u32 %v546, 4294901760
    %2926 = vmatpush1.xpose.msra.mxu0 %v2925
    %2927 = vmatprep.subr.mxu0 0.0
    %v2928 = vand.u32 %v549, 4294901760
    %2929 = vmatpush1.xpose.msra.mxu0 %v2928
    %2930 = vmatprep.subr.mxu0 0.0
    %v2931 = vand.u32 %v552, 4294901760
    %2932 = vmatpush1.xpose.msra.mxu0 %v2931
    %2933 = vmatprep.subr.mxu0 0.0
    %v2934 = vand.u32 %v555, 4294901760
    %2935 = vmatpush1.xpose.msra.mxu0 %v2934
    %2936 = vmatprep.subr.mxu0 0.0
    %v2937 = vand.u32 %v558, 4294901760
    %2938 = vmatpush1.xpose.msra.mxu0 %v2937
    %2939 = vmatprep.mubr.f32.mxu0 0.0
    %v2940 = vand.u32 %v270, 4294901760
    %v2941 = vsub.f32 %v270, %v2940
    %v2942 = vand.u32 %v2941, 4294901760
    %2943 = vmatmul.mubr.f32.gmra.mrb[0].mxu0 %v2942
    %v2944 = vpop.f32.mrb[0].mxu0
    %v2945 = vadd.f32 %v2839, %v2944
    %v2946 = vpop.f32.mrb[0].mxu0
    %v2947 = vadd.f32 %v2841, %v2946
    %2948 = vdwg.mxu0
    %2949 = vmatprep.subr.mxu0 0.0
    %v2950 = vand.u32 %v465, 4294901760
    %v2951 = vsub.f32 %v465, %v2950
    %v2952 = vand.u32 %v2951, 4294901760
    %2953 = vmatpush1.xpose.msra.mxu0 %v2952
    %2954 = vmatprep.subr.mxu0 0.0
    %v2955 = vand.u32 %v468, 4294901760
    %v2956 = vsub.f32 %v468, %v2955
    %v2957 = vand.u32 %v2956, 4294901760
    %2958 = vmatpush1.xpose.msra.mxu0 %v2957
    %2959 = vmatprep.subr.mxu0 0.0
    %v2960 = vand.u32 %v471, 4294901760
    %v2961 = vsub.f32 %v471, %v2960
    %v2962 = vand.u32 %v2961, 4294901760
    %2963 = vmatpush1.xpose.msra.mxu0 %v2962
    %2964 = vmatprep.subr.mxu0 0.0
    %v2965 = vand.u32 %v474, 4294901760
    %v2966 = vsub.f32 %v474, %v2965
    %v2967 = vand.u32 %v2966, 4294901760
    %2968 = vmatpush1.xpose.msra.mxu0 %v2967
    %2969 = vmatprep.subr.mxu0 0.0
    %v2970 = vand.u32 %v477, 4294901760
    %v2971 = vsub.f32 %v477, %v2970
    %v2972 = vand.u32 %v2971, 4294901760
    %2973 = vmatpush1.xpose.msra.mxu0 %v2972
    %2974 = vmatprep.subr.mxu0 0.0
    %v2975 = vand.u32 %v480, 4294901760
    %v2976 = vsub.f32 %v480, %v2975
    %v2977 = vand.u32 %v2976, 4294901760
    %2978 = vmatpush1.xpose.msra.mxu0 %v2977
    %2979 = vmatprep.subr.mxu0 0.0
    %v2980 = vand.u32 %v483, 4294901760
    %v2981 = vsub.f32 %v483, %v2980
    %v2982 = vand.u32 %v2981, 4294901760
    %2983 = vmatpush1.xpose.msra.mxu0 %v2982
    %2984 = vmatprep.subr.mxu0 0.0
    %v2985 = vand.u32 %v486, 4294901760
    %v2986 = vsub.f32 %v486, %v2985
    %v2987 = vand.u32 %v2986, 4294901760
    %2988 = vmatpush1.xpose.msra.mxu0 %v2987
    %2989 = vmatprep.subr.mxu0 0.0
    %v2990 = vand.u32 %v489, 4294901760
    %v2991 = vsub.f32 %v489, %v2990
    %v2992 = vand.u32 %v2991, 4294901760
    %2993 = vmatpush1.xpose.msra.mxu0 %v2992
    %2994 = vmatprep.subr.mxu0 0.0
    %v2995 = vand.u32 %v492, 4294901760
    %v2996 = vsub.f32 %v492, %v2995
    %v2997 = vand.u32 %v2996, 4294901760
    %2998 = vmatpush1.xpose.msra.mxu0 %v2997
    %2999 = vmatprep.subr.mxu0 0.0
    %v3000 = vand.u32 %v495, 4294901760
    %v3001 = vsub.f32 %v495, %v3000
    %v3002 = vand.u32 %v3001, 4294901760
    %3003 = vmatpush1.xpose.msra.mxu0 %v3002
    %3004 = vmatprep.subr.mxu0 0.0
    %v3005 = vand.u32 %v498, 4294901760
    %v3006 = vsub.f32 %v498, %v3005
    %v3007 = vand.u32 %v3006, 4294901760
    %3008 = vmatpush1.xpose.msra.mxu0 %v3007
    %3009 = vmatprep.subr.mxu0 0.0
    %v3010 = vand.u32 %v501, 4294901760
    %v3011 = vsub.f32 %v501, %v3010
    %v3012 = vand.u32 %v3011, 4294901760
    %3013 = vmatpush1.xpose.msra.mxu0 %v3012
    %3014 = vmatprep.subr.mxu0 0.0
    %v3015 = vand.u32 %v504, 4294901760
    %v3016 = vsub.f32 %v504, %v3015
    %v3017 = vand.u32 %v3016, 4294901760
    %3018 = vmatpush1.xpose.msra.mxu0 %v3017
    %3019 = vmatprep.subr.mxu0 0.0
    %v3020 = vand.u32 %v507, 4294901760
    %v3021 = vsub.f32 %v507, %v3020
    %v3022 = vand.u32 %v3021, 4294901760
    %3023 = vmatpush1.xpose.msra.mxu0 %v3022
    %3024 = vmatprep.subr.mxu0 0.0
    %v3025 = vand.u32 %v510, 4294901760
    %v3026 = vsub.f32 %v510, %v3025
    %v3027 = vand.u32 %v3026, 4294901760
    %3028 = vmatpush1.xpose.msra.mxu0 %v3027
    %3029 = vmatprep.subr.mxu0 0.0
    %v3030 = vand.u32 %v513, 4294901760
    %v3031 = vsub.f32 %v513, %v3030
    %v3032 = vand.u32 %v3031, 4294901760
    %3033 = vmatpush1.xpose.msra.mxu0 %v3032
    %3034 = vmatprep.subr.mxu0 0.0
    %v3035 = vand.u32 %v516, 4294901760
    %v3036 = vsub.f32 %v516, %v3035
    %v3037 = vand.u32 %v3036, 4294901760
    %3038 = vmatpush1.xpose.msra.mxu0 %v3037
    %3039 = vmatprep.subr.mxu0 0.0
    %v3040 = vand.u32 %v519, 4294901760
    %v3041 = vsub.f32 %v519, %v3040
    %v3042 = vand.u32 %v3041, 4294901760
    %3043 = vmatpush1.xpose.msra.mxu0 %v3042
    %3044 = vmatprep.subr.mxu0 0.0
    %v3045 = vand.u32 %v522, 4294901760
    %v3046 = vsub.f32 %v522, %v3045
    %v3047 = vand.u32 %v3046, 4294901760
    %3048 = vmatpush1.xpose.msra.mxu0 %v3047
    %3049 = vmatprep.subr.mxu0 0.0
    %v3050 = vand.u32 %v525, 4294901760
    %v3051 = vsub.f32 %v525, %v3050
    %v3052 = vand.u32 %v3051, 4294901760
    %3053 = vmatpush1.xpose.msra.mxu0 %v3052
    %3054 = vmatprep.subr.mxu0 0.0
    %v3055 = vand.u32 %v528, 4294901760
    %v3056 = vsub.f32 %v528, %v3055
    %v3057 = vand.u32 %v3056, 4294901760
    %3058 = vmatpush1.xpose.msra.mxu0 %v3057
    %3059 = vmatprep.subr.mxu0 0.0
    %v3060 = vand.u32 %v531, 4294901760
    %v3061 = vsub.f32 %v531, %v3060
    %v3062 = vand.u32 %v3061, 4294901760
    %3063 = vmatpush1.xpose.msra.mxu0 %v3062
    %3064 = vmatprep.subr.mxu0 0.0
    %v3065 = vand.u32 %v534, 4294901760
    %v3066 = vsub.f32 %v534, %v3065
    %v3067 = vand.u32 %v3066, 4294901760
    %3068 = vmatpush1.xpose.msra.mxu0 %v3067
    %3069 = vmatprep.subr.mxu0 0.0
    %v3070 = vand.u32 %v537, 4294901760
    %v3071 = vsub.f32 %v537, %v3070
    %v3072 = vand.u32 %v3071, 4294901760
    %3073 = vmatpush1.xpose.msra.mxu0 %v3072
    %3074 = vmatprep.subr.mxu0 0.0
    %v3075 = vand.u32 %v540, 4294901760
    %v3076 = vsub.f32 %v540, %v3075
    %v3077 = vand.u32 %v3076, 4294901760
    %3078 = vmatpush1.xpose.msra.mxu0 %v3077
    %3079 = vmatprep.subr.mxu0 0.0
    %v3080 = vand.u32 %v543, 4294901760
    %v3081 = vsub.f32 %v543, %v3080
    %v3082 = vand.u32 %v3081, 4294901760
    %3083 = vmatpush1.xpose.msra.mxu0 %v3082
    %3084 = vmatprep.subr.mxu0 0.0
    %v3085 = vand.u32 %v546, 4294901760
    %v3086 = vsub.f32 %v546, %v3085
    %v3087 = vand.u32 %v3086, 4294901760
    %3088 = vmatpush1.xpose.msra.mxu0 %v3087
    %3089 = vmatprep.subr.mxu0 0.0
    %v3090 = vand.u32 %v549, 4294901760
    %v3091 = vsub.f32 %v549, %v3090
    %v3092 = vand.u32 %v3091, 4294901760
    %3093 = vmatpush1.xpose.msra.mxu0 %v3092
    %3094 = vmatprep.subr.mxu0 0.0
    %v3095 = vand.u32 %v552, 4294901760
    %v3096 = vsub.f32 %v552, %v3095
    %v3097 = vand.u32 %v3096, 4294901760
    %3098 = vmatpush1.xpose.msra.mxu0 %v3097
    %3099 = vmatprep.subr.mxu0 0.0
    %v3100 = vand.u32 %v555, 4294901760
    %v3101 = vsub.f32 %v555, %v3100
    %v3102 = vand.u32 %v3101, 4294901760
    %3103 = vmatpush1.xpose.msra.mxu0 %v3102
    %3104 = vmatprep.subr.mxu0 0.0
    %v3105 = vand.u32 %v558, 4294901760
    %v3106 = vsub.f32 %v558, %v3105
    %v3107 = vand.u32 %v3106, 4294901760
    %3108 = vmatpush1.xpose.msra.mxu0 %v3107
    %3109 = vmatprep.mubr.f32.mxu0 0.0
    %v3110 = vand.u32 %v270, 4294901760
    %3111 = vmatmul.mubr.f32.gmra.mrb[0].mxu0 %v3110
    %v3112 = vpop.f32.mrb[0].mxu0
    %v3113 = vadd.f32 %v2945, %v3112
    %v3114 = vpop.f32.mrb[0].mxu0
    %v3115 = vadd.f32 %v2947, %v3114
    %3116 = vdwg.mxu0
    %3117 = vmatprep.subr.mxu0 0.0
    %v3118 = vand.u32 %v465, 4294901760
    %3119 = vmatpush1.xpose.msra.mxu0 %v3118
    %3120 = vmatprep.subr.mxu0 0.0
    %v3121 = vand.u32 %v468, 4294901760
    %3122 = vmatpush1.xpose.msra.mxu0 %v3121
    %3123 = vmatprep.subr.mxu0 0.0
    %v3124 = vand.u32 %v471, 4294901760
    %3125 = vmatpush1.xpose.msra.mxu0 %v3124
    %3126 = vmatprep.subr.mxu0 0.0
    %v3127 = vand.u32 %v474, 4294901760
    %3128 = vmatpush1.xpose.msra.mxu0 %v3127
    %3129 = vmatprep.subr.mxu0 0.0
    %v3130 = vand.u32 %v477, 4294901760
    %3131 = vmatpush1.xpose.msra.mxu0 %v3130
    %3132 = vmatprep.subr.mxu0 0.0
    %v3133 = vand.u32 %v480, 4294901760
    %3134 = vmatpush1.xpose.msra.mxu0 %v3133
    %3135 = vmatprep.subr.mxu0 0.0
    %v3136 = vand.u32 %v483, 4294901760
    %3137 = vmatpush1.xpose.msra.mxu0 %v3136
    %3138 = vmatprep.subr.mxu0 0.0
    %v3139 = vand.u32 %v486, 4294901760
    %3140 = vmatpush1.xpose.msra.mxu0 %v3139
    %3141 = vmatprep.subr.mxu0 0.0
    %v3142 = vand.u32 %v489, 4294901760
    %3143 = vmatpush1.xpose.msra.mxu0 %v3142
    %3144 = vmatprep.subr.mxu0 0.0
    %v3145 = vand.u32 %v492, 4294901760
    %3146 = vmatpush1.xpose.msra.mxu0 %v3145
    %3147 = vmatprep.subr.mxu0 0.0
    %v3148 = vand.u32 %v495, 4294901760
    %3149 = vmatpush1.xpose.msra.mxu0 %v3148
    %3150 = vmatprep.subr.mxu0 0.0
    %v3151 = vand.u32 %v498, 4294901760
    %3152 = vmatpush1.xpose.msra.mxu0 %v3151
    %3153 = vmatprep.subr.mxu0 0.0
    %v3154 = vand.u32 %v501, 4294901760
    %3155 = vmatpush1.xpose.msra.mxu0 %v3154
    %3156 = vmatprep.subr.mxu0 0.0
    %v3157 = vand.u32 %v504, 4294901760
    %3158 = vmatpush1.xpose.msra.mxu0 %v3157
    %3159 = vmatprep.subr.mxu0 0.0
    %v3160 = vand.u32 %v507, 4294901760
    %3161 = vmatpush1.xpose.msra.mxu0 %v3160
    %3162 = vmatprep.subr.mxu0 0.0
    %v3163 = vand.u32 %v510, 4294901760
    %3164 = vmatpush1.xpose.msra.mxu0 %v3163
    %3165 = vmatprep.subr.mxu0 0.0
    %v3166 = vand.u32 %v513, 4294901760
    %3167 = vmatpush1.xpose.msra.mxu0 %v3166
    %3168 = vmatprep.subr.mxu0 0.0
    %v3169 = vand.u32 %v516, 4294901760
    %3170 = vmatpush1.xpose.msra.mxu0 %v3169
    %3171 = vmatprep.subr.mxu0 0.0
    %v3172 = vand.u32 %v519, 4294901760
    %3173 = vmatpush1.xpose.msra.mxu0 %v3172
    %3174 = vmatprep.subr.mxu0 0.0
    %v3175 = vand.u32 %v522, 4294901760
    %3176 = vmatpush1.xpose.msra.mxu0 %v3175
    %3177 = vmatprep.subr.mxu0 0.0
    %v3178 = vand.u32 %v525, 4294901760
    %3179 = vmatpush1.xpose.msra.mxu0 %v3178
    %3180 = vmatprep.subr.mxu0 0.0
    %v3181 = vand.u32 %v528, 4294901760
    %3182 = vmatpush1.xpose.msra.mxu0 %v3181
    %3183 = vmatprep.subr.mxu0 0.0
    %v3184 = vand.u32 %v531, 4294901760
    %3185 = vmatpush1.xpose.msra.mxu0 %v3184
    %3186 = vmatprep.subr.mxu0 0.0
    %v3187 = vand.u32 %v534, 4294901760
    %3188 = vmatpush1.xpose.msra.mxu0 %v3187
    %3189 = vmatprep.subr.mxu0 0.0
    %v3190 = vand.u32 %v537, 4294901760
    %3191 = vmatpush1.xpose.msra.mxu0 %v3190
    %3192 = vmatprep.subr.mxu0 0.0
    %v3193 = vand.u32 %v540, 4294901760
    %3194 = vmatpush1.xpose.msra.mxu0 %v3193
    %3195 = vmatprep.subr.mxu0 0.0
    %v3196 = vand.u32 %v543, 4294901760
    %3197 = vmatpush1.xpose.msra.mxu0 %v3196
    %3198 = vmatprep.subr.mxu0 0.0
    %v3199 = vand.u32 %v546, 4294901760
    %3200 = vmatpush1.xpose.msra.mxu0 %v3199
    %3201 = vmatprep.subr.mxu0 0.0
    %v3202 = vand.u32 %v549, 4294901760
    %3203 = vmatpush1.xpose.msra.mxu0 %v3202
    %3204 = vmatprep.subr.mxu0 0.0
    %v3205 = vand.u32 %v552, 4294901760
    %3206 = vmatpush1.xpose.msra.mxu0 %v3205
    %3207 = vmatprep.subr.mxu0 0.0
    %v3208 = vand.u32 %v555, 4294901760
    %3209 = vmatpush1.xpose.msra.mxu0 %v3208
    %3210 = vmatprep.subr.mxu0 0.0
    %v3211 = vand.u32 %v558, 4294901760
    %3212 = vmatpush1.xpose.msra.mxu0 %v3211
    %3213 = vmatprep.mubr.f32.mxu0 0.0
    %v3214 = vand.u32 %v270, 4294901760
    %3215 = vmatmul.mubr.f32.gmra.mrb[0].mxu0 %v3214
    %v3216 = vpop.f32.mrb[0].mxu0
    %v3217 = vadd.f32 %v3113, %v3216
    %v3218 = vpop.f32.mrb[0].mxu0
    %v3219 = vadd.f32 %v3115, %v3218
    %3220 = vdwg.mxu0
    %3221 = vmatprep.subr.mxu0 0.0
    %v3222 = vand.u32 %v561, 4294901760
    %3223 = vmatpush1.xpose.msra.mxu0 %v3222
    %3224 = vmatprep.subr.mxu0 0.0
    %v3225 = vand.u32 %v564, 4294901760
    %3226 = vmatpush1.xpose.msra.mxu0 %v3225
    %3227 = vmatprep.subr.mxu0 0.0
    %v3228 = vand.u32 %v567, 4294901760
    %3229 = vmatpush1.xpose.msra.mxu0 %v3228
    %3230 = vmatprep.subr.mxu0 0.0
    %v3231 = vand.u32 %v570, 4294901760
    %3232 = vmatpush1.xpose.msra.mxu0 %v3231
    %3233 = vmatprep.subr.mxu0 0.0
    %v3234 = vand.u32 %v573, 4294901760
    %3235 = vmatpush1.xpose.msra.mxu0 %v3234
    %3236 = vmatprep.subr.mxu0 0.0
    %v3237 = vand.u32 %v576, 4294901760
    %3238 = vmatpush1.xpose.msra.mxu0 %v3237
    %3239 = vmatprep.subr.mxu0 0.0
    %v3240 = vand.u32 %v579, 4294901760
    %3241 = vmatpush1.xpose.msra.mxu0 %v3240
    %3242 = vmatprep.subr.mxu0 0.0
    %v3243 = vand.u32 %v582, 4294901760
    %3244 = vmatpush1.xpose.msra.mxu0 %v3243
    %3245 = vmatprep.subr.mxu0 0.0
    %v3246 = vand.u32 %v585, 4294901760
    %3247 = vmatpush1.xpose.msra.mxu0 %v3246
    %3248 = vmatprep.subr.mxu0 0.0
    %v3249 = vand.u32 %v588, 4294901760
    %3250 = vmatpush1.xpose.msra.mxu0 %v3249
    %3251 = vmatprep.subr.mxu0 0.0
    %v3252 = vand.u32 %v591, 4294901760
    %3253 = vmatpush1.xpose.msra.mxu0 %v3252
    %3254 = vmatprep.subr.mxu0 0.0
    %v3255 = vand.u32 %v594, 4294901760
    %3256 = vmatpush1.xpose.msra.mxu0 %v3255
    %3257 = vmatprep.subr.mxu0 0.0
    %v3258 = vand.u32 %v597, 4294901760
    %3259 = vmatpush1.xpose.msra.mxu0 %v3258
    %3260 = vmatprep.subr.mxu0 0.0
    %v3261 = vand.u32 %v600, 4294901760
    %3262 = vmatpush1.xpose.msra.mxu0 %v3261
    %3263 = vmatprep.subr.mxu0 0.0
    %v3264 = vand.u32 %v603, 4294901760
    %3265 = vmatpush1.xpose.msra.mxu0 %v3264
    %3266 = vmatprep.subr.mxu0 0.0
    %v3267 = vand.u32 %v606, 4294901760
    %3268 = vmatpush1.xpose.msra.mxu0 %v3267
    %3269 = vmatprep.subr.mxu0 0.0
    %v3270 = vand.u32 %v609, 4294901760
    %3271 = vmatpush1.xpose.msra.mxu0 %v3270
    %3272 = vmatprep.subr.mxu0 0.0
    %v3273 = vand.u32 %v612, 4294901760
    %3274 = vmatpush1.xpose.msra.mxu0 %v3273
    %3275 = vmatprep.subr.mxu0 0.0
    %v3276 = vand.u32 %v615, 4294901760
    %3277 = vmatpush1.xpose.msra.mxu0 %v3276
    %3278 = vmatprep.subr.mxu0 0.0
    %v3279 = vand.u32 %v618, 4294901760
    %3280 = vmatpush1.xpose.msra.mxu0 %v3279
    %3281 = vmatprep.subr.mxu0 0.0
    %v3282 = vand.u32 %v621, 4294901760
    %3283 = vmatpush1.xpose.msra.mxu0 %v3282
    %3284 = vmatprep.subr.mxu0 0.0
    %v3285 = vand.u32 %v624, 4294901760
    %3286 = vmatpush1.xpose.msra.mxu0 %v3285
    %3287 = vmatprep.subr.mxu0 0.0
    %v3288 = vand.u32 %v627, 4294901760
    %3289 = vmatpush1.xpose.msra.mxu0 %v3288
    %3290 = vmatprep.subr.mxu0 0.0
    %v3291 = vand.u32 %v630, 4294901760
    %3292 = vmatpush1.xpose.msra.mxu0 %v3291
    %3293 = vmatprep.subr.mxu0 0.0
    %v3294 = vand.u32 %v633, 4294901760
    %3295 = vmatpush1.xpose.msra.mxu0 %v3294
    %3296 = vmatprep.subr.mxu0 0.0
    %v3297 = vand.u32 %v636, 4294901760
    %3298 = vmatpush1.xpose.msra.mxu0 %v3297
    %3299 = vmatprep.subr.mxu0 0.0
    %v3300 = vand.u32 %v639, 4294901760
    %3301 = vmatpush1.xpose.msra.mxu0 %v3300
    %3302 = vmatprep.subr.mxu0 0.0
    %v3303 = vand.u32 %v642, 4294901760
    %3304 = vmatpush1.xpose.msra.mxu0 %v3303
    %3305 = vmatprep.subr.mxu0 0.0
    %v3306 = vand.u32 %v645, 4294901760
    %3307 = vmatpush1.xpose.msra.mxu0 %v3306
    %3308 = vmatprep.subr.mxu0 0.0
    %v3309 = vand.u32 %v648, 4294901760
    %3310 = vmatpush1.xpose.msra.mxu0 %v3309
    %3311 = vmatprep.subr.mxu0 0.0
    %v3312 = vand.u32 %v651, 4294901760
    %3313 = vmatpush1.xpose.msra.mxu0 %v3312
    %3314 = vmatprep.subr.mxu0 0.0
    %v3315 = vand.u32 %v654, 4294901760
    %3316 = vmatpush1.xpose.msra.mxu0 %v3315
    %3317 = vmatprep.mubr.f32.mxu0 0.0
    %v3318 = vand.u32 %v270, 4294901760
    %v3319 = vsub.f32 %v270, %v3318
    %v3320 = vand.u32 %v3319, 4294901760
    %v3321 = vsub.f32 %v3319, %v3320
    %v3322 = vand.u32 %v3321, 4294901760
    %3323 = vmatmul.mubr.f32.gmra.mrb[0].mxu0 %v3322
    %v3324 = vpop.f32.mrb[0].mxu0
    %v3325 = vadd.f32 0.0, %v3324
    %v3326 = vpop.f32.mrb[0].mxu0
    %v3327 = vadd.f32 0.0, %v3326
    %3328 = vdwg.mxu0
    %3329 = vmatprep.subr.mxu0 0.0
    %v3330 = vand.u32 %v561, 4294901760
    %v3331 = vsub.f32 %v561, %v3330
    %v3332 = vand.u32 %v3331, 4294901760
    %v3333 = vsub.f32 %v3331, %v3332
    %v3334 = vand.u32 %v3333, 4294901760
    %3335 = vmatpush1.xpose.msra.mxu0 %v3334
    %3336 = vmatprep.subr.mxu0 0.0
    %v3337 = vand.u32 %v564, 4294901760
    %v3338 = vsub.f32 %v564, %v3337
    %v3339 = vand.u32 %v3338, 4294901760
    %v3340 = vsub.f32 %v3338, %v3339
    %v3341 = vand.u32 %v3340, 4294901760
    %3342 = vmatpush1.xpose.msra.mxu0 %v3341
    %3343 = vmatprep.subr.mxu0 0.0
    %v3344 = vand.u32 %v567, 4294901760
    %v3345 = vsub.f32 %v567, %v3344
    %v3346 = vand.u32 %v3345, 4294901760
    %v3347 = vsub.f32 %v3345, %v3346
    %v3348 = vand.u32 %v3347, 4294901760
    %3349 = vmatpush1.xpose.msra.mxu0 %v3348
    %3350 = vmatprep.subr.mxu0 0.0
    %v3351 = vand.u32 %v570, 4294901760
    %v3352 = vsub.f32 %v570, %v3351
    %v3353 = vand.u32 %v3352, 4294901760
    %v3354 = vsub.f32 %v3352, %v3353
    %v3355 = vand.u32 %v3354, 4294901760
    %3356 = vmatpush1.xpose.msra.mxu0 %v3355
    %3357 = vmatprep.subr.mxu0 0.0
    %v3358 = vand.u32 %v573, 4294901760
    %v3359 = vsub.f32 %v573, %v3358
    %v3360 = vand.u32 %v3359, 4294901760
    %v3361 = vsub.f32 %v3359, %v3360
    %v3362 = vand.u32 %v3361, 4294901760
    %3363 = vmatpush1.xpose.msra.mxu0 %v3362
    %3364 = vmatprep.subr.mxu0 0.0
    %v3365 = vand.u32 %v576, 4294901760
    %v3366 = vsub.f32 %v576, %v3365
    %v3367 = vand.u32 %v3366, 4294901760
    %v3368 = vsub.f32 %v3366, %v3367
    %v3369 = vand.u32 %v3368, 4294901760
    %3370 = vmatpush1.xpose.msra.mxu0 %v3369
    %3371 = vmatprep.subr.mxu0 0.0
    %v3372 = vand.u32 %v579, 4294901760
    %v3373 = vsub.f32 %v579, %v3372
    %v3374 = vand.u32 %v3373, 4294901760
    %v3375 = vsub.f32 %v3373, %v3374
    %v3376 = vand.u32 %v3375, 4294901760
    %3377 = vmatpush1.xpose.msra.mxu0 %v3376
    %3378 = vmatprep.subr.mxu0 0.0
    %v3379 = vand.u32 %v582, 4294901760
    %v3380 = vsub.f32 %v582, %v3379
    %v3381 = vand.u32 %v3380, 4294901760
    %v3382 = vsub.f32 %v3380, %v3381
    %v3383 = vand.u32 %v3382, 4294901760
    %3384 = vmatpush1.xpose.msra.mxu0 %v3383
    %3385 = vmatprep.subr.mxu0 0.0
    %v3386 = vand.u32 %v585, 4294901760
    %v3387 = vsub.f32 %v585, %v3386
    %v3388 = vand.u32 %v3387, 4294901760
    %v3389 = vsub.f32 %v3387, %v3388
    %v3390 = vand.u32 %v3389, 4294901760
    %3391 = vmatpush1.xpose.msra.mxu0 %v3390
    %3392 = vmatprep.subr.mxu0 0.0
    %v3393 = vand.u32 %v588, 4294901760
    %v3394 = vsub.f32 %v588, %v3393
    %v3395 = vand.u32 %v3394, 4294901760
    %v3396 = vsub.f32 %v3394, %v3395
    %v3397 = vand.u32 %v3396, 4294901760
    %3398 = vmatpush1.xpose.msra.mxu0 %v3397
    %3399 = vmatprep.subr.mxu0 0.0
    %v3400 = vand.u32 %v591, 4294901760
    %v3401 = vsub.f32 %v591, %v3400
    %v3402 = vand.u32 %v3401, 4294901760
    %v3403 = vsub.f32 %v3401, %v3402
    %v3404 = vand.u32 %v3403, 4294901760
    %3405 = vmatpush1.xpose.msra.mxu0 %v3404
    %3406 = vmatprep.subr.mxu0 0.0
    %v3407 = vand.u32 %v594, 4294901760
    %v3408 = vsub.f32 %v594, %v3407
    %v3409 = vand.u32 %v3408, 4294901760
    %v3410 = vsub.f32 %v3408, %v3409
    %v3411 = vand.u32 %v3410, 4294901760
    %3412 = vmatpush1.xpose.msra.mxu0 %v3411
    %3413 = vmatprep.subr.mxu0 0.0
    %v3414 = vand.u32 %v597, 4294901760
    %v3415 = vsub.f32 %v597, %v3414
    %v3416 = vand.u32 %v3415, 4294901760
    %v3417 = vsub.f32 %v3415, %v3416
    %v3418 = vand.u32 %v3417, 4294901760
    %3419 = vmatpush1.xpose.msra.mxu0 %v3418
    %3420 = vmatprep.subr.mxu0 0.0
    %v3421 = vand.u32 %v600, 4294901760
    %v3422 = vsub.f32 %v600, %v3421
    %v3423 = vand.u32 %v3422, 4294901760
    %v3424 = vsub.f32 %v3422, %v3423
    %v3425 = vand.u32 %v3424, 4294901760
    %3426 = vmatpush1.xpose.msra.mxu0 %v3425
    %3427 = vmatprep.subr.mxu0 0.0
    %v3428 = vand.u32 %v603, 4294901760
    %v3429 = vsub.f32 %v603, %v3428
    %v3430 = vand.u32 %v3429, 4294901760
    %v3431 = vsub.f32 %v3429, %v3430
    %v3432 = vand.u32 %v3431, 4294901760
    %3433 = vmatpush1.xpose.msra.mxu0 %v3432
    %3434 = vmatprep.subr.mxu0 0.0
    %v3435 = vand.u32 %v606, 4294901760
    %v3436 = vsub.f32 %v606, %v3435
    %v3437 = vand.u32 %v3436, 4294901760
    %v3438 = vsub.f32 %v3436, %v3437
    %v3439 = vand.u32 %v3438, 4294901760
    %3440 = vmatpush1.xpose.msra.mxu0 %v3439
    %3441 = vmatprep.subr.mxu0 0.0
    %v3442 = vand.u32 %v609, 4294901760
    %v3443 = vsub.f32 %v609, %v3442
    %v3444 = vand.u32 %v3443, 4294901760
    %v3445 = vsub.f32 %v3443, %v3444
    %v3446 = vand.u32 %v3445, 4294901760
    %3447 = vmatpush1.xpose.msra.mxu0 %v3446
    %3448 = vmatprep.subr.mxu0 0.0
    %v3449 = vand.u32 %v612, 4294901760
    %v3450 = vsub.f32 %v612, %v3449
    %v3451 = vand.u32 %v3450, 4294901760
    %v3452 = vsub.f32 %v3450, %v3451
    %v3453 = vand.u32 %v3452, 4294901760
    %3454 = vmatpush1.xpose.msra.mxu0 %v3453
    %3455 = vmatprep.subr.mxu0 0.0
    %v3456 = vand.u32 %v615, 4294901760
    %v3457 = vsub.f32 %v615, %v3456
    %v3458 = vand.u32 %v3457, 4294901760
    %v3459 = vsub.f32 %v3457, %v3458
    %v3460 = vand.u32 %v3459, 4294901760
    %3461 = vmatpush1.xpose.msra.mxu0 %v3460
    %3462 = vmatprep.subr.mxu0 0.0
    %v3463 = vand.u32 %v618, 4294901760
    %v3464 = vsub.f32 %v618, %v3463
    %v3465 = vand.u32 %v3464, 4294901760
    %v3466 = vsub.f32 %v3464, %v3465
    %v3467 = vand.u32 %v3466, 4294901760
    %3468 = vmatpush1.xpose.msra.mxu0 %v3467
    %3469 = vmatprep.subr.mxu0 0.0
    %v3470 = vand.u32 %v621, 4294901760
    %v3471 = vsub.f32 %v621, %v3470
    %v3472 = vand.u32 %v3471, 4294901760
    %v3473 = vsub.f32 %v3471, %v3472
    %v3474 = vand.u32 %v3473, 4294901760
    %3475 = vmatpush1.xpose.msra.mxu0 %v3474
    %3476 = vmatprep.subr.mxu0 0.0
    %v3477 = vand.u32 %v624, 4294901760
    %v3478 = vsub.f32 %v624, %v3477
    %v3479 = vand.u32 %v3478, 4294901760
    %v3480 = vsub.f32 %v3478, %v3479
    %v3481 = vand.u32 %v3480, 4294901760
    %3482 = vmatpush1.xpose.msra.mxu0 %v3481
    %3483 = vmatprep.subr.mxu0 0.0
    %v3484 = vand.u32 %v627, 4294901760
    %v3485 = vsub.f32 %v627, %v3484
    %v3486 = vand.u32 %v3485, 4294901760
    %v3487 = vsub.f32 %v3485, %v3486
    %v3488 = vand.u32 %v3487, 4294901760
    %3489 = vmatpush1.xpose.msra.mxu0 %v3488
    %3490 = vmatprep.subr.mxu0 0.0
    %v3491 = vand.u32 %v630, 4294901760
    %v3492 = vsub.f32 %v630, %v3491
    %v3493 = vand.u32 %v3492, 4294901760
    %v3494 = vsub.f32 %v3492, %v3493
    %v3495 = vand.u32 %v3494, 4294901760
    %3496 = vmatpush1.xpose.msra.mxu0 %v3495
    %3497 = vmatprep.subr.mxu0 0.0
    %v3498 = vand.u32 %v633, 4294901760
    %v3499 = vsub.f32 %v633, %v3498
    %v3500 = vand.u32 %v3499, 4294901760
    %v3501 = vsub.f32 %v3499, %v3500
    %v3502 = vand.u32 %v3501, 4294901760
    %3503 = vmatpush1.xpose.msra.mxu0 %v3502
    %3504 = vmatprep.subr.mxu0 0.0
    %v3505 = vand.u32 %v636, 4294901760
    %v3506 = vsub.f32 %v636, %v3505
    %v3507 = vand.u32 %v3506, 4294901760
    %v3508 = vsub.f32 %v3506, %v3507
    %v3509 = vand.u32 %v3508, 4294901760
    %3510 = vmatpush1.xpose.msra.mxu0 %v3509
    %3511 = vmatprep.subr.mxu0 0.0
    %v3512 = vand.u32 %v639, 4294901760
    %v3513 = vsub.f32 %v639, %v3512
    %v3514 = vand.u32 %v3513, 4294901760
    %v3515 = vsub.f32 %v3513, %v3514
    %v3516 = vand.u32 %v3515, 4294901760
    %3517 = vmatpush1.xpose.msra.mxu0 %v3516
    %3518 = vmatprep.subr.mxu0 0.0
    %v3519 = vand.u32 %v642, 4294901760
    %v3520 = vsub.f32 %v642, %v3519
    %v3521 = vand.u32 %v3520, 4294901760
    %v3522 = vsub.f32 %v3520, %v3521
    %v3523 = vand.u32 %v3522, 4294901760
    %3524 = vmatpush1.xpose.msra.mxu0 %v3523
    %3525 = vmatprep.subr.mxu0 0.0
    %v3526 = vand.u32 %v645, 4294901760
    %v3527 = vsub.f32 %v645, %v3526
    %v3528 = vand.u32 %v3527, 4294901760
    %v3529 = vsub.f32 %v3527, %v3528
    %v3530 = vand.u32 %v3529, 4294901760
    %3531 = vmatpush1.xpose.msra.mxu0 %v3530
    %3532 = vmatprep.subr.mxu0 0.0
    %v3533 = vand.u32 %v648, 4294901760
    %v3534 = vsub.f32 %v648, %v3533
    %v3535 = vand.u32 %v3534, 4294901760
    %v3536 = vsub.f32 %v3534, %v3535
    %v3537 = vand.u32 %v3536, 4294901760
    %3538 = vmatpush1.xpose.msra.mxu0 %v3537
    %3539 = vmatprep.subr.mxu0 0.0
    %v3540 = vand.u32 %v651, 4294901760
    %v3541 = vsub.f32 %v651, %v3540
    %v3542 = vand.u32 %v3541, 4294901760
    %v3543 = vsub.f32 %v3541, %v3542
    %v3544 = vand.u32 %v3543, 4294901760
    %3545 = vmatpush1.xpose.msra.mxu0 %v3544
    %3546 = vmatprep.subr.mxu0 0.0
    %v3547 = vand.u32 %v654, 4294901760
    %v3548 = vsub.f32 %v654, %v3547
    %v3549 = vand.u32 %v3548, 4294901760
    %v3550 = vsub.f32 %v3548, %v3549
    %v3551 = vand.u32 %v3550, 4294901760
    %3552 = vmatpush1.xpose.msra.mxu0 %v3551
    %3553 = vmatprep.mubr.f32.mxu0 0.0
    %v3554 = vand.u32 %v270, 4294901760
    %3555 = vmatmul.mubr.f32.gmra.mrb[0].mxu0 %v3554
    %v3556 = vpop.f32.mrb[0].mxu0
    %v3557 = vadd.f32 %v3325, %v3556
    %v3558 = vpop.f32.mrb[0].mxu0
    %v3559 = vadd.f32 %v3327, %v3558
    %3560 = vdwg.mxu0
    %3561 = vmatprep.subr.mxu0 0.0
    %v3562 = vand.u32 %v561, 4294901760
    %v3563 = vsub.f32 %v561, %v3562
    %3564 = vmatpush1.xpose.msra.mxu0 %v3563
    %3565 = vmatprep.subr.mxu0 0.0
    %v3566 = vand.u32 %v564, 4294901760
    %v3567 = vsub.f32 %v564, %v3566
    %3568 = vmatpush1.xpose.msra.mxu0 %v3567
    %3569 = vmatprep.subr.mxu0 0.0
    %v3570 = vand.u32 %v567, 4294901760
    %v3571 = vsub.f32 %v567, %v3570
    %3572 = vmatpush1.xpose.msra.mxu0 %v3571
    %3573 = vmatprep.subr.mxu0 0.0
    %v3574 = vand.u32 %v570, 4294901760
    %v3575 = vsub.f32 %v570, %v3574
    %3576 = vmatpush1.xpose.msra.mxu0 %v3575
    %3577 = vmatprep.subr.mxu0 0.0
    %v3578 = vand.u32 %v573, 4294901760
    %v3579 = vsub.f32 %v573, %v3578
    %3580 = vmatpush1.xpose.msra.mxu0 %v3579
    %3581 = vmatprep.subr.mxu0 0.0
    %v3582 = vand.u32 %v576, 4294901760
    %v3583 = vsub.f32 %v576, %v3582
    %3584 = vmatpush1.xpose.msra.mxu0 %v3583
    %3585 = vmatprep.subr.mxu0 0.0
    %v3586 = vand.u32 %v579, 4294901760
    %v3587 = vsub.f32 %v579, %v3586
    %3588 = vmatpush1.xpose.msra.mxu0 %v3587
    %3589 = vmatprep.subr.mxu0 0.0
    %v3590 = vand.u32 %v582, 4294901760
    %v3591 = vsub.f32 %v582, %v3590
    %3592 = vmatpush1.xpose.msra.mxu0 %v3591
    %3593 = vmatprep.subr.mxu0 0.0
    %v3594 = vand.u32 %v585, 4294901760
    %v3595 = vsub.f32 %v585, %v3594
    %3596 = vmatpush1.xpose.msra.mxu0 %v3595
    %3597 = vmatprep.subr.mxu0 0.0
    %v3598 = vand.u32 %v588, 4294901760
    %v3599 = vsub.f32 %v588, %v3598
    %3600 = vmatpush1.xpose.msra.mxu0 %v3599
    %3601 = vmatprep.subr.mxu0 0.0
    %v3602 = vand.u32 %v591, 4294901760
    %v3603 = vsub.f32 %v591, %v3602
    %3604 = vmatpush1.xpose.msra.mxu0 %v3603
    %3605 = vmatprep.subr.mxu0 0.0
    %v3606 = vand.u32 %v594, 4294901760
    %v3607 = vsub.f32 %v594, %v3606
    %3608 = vmatpush1.xpose.msra.mxu0 %v3607
    %3609 = vmatprep.subr.mxu0 0.0
    %v3610 = vand.u32 %v597, 4294901760
    %v3611 = vsub.f32 %v597, %v3610
    %3612 = vmatpush1.xpose.msra.mxu0 %v3611
    %3613 = vmatprep.subr.mxu0 0.0
    %v3614 = vand.u32 %v600, 4294901760
    %v3615 = vsub.f32 %v600, %v3614
    %3616 = vmatpush1.xpose.msra.mxu0 %v3615
    %3617 = vmatprep.subr.mxu0 0.0
    %v3618 = vand.u32 %v603, 4294901760
    %v3619 = vsub.f32 %v603, %v3618
    %3620 = vmatpush1.xpose.msra.mxu0 %v3619
    %3621 = vmatprep.subr.mxu0 0.0
    %v3622 = vand.u32 %v606, 4294901760
    %v3623 = vsub.f32 %v606, %v3622
    %3624 = vmatpush1.xpose.msra.mxu0 %v3623
    %3625 = vmatprep.subr.mxu0 0.0
    %v3626 = vand.u32 %v609, 4294901760
    %v3627 = vsub.f32 %v609, %v3626
    %3628 = vmatpush1.xpose.msra.mxu0 %v3627
    %3629 = vmatprep.subr.mxu0 0.0
    %v3630 = vand.u32 %v612, 4294901760
    %v3631 = vsub.f32 %v612, %v3630
    %3632 = vmatpush1.xpose.msra.mxu0 %v3631
    %3633 = vmatprep.subr.mxu0 0.0
    %v3634 = vand.u32 %v615, 4294901760
    %v3635 = vsub.f32 %v615, %v3634
    %3636 = vmatpush1.xpose.msra.mxu0 %v3635
    %3637 = vmatprep.subr.mxu0 0.0
    %v3638 = vand.u32 %v618, 4294901760
    %v3639 = vsub.f32 %v618, %v3638
    %3640 = vmatpush1.xpose.msra.mxu0 %v3639
    %3641 = vmatprep.subr.mxu0 0.0
    %v3642 = vand.u32 %v621, 4294901760
    %v3643 = vsub.f32 %v621, %v3642
    %3644 = vmatpush1.xpose.msra.mxu0 %v3643
    %3645 = vmatprep.subr.mxu0 0.0
    %v3646 = vand.u32 %v624, 4294901760
    %v3647 = vsub.f32 %v624, %v3646
    %3648 = vmatpush1.xpose.msra.mxu0 %v3647
    %3649 = vmatprep.subr.mxu0 0.0
    %v3650 = vand.u32 %v627, 4294901760
    %v3651 = vsub.f32 %v627, %v3650
    %3652 = vmatpush1.xpose.msra.mxu0 %v3651
    %3653 = vmatprep.subr.mxu0 0.0
    %v3654 = vand.u32 %v630, 4294901760
    %v3655 = vsub.f32 %v630, %v3654
    %3656 = vmatpush1.xpose.msra.mxu0 %v3655
    %3657 = vmatprep.subr.mxu0 0.0
    %v3658 = vand.u32 %v633, 4294901760
    %v3659 = vsub.f32 %v633, %v3658
    %3660 = vmatpush1.xpose.msra.mxu0 %v3659
    %3661 = vmatprep.subr.mxu0 0.0
    %v3662 = vand.u32 %v636, 4294901760
    %v3663 = vsub.f32 %v636, %v3662
    %3664 = vmatpush1.xpose.msra.mxu0 %v3663
    %3665 = vmatprep.subr.mxu0 0.0
    %v3666 = vand.u32 %v639, 4294901760
    %v3667 = vsub.f32 %v639, %v3666
    %3668 = vmatpush1.xpose.msra.mxu0 %v3667
    %3669 = vmatprep.subr.mxu0 0.0
    %v3670 = vand.u32 %v642, 4294901760
    %v3671 = vsub.f32 %v642, %v3670
    %3672 = vmatpush1.xpose.msra.mxu0 %v3671
    %3673 = vmatprep.subr.mxu0 0.0
    %v3674 = vand.u32 %v645, 4294901760
    %v3675 = vsub.f32 %v645, %v3674
    %3676 = vmatpush1.xpose.msra.mxu0 %v3675
    %3677 = vmatprep.subr.mxu0 0.0
    %v3678 = vand.u32 %v648, 4294901760
    %v3679 = vsub.f32 %v648, %v3678
    %3680 = vmatpush1.xpose.msra.mxu0 %v3679
    %3681 = vmatprep.subr.mxu0 0.0
    %v3682 = vand.u32 %v651, 4294901760
    %v3683 = vsub.f32 %v651, %v3682
    %3684 = vmatpush1.xpose.msra.mxu0 %v3683
    %3685 = vmatprep.subr.mxu0 0.0
    %v3686 = vand.u32 %v654, 4294901760
    %v3687 = vsub.f32 %v654, %v3686
    %3688 = vmatpush1.xpose.msra.mxu0 %v3687
    %3689 = vmatprep.mubr.f32.mxu0 0.0
    %v3690 = vand.u32 %v270, 4294901760
    %v3691 = vsub.f32 %v270, %v3690
    %3692 = vmatmul.mubr.f32.gmra.mrb[0].mxu0 %v3691
    %v3693 = vpop.f32.mrb[0].mxu0
    %v3694 = vadd.f32 %v3557, %v3693
    %v3695 = vpop.f32.mrb[0].mxu0
    %v3696 = vadd.f32 %v3559, %v3695
    %3697 = vdwg.mxu0
    %3698 = vmatprep.subr.mxu0 0.0
    %v3699 = vand.u32 %v561, 4294901760
    %3700 = vmatpush1.xpose.msra.mxu0 %v3699
    %3701 = vmatprep.subr.mxu0 0.0
    %v3702 = vand.u32 %v564, 4294901760
    %3703 = vmatpush1.xpose.msra.mxu0 %v3702
    %3704 = vmatprep.subr.mxu0 0.0
    %v3705 = vand.u32 %v567, 4294901760
    %3706 = vmatpush1.xpose.msra.mxu0 %v3705
    %3707 = vmatprep.subr.mxu0 0.0
    %v3708 = vand.u32 %v570, 4294901760
    %3709 = vmatpush1.xpose.msra.mxu0 %v3708
    %3710 = vmatprep.subr.mxu0 0.0
    %v3711 = vand.u32 %v573, 4294901760
    %3712 = vmatpush1.xpose.msra.mxu0 %v3711
    %3713 = vmatprep.subr.mxu0 0.0
    %v3714 = vand.u32 %v576, 4294901760
    %3715 = vmatpush1.xpose.msra.mxu0 %v3714
    %3716 = vmatprep.subr.mxu0 0.0
    %v3717 = vand.u32 %v579, 4294901760
    %3718 = vmatpush1.xpose.msra.mxu0 %v3717
    %3719 = vmatprep.subr.mxu0 0.0
    %v3720 = vand.u32 %v582, 4294901760
    %3721 = vmatpush1.xpose.msra.mxu0 %v3720
    %3722 = vmatprep.subr.mxu0 0.0
    %v3723 = vand.u32 %v585, 4294901760
    %3724 = vmatpush1.xpose.msra.mxu0 %v3723
    %3725 = vmatprep.subr.mxu0 0.0
    %v3726 = vand.u32 %v588, 4294901760
    %3727 = vmatpush1.xpose.msra.mxu0 %v3726
    %3728 = vmatprep.subr.mxu0 0.0
    %v3729 = vand.u32 %v591, 4294901760
    %3730 = vmatpush1.xpose.msra.mxu0 %v3729
    %3731 = vmatprep.subr.mxu0 0.0
    %v3732 = vand.u32 %v594, 4294901760
    %3733 = vmatpush1.xpose.msra.mxu0 %v3732
    %3734 = vmatprep.subr.mxu0 0.0
    %v3735 = vand.u32 %v597, 4294901760
    %3736 = vmatpush1.xpose.msra.mxu0 %v3735
    %3737 = vmatprep.subr.mxu0 0.0
    %v3738 = vand.u32 %v600, 4294901760
    %3739 = vmatpush1.xpose.msra.mxu0 %v3738
    %3740 = vmatprep.subr.mxu0 0.0
    %v3741 = vand.u32 %v603, 4294901760
    %3742 = vmatpush1.xpose.msra.mxu0 %v3741
    %3743 = vmatprep.subr.mxu0 0.0
    %v3744 = vand.u32 %v606, 4294901760
    %3745 = vmatpush1.xpose.msra.mxu0 %v3744
    %3746 = vmatprep.subr.mxu0 0.0
    %v3747 = vand.u32 %v609, 4294901760
    %3748 = vmatpush1.xpose.msra.mxu0 %v3747
    %3749 = vmatprep.subr.mxu0 0.0
    %v3750 = vand.u32 %v612, 4294901760
    %3751 = vmatpush1.xpose.msra.mxu0 %v3750
    %3752 = vmatprep.subr.mxu0 0.0
    %v3753 = vand.u32 %v615, 4294901760
    %3754 = vmatpush1.xpose.msra.mxu0 %v3753
    %3755 = vmatprep.subr.mxu0 0.0
    %v3756 = vand.u32 %v618, 4294901760
    %3757 = vmatpush1.xpose.msra.mxu0 %v3756
    %3758 = vmatprep.subr.mxu0 0.0
    %v3759 = vand.u32 %v621, 4294901760
    %3760 = vmatpush1.xpose.msra.mxu0 %v3759
    %3761 = vmatprep.subr.mxu0 0.0
    %v3762 = vand.u32 %v624, 4294901760
    %3763 = vmatpush1.xpose.msra.mxu0 %v3762
    %3764 = vmatprep.subr.mxu0 0.0
    %v3765 = vand.u32 %v627, 4294901760
    %3766 = vmatpush1.xpose.msra.mxu0 %v3765
    %3767 = vmatprep.subr.mxu0 0.0
    %v3768 = vand.u32 %v630, 4294901760
    %3769 = vmatpush1.xpose.msra.mxu0 %v3768
    %3770 = vmatprep.subr.mxu0 0.0
    %v3771 = vand.u32 %v633, 4294901760
    %3772 = vmatpush1.xpose.msra.mxu0 %v3771
    %3773 = vmatprep.subr.mxu0 0.0
    %v3774 = vand.u32 %v636, 4294901760
    %3775 = vmatpush1.xpose.msra.mxu0 %v3774
    %3776 = vmatprep.subr.mxu0 0.0
    %v3777 = vand.u32 %v639, 4294901760
    %3778 = vmatpush1.xpose.msra.mxu0 %v3777
    %3779 = vmatprep.subr.mxu0 0.0
    %v3780 = vand.u32 %v642, 4294901760
    %3781 = vmatpush1.xpose.msra.mxu0 %v3780
    %3782 = vmatprep.subr.mxu0 0.0
    %v3783 = vand.u32 %v645, 4294901760
    %3784 = vmatpush1.xpose.msra.mxu0 %v3783
    %3785 = vmatprep.subr.mxu0 0.0
    %v3786 = vand.u32 %v648, 4294901760
    %3787 = vmatpush1.xpose.msra.mxu0 %v3786
    %3788 = vmatprep.subr.mxu0 0.0
    %v3789 = vand.u32 %v651, 4294901760
    %3790 = vmatpush1.xpose.msra.mxu0 %v3789
    %3791 = vmatprep.subr.mxu0 0.0
    %v3792 = vand.u32 %v654, 4294901760
    %3793 = vmatpush1.xpose.msra.mxu0 %v3792
    %3794 = vmatprep.mubr.f32.mxu0 0.0
    %v3795 = vand.u32 %v270, 4294901760
    %v3796 = vsub.f32 %v270, %v3795
    %v3797 = vand.u32 %v3796, 4294901760
    %3798 = vmatmul.mubr.f32.gmra.mrb[0].mxu0 %v3797
    %v3799 = vpop.f32.mrb[0].mxu0
    %v3800 = vadd.f32 %v3694, %v3799
    %v3801 = vpop.f32.mrb[0].mxu0
    %v3802 = vadd.f32 %v3696, %v3801
    %3803 = vdwg.mxu0
    %3804 = vmatprep.subr.mxu0 0.0
    %v3805 = vand.u32 %v561, 4294901760
    %v3806 = vsub.f32 %v561, %v3805
    %v3807 = vand.u32 %v3806, 4294901760
    %3808 = vmatpush1.xpose.msra.mxu0 %v3807
    %3809 = vmatprep.subr.mxu0 0.0
    %v3810 = vand.u32 %v564, 4294901760
    %v3811 = vsub.f32 %v564, %v3810
    %v3812 = vand.u32 %v3811, 4294901760
    %3813 = vmatpush1.xpose.msra.mxu0 %v3812
    %3814 = vmatprep.subr.mxu0 0.0
    %v3815 = vand.u32 %v567, 4294901760
    %v3816 = vsub.f32 %v567, %v3815
    %v3817 = vand.u32 %v3816, 4294901760
    %3818 = vmatpush1.xpose.msra.mxu0 %v3817
    %3819 = vmatprep.subr.mxu0 0.0
    %v3820 = vand.u32 %v570, 4294901760
    %v3821 = vsub.f32 %v570, %v3820
    %v3822 = vand.u32 %v3821, 4294901760
    %3823 = vmatpush1.xpose.msra.mxu0 %v3822
    %3824 = vmatprep.subr.mxu0 0.0
    %v3825 = vand.u32 %v573, 4294901760
    %v3826 = vsub.f32 %v573, %v3825
    %v3827 = vand.u32 %v3826, 4294901760
    %3828 = vmatpush1.xpose.msra.mxu0 %v3827
    %3829 = vmatprep.subr.mxu0 0.0
    %v3830 = vand.u32 %v576, 4294901760
    %v3831 = vsub.f32 %v576, %v3830
    %v3832 = vand.u32 %v3831, 4294901760
    %3833 = vmatpush1.xpose.msra.mxu0 %v3832
    %3834 = vmatprep.subr.mxu0 0.0
    %v3835 = vand.u32 %v579, 4294901760
    %v3836 = vsub.f32 %v579, %v3835
    %v3837 = vand.u32 %v3836, 4294901760
    %3838 = vmatpush1.xpose.msra.mxu0 %v3837
    %3839 = vmatprep.subr.mxu0 0.0
    %v3840 = vand.u32 %v582, 4294901760
    %v3841 = vsub.f32 %v582, %v3840
    %v3842 = vand.u32 %v3841, 4294901760
    %3843 = vmatpush1.xpose.msra.mxu0 %v3842
    %3844 = vmatprep.subr.mxu0 0.0
    %v3845 = vand.u32 %v585, 4294901760
    %v3846 = vsub.f32 %v585, %v3845
    %v3847 = vand.u32 %v3846, 4294901760
    %3848 = vmatpush1.xpose.msra.mxu0 %v3847
    %3849 = vmatprep.subr.mxu0 0.0
    %v3850 = vand.u32 %v588, 4294901760
    %v3851 = vsub.f32 %v588, %v3850
    %v3852 = vand.u32 %v3851, 4294901760
    %3853 = vmatpush1.xpose.msra.mxu0 %v3852
    %3854 = vmatprep.subr.mxu0 0.0
    %v3855 = vand.u32 %v591, 4294901760
    %v3856 = vsub.f32 %v591, %v3855
    %v3857 = vand.u32 %v3856, 4294901760
    %3858 = vmatpush1.xpose.msra.mxu0 %v3857
    %3859 = vmatprep.subr.mxu0 0.0
    %v3860 = vand.u32 %v594, 4294901760
    %v3861 = vsub.f32 %v594, %v3860
    %v3862 = vand.u32 %v3861, 4294901760
    %3863 = vmatpush1.xpose.msra.mxu0 %v3862
    %3864 = vmatprep.subr.mxu0 0.0
    %v3865 = vand.u32 %v597, 4294901760
    %v3866 = vsub.f32 %v597, %v3865
    %v3867 = vand.u32 %v3866, 4294901760
    %3868 = vmatpush1.xpose.msra.mxu0 %v3867
    %3869 = vmatprep.subr.mxu0 0.0
    %v3870 = vand.u32 %v600, 4294901760
    %v3871 = vsub.f32 %v600, %v3870
    %v3872 = vand.u32 %v3871, 4294901760
    %3873 = vmatpush1.xpose.msra.mxu0 %v3872
    %3874 = vmatprep.subr.mxu0 0.0
    %v3875 = vand.u32 %v603, 4294901760
    %v3876 = vsub.f32 %v603, %v3875
    %v3877 = vand.u32 %v3876, 4294901760
    %3878 = vmatpush1.xpose.msra.mxu0 %v3877
    %3879 = vmatprep.subr.mxu0 0.0
    %v3880 = vand.u32 %v606, 4294901760
    %v3881 = vsub.f32 %v606, %v3880
    %v3882 = vand.u32 %v3881, 4294901760
    %3883 = vmatpush1.xpose.msra.mxu0 %v3882
    %3884 = vmatprep.subr.mxu0 0.0
    %v3885 = vand.u32 %v609, 4294901760
    %v3886 = vsub.f32 %v609, %v3885
    %v3887 = vand.u32 %v3886, 4294901760
    %3888 = vmatpush1.xpose.msra.mxu0 %v3887
    %3889 = vmatprep.subr.mxu0 0.0
    %v3890 = vand.u32 %v612, 4294901760
    %v3891 = vsub.f32 %v612, %v3890
    %v3892 = vand.u32 %v3891, 4294901760
    %3893 = vmatpush1.xpose.msra.mxu0 %v3892
    %3894 = vmatprep.subr.mxu0 0.0
    %v3895 = vand.u32 %v615, 4294901760
    %v3896 = vsub.f32 %v615, %v3895
    %v3897 = vand.u32 %v3896, 4294901760
    %3898 = vmatpush1.xpose.msra.mxu0 %v3897
    %3899 = vmatprep.subr.mxu0 0.0
    %v3900 = vand.u32 %v618, 4294901760
    %v3901 = vsub.f32 %v618, %v3900
    %v3902 = vand.u32 %v3901, 4294901760
    %3903 = vmatpush1.xpose.msra.mxu0 %v3902
    %3904 = vmatprep.subr.mxu0 0.0
    %v3905 = vand.u32 %v621, 4294901760
    %v3906 = vsub.f32 %v621, %v3905
    %v3907 = vand.u32 %v3906, 4294901760
    %3908 = vmatpush1.xpose.msra.mxu0 %v3907
    %3909 = vmatprep.subr.mxu0 0.0
    %v3910 = vand.u32 %v624, 4294901760
    %v3911 = vsub.f32 %v624, %v3910
    %v3912 = vand.u32 %v3911, 4294901760
    %3913 = vmatpush1.xpose.msra.mxu0 %v3912
    %3914 = vmatprep.subr.mxu0 0.0
    %v3915 = vand.u32 %v627, 4294901760
    %v3916 = vsub.f32 %v627, %v3915
    %v3917 = vand.u32 %v3916, 4294901760
    %3918 = vmatpush1.xpose.msra.mxu0 %v3917
    %3919 = vmatprep.subr.mxu0 0.0
    %v3920 = vand.u32 %v630, 4294901760
    %v3921 = vsub.f32 %v630, %v3920
    %v3922 = vand.u32 %v3921, 4294901760
    %3923 = vmatpush1.xpose.msra.mxu0 %v3922
    %3924 = vmatprep.subr.mxu0 0.0
    %v3925 = vand.u32 %v633, 4294901760
    %v3926 = vsub.f32 %v633, %v3925
    %v3927 = vand.u32 %v3926, 4294901760
    %3928 = vmatpush1.xpose.msra.mxu0 %v3927
    %3929 = vmatprep.subr.mxu0 0.0
    %v3930 = vand.u32 %v636, 4294901760
    %v3931 = vsub.f32 %v636, %v3930
    %v3932 = vand.u32 %v3931, 4294901760
    %3933 = vmatpush1.xpose.msra.mxu0 %v3932
    %3934 = vmatprep.subr.mxu0 0.0
    %v3935 = vand.u32 %v639, 4294901760
    %v3936 = vsub.f32 %v639, %v3935
    %v3937 = vand.u32 %v3936, 4294901760
    %3938 = vmatpush1.xpose.msra.mxu0 %v3937
    %3939 = vmatprep.subr.mxu0 0.0
    %v3940 = vand.u32 %v642, 4294901760
    %v3941 = vsub.f32 %v642, %v3940
    %v3942 = vand.u32 %v3941, 4294901760
    %3943 = vmatpush1.xpose.msra.mxu0 %v3942
    %3944 = vmatprep.subr.mxu0 0.0
    %v3945 = vand.u32 %v645, 4294901760
    %v3946 = vsub.f32 %v645, %v3945
    %v3947 = vand.u32 %v3946, 4294901760
    %3948 = vmatpush1.xpose.msra.mxu0 %v3947
    %3949 = vmatprep.subr.mxu0 0.0
    %v3950 = vand.u32 %v648, 4294901760
    %v3951 = vsub.f32 %v648, %v3950
    %v3952 = vand.u32 %v3951, 4294901760
    %3953 = vmatpush1.xpose.msra.mxu0 %v3952
    %3954 = vmatprep.subr.mxu0 0.0
    %v3955 = vand.u32 %v651, 4294901760
    %v3956 = vsub.f32 %v651, %v3955
    %v3957 = vand.u32 %v3956, 4294901760
    %3958 = vmatpush1.xpose.msra.mxu0 %v3957
    %3959 = vmatprep.subr.mxu0 0.0
    %v3960 = vand.u32 %v654, 4294901760
    %v3961 = vsub.f32 %v654, %v3960
    %v3962 = vand.u32 %v3961, 4294901760
    %3963 = vmatpush1.xpose.msra.mxu0 %v3962
    %3964 = vmatprep.mubr.f32.mxu0 0.0
    %v3965 = vand.u32 %v270, 4294901760
    %3966 = vmatmul.mubr.f32.gmra.mrb[0].mxu0 %v3965
    %v3967 = vpop.f32.mrb[0].mxu0
    %v3968 = vadd.f32 %v3800, %v3967
    %v3969 = vpop.f32.mrb[0].mxu0
    %v3970 = vadd.f32 %v3802, %v3969
    %3971 = vdwg.mxu0
    %3972 = vmatprep.subr.mxu0 0.0
    %v3973 = vand.u32 %v561, 4294901760
    %3974 = vmatpush1.xpose.msra.mxu0 %v3973
    %3975 = vmatprep.subr.mxu0 0.0
    %v3976 = vand.u32 %v564, 4294901760
    %3977 = vmatpush1.xpose.msra.mxu0 %v3976
    %3978 = vmatprep.subr.mxu0 0.0
    %v3979 = vand.u32 %v567, 4294901760
    %3980 = vmatpush1.xpose.msra.mxu0 %v3979
    %3981 = vmatprep.subr.mxu0 0.0
    %v3982 = vand.u32 %v570, 4294901760
    %3983 = vmatpush1.xpose.msra.mxu0 %v3982
    %3984 = vmatprep.subr.mxu0 0.0
    %v3985 = vand.u32 %v573, 4294901760
    %3986 = vmatpush1.xpose.msra.mxu0 %v3985
    %3987 = vmatprep.subr.mxu0 0.0
    %v3988 = vand.u32 %v576, 4294901760
    %3989 = vmatpush1.xpose.msra.mxu0 %v3988
    %3990 = vmatprep.subr.mxu0 0.0
    %v3991 = vand.u32 %v579, 4294901760
    %3992 = vmatpush1.xpose.msra.mxu0 %v3991
    %3993 = vmatprep.subr.mxu0 0.0
    %v3994 = vand.u32 %v582, 4294901760
    %3995 = vmatpush1.xpose.msra.mxu0 %v3994
    %3996 = vmatprep.subr.mxu0 0.0
    %v3997 = vand.u32 %v585, 4294901760
    %3998 = vmatpush1.xpose.msra.mxu0 %v3997
    %3999 = vmatprep.subr.mxu0 0.0
    %v4000 = vand.u32 %v588, 4294901760
    %4001 = vmatpush1.xpose.msra.mxu0 %v4000
    %4002 = vmatprep.subr.mxu0 0.0
    %v4003 = vand.u32 %v591, 4294901760
    %4004 = vmatpush1.xpose.msra.mxu0 %v4003
    %4005 = vmatprep.subr.mxu0 0.0
    %v4006 = vand.u32 %v594, 4294901760
    %4007 = vmatpush1.xpose.msra.mxu0 %v4006
    %4008 = vmatprep.subr.mxu0 0.0
    %v4009 = vand.u32 %v597, 4294901760
    %4010 = vmatpush1.xpose.msra.mxu0 %v4009
    %4011 = vmatprep.subr.mxu0 0.0
    %v4012 = vand.u32 %v600, 4294901760
    %4013 = vmatpush1.xpose.msra.mxu0 %v4012
    %4014 = vmatprep.subr.mxu0 0.0
    %v4015 = vand.u32 %v603, 4294901760
    %4016 = vmatpush1.xpose.msra.mxu0 %v4015
    %4017 = vmatprep.subr.mxu0 0.0
    %v4018 = vand.u32 %v606, 4294901760
    %4019 = vmatpush1.xpose.msra.mxu0 %v4018
    %4020 = vmatprep.subr.mxu0 0.0
    %v4021 = vand.u32 %v609, 4294901760
    %4022 = vmatpush1.xpose.msra.mxu0 %v4021
    %4023 = vmatprep.subr.mxu0 0.0
    %v4024 = vand.u32 %v612, 4294901760
    %4025 = vmatpush1.xpose.msra.mxu0 %v4024
    %4026 = vmatprep.subr.mxu0 0.0
    %v4027 = vand.u32 %v615, 4294901760
    %4028 = vmatpush1.xpose.msra.mxu0 %v4027
    %4029 = vmatprep.subr.mxu0 0.0
    %v4030 = vand.u32 %v618, 4294901760
    %4031 = vmatpush1.xpose.msra.mxu0 %v4030
    %4032 = vmatprep.subr.mxu0 0.0
    %v4033 = vand.u32 %v621, 4294901760
    %4034 = vmatpush1.xpose.msra.mxu0 %v4033
    %4035 = vmatprep.subr.mxu0 0.0
    %v4036 = vand.u32 %v624, 4294901760
    %4037 = vmatpush1.xpose.msra.mxu0 %v4036
    %4038 = vmatprep.subr.mxu0 0.0
    %v4039 = vand.u32 %v627, 4294901760
    %4040 = vmatpush1.xpose.msra.mxu0 %v4039
    %4041 = vmatprep.subr.mxu0 0.0
    %v4042 = vand.u32 %v630, 4294901760
    %4043 = vmatpush1.xpose.msra.mxu0 %v4042
    %4044 = vmatprep.subr.mxu0 0.0
    %v4045 = vand.u32 %v633, 4294901760
    %4046 = vmatpush1.xpose.msra.mxu0 %v4045
    %4047 = vmatprep.subr.mxu0 0.0
    %v4048 = vand.u32 %v636, 4294901760
    %4049 = vmatpush1.xpose.msra.mxu0 %v4048
    %4050 = vmatprep.subr.mxu0 0.0
    %v4051 = vand.u32 %v639, 4294901760
    %4052 = vmatpush1.xpose.msra.mxu0 %v4051
    %4053 = vmatprep.subr.mxu0 0.0
    %v4054 = vand.u32 %v642, 4294901760
    %4055 = vmatpush1.xpose.msra.mxu0 %v4054
    %4056 = vmatprep.subr.mxu0 0.0
    %v4057 = vand.u32 %v645, 4294901760
    %4058 = vmatpush1.xpose.msra.mxu0 %v4057
    %4059 = vmatprep.subr.mxu0 0.0
    %v4060 = vand.u32 %v648, 4294901760
    %4061 = vmatpush1.xpose.msra.mxu0 %v4060
    %4062 = vmatprep.subr.mxu0 0.0
    %v4063 = vand.u32 %v651, 4294901760
    %4064 = vmatpush1.xpose.msra.mxu0 %v4063
    %4065 = vmatprep.subr.mxu0 0.0
    %v4066 = vand.u32 %v654, 4294901760
    %4067 = vmatpush1.xpose.msra.mxu0 %v4066
    %4068 = vmatprep.mubr.f32.mxu0 0.0
    %v4069 = vand.u32 %v270, 4294901760
    %4070 = vmatmul.mubr.f32.gmra.mrb[0].mxu0 %v4069
    %v4071 = vpop.f32.mrb[0].mxu0
    %v4072 = vadd.f32 %v3968, %v4071
    %v4073 = vpop.f32.mrb[0].mxu0
    %v4074 = vadd.f32 %v3970, %v4073
    %4075 = vdwg.mxu0
    %v4076 = vld [vmem:[%s1] sm:$0xff]
    %v4077 = vmul.f32 %v4076, 0.1
    %v4079 = vlaneseq
    %v4080 = vshrl.u32 %v4079, 7
    %v4081 = vsub.s32 0, %v4080
    %v4082 = vrot.slane %v4077, %v4081
    %v4083 = vlaneseq
    %v4084 = vshrl.u32 %v4083, 7
    %v4085 = vsub.s32 1, %v4084
    %v4086 = vrot.slane %v4077, %v4085
    %v4087 = vlaneseq
    %v4088 = vshrl.u32 %v4087, 7
    %v4089 = vsub.s32 2, %v4088
    %v4090 = vrot.slane %v4077, %v4089
    %v4091 = vlaneseq
    %v4092 = vshrl.u32 %v4091, 7
    %v4093 = vsub.s32 3, %v4092
    %v4094 = vrot.slane %v4077, %v4093
    %v4095 = vlaneseq
    %v4096 = vshrl.u32 %v4095, 7
    %v4097 = vsub.s32 4, %v4096
    %v4098 = vrot.slane %v4077, %v4097
    %v4099 = vlaneseq
    %v4100 = vshrl.u32 %v4099, 7
    %v4101 = vsub.s32 5, %v4100
    %v4102 = vrot.slane %v4077, %v4101
    %v4103 = vlaneseq
    %v4104 = vshrl.u32 %v4103, 7
    %v4105 = vsub.s32 6, %v4104
    %v4106 = vrot.slane %v4077, %v4105
    %v4107 = vlaneseq
    %v4108 = vshrl.u32 %v4107, 7
    %v4109 = vsub.s32 7, %v4108
    %v4110 = vrot.slane %v4077, %v4109
    %v4119 = vadd.f32 %v1507, %v4082
    %v4120 = vadd.f32 %v1509, %v4086
    %v4121 = vadd.f32 %v2362, %v4090
    %v4122 = vadd.f32 %v2364, %v4094
    %v4123 = vadd.f32 %v3217, %v4098
    %v4124 = vadd.f32 %v3219, %v4102
    %v4125 = vadd.f32 %v4072, %v4106
    %v4126 = vadd.f32 %v4074, %v4110
    %v4127 = vsub.f32 0.0, %v4119
    %v4128 = vsub.f32 0.0, %v4120
    %v4129 = vsub.f32 0.0, %v4121
    %v4130 = vsub.f32 0.0, %v4122
    %v4131 = vsub.f32 0.0, %v4123
    %v4132 = vsub.f32 0.0, %v4124
    %v4133 = vsub.f32 0.0, %v4125
    %v4134 = vsub.f32 0.0, %v4126
    %v4143 = vcombine.low %v4127, %v4128
    %v4144 = vcombine.low %v4129, %v4130
    %v4145 = vcombine.low %v4131, %v4132
    %v4146 = vcombine.low %v4133, %v4134
    %v4148 = vunpack.c.l.s4 1966171168
    %v4149 = vunpack.c.0.s8 %v4148
    %v4150 = vlaneseq
    %v4151 = vshrl.u32 %v4150, 7
    %v4152 = vsub.s32 %v4149, %v4151
    %v4153 = vrot.slane %v4143, %v4152
    %v4155 = vunpack.c.l.s4 1966171168
    %v4156 = vunpack.c.0.s8 %v4155
    %v4157 = vlaneseq
    %v4158 = vshrl.u32 %v4157, 7
    %v4159 = vsub.s32 %v4156, %v4158
    %v4160 = vrot.slane %v4144, %v4159
    %v4162 = vunpack.c.l.s4 1966171168
    %v4163 = vunpack.c.0.s8 %v4162
    %v4164 = vlaneseq
    %v4165 = vshrl.u32 %v4164, 7
    %v4166 = vsub.s32 %v4163, %v4165
    %v4167 = vrot.slane %v4145, %v4166
    %v4169 = vunpack.c.l.s4 1966171168
    %v4170 = vunpack.c.0.s8 %v4169
    %v4171 = vlaneseq
    %v4172 = vshrl.u32 %v4171, 7
    %v4173 = vsub.s32 %v4170, %v4172
    %v4174 = vrot.slane %v4146, %v4173
    %v4175 = vcombine.low %v4153, %v4160
    %v4176 = vcombine.low %v4167, %v4174
    %v4178 = vunpack.c.l.s4 1966171168
    %v4179 = vunpack.c.0.s8 %v4178
    %v4180 = vlaneseq
    %v4181 = vshrl.u32 %v4180, 7
    %v4182 = vsub.s32 %v4179, %v4181
    %v4183 = vrot.slane %v4175, %v4182
    %v4185 = vunpack.c.l.s4 1966171168
    %v4186 = vunpack.c.0.s8 %v4185
    %v4187 = vlaneseq
    %v4188 = vshrl.u32 %v4187, 7
    %v4189 = vsub.s32 %v4186, %v4188
    %v4190 = vrot.slane %v4176, %v4189
    %v4191 = vcombine.low %v4183, %v4190
    %4193 = vst [vmem:[#allocation2] sm:$0xff] %v4191
    // Predicated region
    $region10: #{tpu_custom_call.1} parent=1 // pred_check
      _
    $region11: #{tpu_custom_call.1} parent=1 // pred_check_branch
      %4195 = sbr.rel (0) target = $region13
    $region12: #{tpu_custom_call.1} parent=1 // pred_region
      %s4197 = ssub.s32 128, 128
      %4198 = vsyncadd [#allocation3], %s4197
      %s4200 = sshll.u32 [#allocation2], 4
      %s4201 = int_to_ptr.vmem [resolvable:$true] %s4200
      %4203 = dma.vmem_to_hbm [thread:$0]  %s4201, 128, %s2, [#allocation3]
    $region13: #{tpu_custom_call.1} parent=1 // pred_fallthru
      _
    // Predicated region
    $region14: #{tpu_custom_call.1} parent=1 // pred_check
      _
    $region15: #{tpu_custom_call.1} parent=1 // pred_check_branch
      %4205 = sbr.rel (0) target = $region17
    $region16: #{tpu_custom_call.1} parent=1 // pred_region
      %4206 = dma.done [#allocation3], 128
    $region17: #{tpu_custom_call.1} parent=1 // pred_fallthru
      _
    %4207 = vsyncpa [#allocation3], 1

</llo_original>
